<compile_context>
chip_gen: v7x
topology: tpu7x:2x2x1
jax: 0.10.0
libtpu: 0.0.40
codegen_flags: <defaults>
</compile_context>

<pallas_src>
import functools
import math

import jax
import jax.numpy as jnp
from jax import lax
from jax.experimental import pallas as pl
from jax.experimental.pallas import tpu as pltpu


def _layer_norm(x, gamma, beta, eps=1e-5):
    # x: (R, E) f32, gamma/beta: (1, E) f32. Biased variance, like nn.LayerNorm.
    mean = jnp.mean(x, axis=-1, keepdims=True)
    var = jnp.mean((x - mean) ** 2, axis=-1, keepdims=True)
    inv = lax.rsqrt(var + eps)
    return (x - mean) * inv * gamma + beta


def encoder_layer_kernel(
    x_ref,      # (Bb, S, E)  f32
    wqkv_ref,   # (E, 3E)     bf16  [Wq*scale | Wk | Wv]
    wo_ref,     # (E, E)      bf16
    bo_ref,     # (1, E)      f32
    g1_ref,     # (1, E)      f32   LayerNorm1 gamma
    b1_ref,     # (1, E)      f32   LayerNorm1 beta
    w1_ref,     # (E, H)      bf16  FFN linear1
    bf1_ref,    # (1, H)      f32
    w2_ref,     # (H, E)      bf16  FFN linear2
    bf2_ref,    # (1, E)      f32
    g2_ref,     # (1, E)      f32   LayerNorm2 gamma
    b2_ref,     # (1, E)      f32   LayerNorm2 beta
    o_ref,      # (Bb, S, E)  f32
    *,
    n_heads,
    head_dim,
):
    bb, seq, emb = x_ref.shape
    rows = bb * seq

    x = x_ref[...].astype(jnp.float32)           # (Bb, S, E)
    x2 = x.reshape(rows, emb)                    # residual path stays f32
    xb = x2.astype(jnp.bfloat16)

    # ---- fused QKV projection (attention scale pre-folded into the Q columns) ----
    qkv = jnp.dot(xb, wqkv_ref[...], preferred_element_type=jnp.float32)   # (R, 3E) f32

    # Single bf16 cast of the whole QKV block; per-head q/k/v are slices of it.
    qkv_bf = qkv.astype(jnp.bfloat16)
    q_all = qkv_bf[:, :emb].reshape(bb, seq, emb)            # (Bb, S, E) bf16
    k_all = qkv_bf[:, emb:2 * emb].reshape(bb, seq, emb)
    v_all = qkv_bf[:, 2 * emb:].reshape(bb, seq, emb)

    # ---- per-head attention; contexts collected contiguously, Wo applied once ----
    ctx_heads = []
    for h in range(n_heads):                     # static unroll over heads
        sl = slice(h * head_dim, (h + 1) * head_dim)
        s = jnp.einsum("bqd,bkd->bqk", q_all[..., sl], k_all[..., sl],
                       preferred_element_type=jnp.float32)      # (Bb, S, S), already scaled
        s = s - jnp.max(s, axis=-1, keepdims=True)
        p = jnp.exp(s)
        p = p * pl.reciprocal(jnp.sum(p, axis=-1, keepdims=True), approx=True)
        ctx_heads.append(
            jnp.einsum("bqk,bkd->bqd", p.astype(jnp.bfloat16), v_all[..., sl],
                       preferred_element_type=jnp.float32))      # (Bb, S, d) f32

    # heads occupy contiguous column blocks -> one concatenate gives (R, E), then a
    # single full-depth (K=E) output projection on the MXU instead of n_heads K=d matmuls.
    ctx = jnp.concatenate(ctx_heads, axis=-1).reshape(rows, emb)
    attn = jnp.dot(ctx.astype(jnp.bfloat16), wo_ref[...],
                   preferred_element_type=jnp.float32) + bo_ref[...]
    # dropout(p=0.1) is identity in eval mode.

    h1 = _layer_norm(x2 + attn, g1_ref[...], b1_ref[...])       # (R, E) f32

    # ---- feed forward ----
    ff = jnp.dot(h1.astype(jnp.bfloat16), w1_ref[...],
                 preferred_element_type=jnp.float32) + bf1_ref[...]          # (R, H)
    # exact (erf-based) GELU, matching torch.nn.functional.gelu default
    ff = ff * 0.5 * (1.0 + lax.erf(ff * (1.0 / math.sqrt(2.0))))
    ff = jnp.dot(ff.astype(jnp.bfloat16), w2_ref[...],
                 preferred_element_type=jnp.float32) + bf2_ref[...]          # (R, E)
    # dropout(p=0.1) is identity in eval mode.

    out = _layer_norm(h1 + ff, g2_ref[...], b2_ref[...])
    o_ref[...] = out.reshape(bb, seq, emb).astype(o_ref.dtype)


def _vmem_capacity_bytes():
    """Per-TensorCore VMEM capacity; conservative (v7x) fallback if unavailable."""
    try:
        info = pltpu.get_tpu_info()
        cap = getattr(info, "vmem_capacity_bytes", None)
        if cap:
            return int(cap)
    except Exception:
        pass
    return 64 * 1024 * 1024


def _pick_batch_block(B, S, E, H, vmem_bytes):
    """Largest divisor Bb of B such that the per-step working set fits in VMEM,
    capped at B//2 so the parallel batch grid axis has >=2 steps (2 TCs on v7x)."""
    weight_bytes = 2 * (3 * E * E + E * E + E * H + H * E)       # bf16, single-buffered
    param_bytes = 4 * (6 * E + H)

    def step_bytes(bb):
        rows = bb * S
        f32_per_row = 8 * E + 3 * E + H                           # x2,attn,h1,ff_out,out,... + qkv + ff hidden
        bf16_per_row = 3 * E + 2 * E + H                          # qkv_bf, ctx/h1 casts, ff cast
        scores = 2 * bb * S * S * 4                               # live score / prob tiles (f32)
        io = 2 * 2 * rows * E * 4                                 # double-buffered x / out blocks
        return rows * (4 * f32_per_row + 2 * bf16_per_row) + scores + io + weight_bytes + param_bytes

    budget = int(vmem_bytes * 0.75)
    cap = B // 2 if B >= 2 else B
    best = 1
    for bb in range(1, max(cap, 1) + 1):
        if B % bb == 0 and step_bytes(bb) <= budget:
            best = bb
    return best


def encoder_layer(x, params, *, n_heads):
    """x: (B, S, E) float32. params: dict of f32 weights (see init_params)."""
    B, S, E = x.shape
    head_dim = E // n_heads
    H = params["w1"].shape[1]

    vmem_cap = _vmem_capacity_bytes()
    Bb = _pick_batch_block(B, S, E, H, vmem_cap)
    # Use most of physical VMEM: ~100 MiB on v5e/v6e (128 MiB), ~56 MiB on v7x (64 MiB).
    vmem_limit = int(min(vmem_cap * 7 // 8, 100 * 1024 * 1024))

    scale = head_dim ** -0.5
    # Fuse QKV, fold the attention scale into the Q columns, cast MXU weights to bf16.
    wqkv = jnp.concatenate(
        [params["wq"] * scale, params["wk"], params["wv"]], axis=1
    ).astype(jnp.bfloat16)
    wo = params["wo"].astype(jnp.bfloat16)
    w1 = params["w1"].astype(jnp.bfloat16)
    w2 = params["w2"].astype(jnp.bfloat16)

    kernel = functools.partial(encoder_layer_kernel, n_heads=n_heads, head_dim=head_dim)

    flops = (
        2 * B * S * E * (3 * E)                      # fused qkv projection
        + 2 * B * n_heads * S * S * head_dim * 2     # scores + context
        + 2 * B * S * E * E                          # output projection (single K=E matmul)
        + 2 * B * S * E * H * 2                      # FFN
    )
    transcendentals = B * n_heads * S * S + B * S * H
    bytes_accessed = (
        4 * B * S * E * 2                            # x in + out (f32)
        + 2 * (E * 3 * E + E * E + E * H + H * E)    # bf16 weights
        + 4 * (6 * E + H)                            # f32 biases / LN params
    )
    cost = pl.CostEstimate(flops=int(flops),
                           transcendentals=int(transcendentals),
                           bytes_accessed=int(bytes_accessed))

    def build(weight_pipeline_mode):
        def wspec(shape):
            if weight_pipeline_mode is None:
                return pl.BlockSpec(shape, lambda b: (0, 0))
            return pl.BlockSpec(shape, lambda b: (0, 0),
                                pipeline_mode=weight_pipeline_mode)

        return pl.pallas_call(
            kernel,
            out_shape=jax.ShapeDtypeStruct((B, S, E), jnp.float32),
            grid_spec=pltpu.PrefetchScalarGridSpec(
                num_scalar_prefetch=0,
                grid=(B // Bb,),
                in_specs=[
                    pl.BlockSpec((Bb, S, E), lambda b: (b, 0, 0)),   # x (pipelined)
                    wspec((E, 3 * E)),                                # wqkv (bf16)
                    wspec((E, E)),                                    # wo   (bf16)
                    wspec((1, E)),                                    # bo
                    wspec((1, E)),                                    # gamma1
                    wspec((1, E)),                                    # beta1
                    wspec((E, H)),                                    # w1   (bf16)
                    wspec((1, H)),                                    # bf1
                    wspec((H, E)),                                    # w2   (bf16)
                    wspec((1, E)),                                    # bf2
                    wspec((1, E)),                                    # gamma2
                    wspec((1, E)),                                    # beta2
                ],
                out_specs=pl.BlockSpec((Bb, S, E), lambda b: (b, 0, 0)),
            ),
            compiler_params=pltpu.CompilerParams(
                dimension_semantics=("parallel",),       # batch steps independent (v7x: 2 TCs)
                vmem_limit_bytes=vmem_limit,
            ),
            cost_estimate=cost,
        )

    args = (
        x,
        wqkv, wo, params["bo"],
        params["g1"], params["b1"],
        w1, params["bf1"],
        w2, params["bf2"],
        params["g2"], params["b2"],
    )

    try:
        # Weights/params have constant index maps (fetched once): request a single
        # VMEM buffer for them instead of the default double buffer.
        return build(pl.Buffered(1))(*args)
    except Exception:
        # Fallback for jax builds that reject buffer_count=1 at the pallas_call level.
        return build(None)(*args)


def init_params(key, emb_size, n_heads, expansion_factor):
    """Deterministic synthetic parameters (shapes follow the PyTorch module)."""
    H = expansion_factor * emb_size
    ks = jax.random.split(key, 10)
    scale = 0.05
    p = {
        # per-head q/k/v weights, pre-concatenated along the output dim:
        # column block h*head_dim:(h+1)*head_dim is head h's projection.
        "wq": scale * jax.random.normal(ks[0], (emb_size, emb_size), jnp.float32),
        "wk": scale * jax.random.normal(ks[1], (emb_size, emb_size), jnp.float32),
        "wv": scale * jax.random.normal(ks[2], (emb_size, emb_size), jnp.float32),
        "wo": scale * jax.random.normal(ks[3], (emb_size, emb_size), jnp.float32),
        "bo": scale * jax.random.normal(ks[4], (1, emb_size), jnp.float32),
        "g1": jnp.ones((1, emb_size), jnp.float32),
        "b1": jnp.zeros((1, emb_size), jnp.float32),
        "w1": scale * jax.random.normal(ks[5], (emb_size, H), jnp.float32),
        "bf1": scale * jax.random.normal(ks[6], (1, H), jnp.float32),
        "w2": scale * jax.random.normal(ks[7], (H, emb_size), jnp.float32),
        "bf2": scale * jax.random.normal(ks[8], (1, emb_size), jnp.float32),
        "g2": jnp.ones((1, emb_size), jnp.float32),
        "b2": jnp.zeros((1, emb_size), jnp.float32),
    }
    return p


def encoder_layer_ref(x, params, *, n_heads):
    """Pure-JAX f32 reference mirroring the PyTorch forward (eval mode)."""
    B, S, E = x.shape
    head_dim = E // n_heads

    def ln(v, g, b, eps=1e-5):
        m = jnp.mean(v, axis=-1, keepdims=True)
        var = jnp.mean((v - m) ** 2, axis=-1, keepdims=True)
        return (v - m) / jnp.sqrt(var + eps) * g + b

    q = x @ params["wq"]
    k = x @ params["wk"]
    v = x @ params["wv"]
    ctxs = []
    for h in range(n_heads):
        sl = slice(h * head_dim, (h + 1) * head_dim)
        s = jnp.einsum("bqd,bkd->bqk", q[..., sl], k[..., sl]) * (head_dim ** -0.5)
        a = jax.nn.softmax(s, axis=-1)
        ctxs.append(jnp.einsum("bqk,bkd->bqd", a, v[..., sl]))
    ctx = jnp.concatenate(ctxs, axis=-1)
    attn = ctx @ params["wo"] + params["bo"]
    h1 = ln(x + attn, params["g1"], params["b1"])
    ff = h1 @ params["w1"] + params["bf1"]
    ff = ff * 0.5 * (1.0 + lax.erf(ff / jnp.sqrt(2.0)))
    ff = ff @ params["w2"] + params["bf2"]
    return ln(h1 + ff, params["g2"], params["b2"])


if __name__ == "__main__":
    # Small but lane-dense demo shapes: E = 128 keeps output stores unmasked and
    # matmul K/N dims tile-aligned; B = 4 gives a >=2-step parallel batch grid.
    B, S, E = 4, 16, 128
    n_heads = 4
    expansion_factor = 4

    key = jax.random.PRNGKey(0)
    k_x, k_p = jax.random.split(key)
    x = jax.random.normal(k_x, (B, S, E), jnp.float32)
    params = init_params(k_p, E, n_heads, expansion_factor)

    out = encoder_layer(x, params, n_heads=n_heads)
    out = jax.block_until_ready(out)

    ref = encoder_layer_ref(x, params, n_heads=n_heads)
    assert out.shape == (B, S, E)
    # Matmuls run in bf16 on the MXU (f32 accumulation) and the softmax denominator
    # uses the approximate EUP reciprocal, so compare with a bf16-appropriate tolerance.
    assert jnp.allclose(out, ref, atol=3e-2, rtol=3e-2), "mismatch vs JAX reference"

    print("KERNEL_OK")
</pallas_src>

<mosaic_0001>
module attributes {stable_mosaic.version = 11 : i64} {
  func.func @encoder_layer_kernel(%arg0: i32, %arg1: memref<2x16x128xf32, #tpu.memory_space<vmem>>, %arg2: memref<128x384xbf16, #tpu.memory_space<vmem>>, %arg3: memref<128x128xbf16, #tpu.memory_space<vmem>>, %arg4: memref<1x128xf32, #tpu.memory_space<vmem>>, %arg5: memref<1x128xf32, #tpu.memory_space<vmem>>, %arg6: memref<1x128xf32, #tpu.memory_space<vmem>>, %arg7: memref<128x512xbf16, #tpu.memory_space<vmem>>, %arg8: memref<1x512xf32, #tpu.memory_space<vmem>>, %arg9: memref<512x128xbf16, #tpu.memory_space<vmem>>, %arg10: memref<1x128xf32, #tpu.memory_space<vmem>>, %arg11: memref<1x128xf32, #tpu.memory_space<vmem>>, %arg12: memref<1x128xf32, #tpu.memory_space<vmem>>, %arg13: memref<2x16x128xf32, #tpu.memory_space<vmem>>) attributes {dimension_semantics = [#tpu.dimension_semantics<parallel>], iteration_bounds = array<i64: 2>, scalar_prefetch = 0 : i64, scratch_operands = 0 : i64, tpu.core_type = #tpu.core_type<tc>, window_params = [{transform_indices = @transform_0, window_bounds = array<i64: 2, 16, 128>}, {pipeline_mode = #tpu.pipeline_mode<synchronous>, transform_indices = @transform_1, window_bounds = array<i64: 128, 384>}, {pipeline_mode = #tpu.pipeline_mode<synchronous>, transform_indices = @transform_2, window_bounds = array<i64: 128, 128>}, {pipeline_mode = #tpu.pipeline_mode<synchronous>, transform_indices = @transform_3, window_bounds = array<i64: 1, 128>}, {pipeline_mode = #tpu.pipeline_mode<synchronous>, transform_indices = @transform_4, window_bounds = array<i64: 1, 128>}, {pipeline_mode = #tpu.pipeline_mode<synchronous>, transform_indices = @transform_5, window_bounds = array<i64: 1, 128>}, {pipeline_mode = #tpu.pipeline_mode<synchronous>, transform_indices = @transform_6, window_bounds = array<i64: 128, 512>}, {pipeline_mode = #tpu.pipeline_mode<synchronous>, transform_indices = @transform_7, window_bounds = array<i64: 1, 512>}, {pipeline_mode = #tpu.pipeline_mode<synchronous>, transform_indices = @transform_8, window_bounds = array<i64: 512, 128>}, {pipeline_mode = #tpu.pipeline_mode<synchronous>, transform_indices = @transform_9, window_bounds = array<i64: 1, 128>}, {pipeline_mode = #tpu.pipeline_mode<synchronous>, transform_indices = @transform_10, window_bounds = array<i64: 1, 128>}, {pipeline_mode = #tpu.pipeline_mode<synchronous>, transform_indices = @transform_11, window_bounds = array<i64: 1, 128>}, {transform_indices = @transform_12, window_bounds = array<i64: 2, 16, 128>}]} {
    %c0 = arith.constant 0 : index
    %c0_0 = arith.constant 0 : index
    %c0_1 = arith.constant 0 : index
    %0 = vector.load %arg1[%c0, %c0_0, %c0_1] : memref<2x16x128xf32, #tpu.memory_space<vmem>>, vector<2x16x128xf32>
    %1 = vector.shape_cast %0 : vector<2x16x128xf32> to vector<32x128xf32>
    %2 = arith.truncf %1 : vector<32x128xf32> to vector<32x128xbf16>
    %c0_2 = arith.constant 0 : index
    %c0_3 = arith.constant 0 : index
    %3 = vector.load %arg2[%c0_2, %c0_3] : memref<128x384xbf16, #tpu.memory_space<vmem>>, vector<128x384xbf16>
    %cst = arith.constant dense<0.000000e+00> : vector<32x384xf32>
    %4 = tpu.matmul %2, %3, %cst {dimension_numbers = #tpu.dot_dimension_numbers<[1], [0], [0], [1], [0, 0, 1, 1], [], []>} : vector<32x128xbf16>, vector<128x384xbf16>, vector<32x384xf32> -> vector<32x384xf32>
    %5 = arith.truncf %4 : vector<32x384xf32> to vector<32x384xbf16>
    %6 = vector.extract_strided_slice %5 {offsets = [0, 0], sizes = [32, 128], strides = [1, 1]} : vector<32x384xbf16> to vector<32x128xbf16>
    %7 = vector.shape_cast %6 : vector<32x128xbf16> to vector<2x16x128xbf16>
    %8 = vector.extract_strided_slice %5 {offsets = [0, 128], sizes = [32, 128], strides = [1, 1]} : vector<32x384xbf16> to vector<32x128xbf16>
    %9 = vector.shape_cast %8 : vector<32x128xbf16> to vector<2x16x128xbf16>
    %10 = vector.extract_strided_slice %5 {offsets = [0, 256], sizes = [32, 128], strides = [1, 1]} : vector<32x384xbf16> to vector<32x128xbf16>
    %11 = vector.shape_cast %10 : vector<32x128xbf16> to vector<2x16x128xbf16>
    %12 = vector.extract_strided_slice %7 {offsets = [0, 0, 0], sizes = [2, 16, 32], strides = [1, 1, 1]} : vector<2x16x128xbf16> to vector<2x16x32xbf16>
    %13 = vector.extract_strided_slice %9 {offsets = [0, 0, 0], sizes = [2, 16, 32], strides = [1, 1, 1]} : vector<2x16x128xbf16> to vector<2x16x32xbf16>
    "tpu.trace_start"() <{level = 10 : i32, message = "bqd,bkd->bqk"}> : () -> ()
    %cst_4 = arith.constant dense<0.000000e+00> : vector<2x16x16xf32>
    %14 = tpu.matmul %12, %13, %cst_4 {dimension_numbers = #tpu.dot_dimension_numbers<[2], [2], [1], [1], [0, 0, 0, 1, 1, 1], [0], [0]>} : vector<2x16x32xbf16>, vector<2x16x32xbf16>, vector<2x16x16xf32> -> vector<2x16x16xf32>
    "tpu.trace_stop"() : () -> ()
    %cst_5 = arith.constant dense<0xFF800000> : vector<2x16xf32>
    %15 = vector.multi_reduction <maximumf>, %14, %cst_5 [2] : vector<2x16x16xf32> to vector<2x16xf32>
    %16 = vector.shape_cast %15 : vector<2x16xf32> to vector<2x16x1xf32>
    %17 = vector.broadcast %16 : vector<2x16x1xf32> to vector<2x16x16xf32>
    %18 = arith.subf %14, %17 : vector<2x16x16xf32>
    %19 = math.exp %18 : vector<2x16x16xf32>
    %cst_6 = arith.constant dense<0.000000e+00> : vector<2x16xf32>
    %20 = vector.multi_reduction <add>, %19, %cst_6 [2] : vector<2x16x16xf32> to vector<2x16xf32>
    %21 = vector.shape_cast %20 : vector<2x16xf32> to vector<2x16x1xf32>
    %22 = tpu.reciprocal %21 {approx = true} : vector<2x16x1xf32> -> vector<2x16x1xf32>
    %23 = vector.broadcast %22 : vector<2x16x1xf32> to vector<2x16x16xf32>
    %24 = arith.mulf %19, %23 : vector<2x16x16xf32>
    %25 = arith.truncf %24 : vector<2x16x16xf32> to vector<2x16x16xbf16>
    %26 = vector.extract_strided_slice %11 {offsets = [0, 0, 0], sizes = [2, 16, 32], strides = [1, 1, 1]} : vector<2x16x128xbf16> to vector<2x16x32xbf16>
    "tpu.trace_start"() <{level = 10 : i32, message = "bqk,bkd->bqd"}> : () -> ()
    %cst_7 = arith.constant dense<0.000000e+00> : vector<2x16x32xf32>
    %27 = tpu.matmul %25, %26, %cst_7 {dimension_numbers = #tpu.dot_dimension_numbers<[2], [1], [1], [2], [0, 0, 0, 1, 1, 2], [0], [0]>} : vector<2x16x16xbf16>, vector<2x16x32xbf16>, vector<2x16x32xf32> -> vector<2x16x32xf32>
    "tpu.trace_stop"() : () -> ()
    %28 = vector.extract_strided_slice %7 {offsets = [0, 0, 32], sizes = [2, 16, 32], strides = [1, 1, 1]} : vector<2x16x128xbf16> to vector<2x16x32xbf16>
    %29 = vector.extract_strided_slice %9 {offsets = [0, 0, 32], sizes = [2, 16, 32], strides = [1, 1, 1]} : vector<2x16x128xbf16> to vector<2x16x32xbf16>
    "tpu.trace_start"() <{level = 10 : i32, message = "bqd,bkd->bqk"}> : () -> ()
    %cst_8 = arith.constant dense<0.000000e+00> : vector<2x16x16xf32>
    %30 = tpu.matmul %28, %29, %cst_8 {dimension_numbers = #tpu.dot_dimension_numbers<[2], [2], [1], [1], [0, 0, 0, 1, 1, 1], [0], [0]>} : vector<2x16x32xbf16>, vector<2x16x32xbf16>, vector<2x16x16xf32> -> vector<2x16x16xf32>
    "tpu.trace_stop"() : () -> ()
    %cst_9 = arith.constant dense<0xFF800000> : vector<2x16xf32>
    %31 = vector.multi_reduction <maximumf>, %30, %cst_9 [2] : vector<2x16x16xf32> to vector<2x16xf32>
    %32 = vector.shape_cast %31 : vector<2x16xf32> to vector<2x16x1xf32>
    %33 = vector.broadcast %32 : vector<2x16x1xf32> to vector<2x16x16xf32>
    %34 = arith.subf %30, %33 : vector<2x16x16xf32>
    %35 = math.exp %34 : vector<2x16x16xf32>
    %cst_10 = arith.constant dense<0.000000e+00> : vector<2x16xf32>
    %36 = vector.multi_reduction <add>, %35, %cst_10 [2] : vector<2x16x16xf32> to vector<2x16xf32>
    %37 = vector.shape_cast %36 : vector<2x16xf32> to vector<2x16x1xf32>
    %38 = tpu.reciprocal %37 {approx = true} : vector<2x16x1xf32> -> vector<2x16x1xf32>
    %39 = vector.broadcast %38 : vector<2x16x1xf32> to vector<2x16x16xf32>
    %40 = arith.mulf %35, %39 : vector<2x16x16xf32>
    %41 = arith.truncf %40 : vector<2x16x16xf32> to vector<2x16x16xbf16>
    %42 = vector.extract_strided_slice %11 {offsets = [0, 0, 32], sizes = [2, 16, 32], strides = [1, 1, 1]} : vector<2x16x128xbf16> to vector<2x16x32xbf16>
    "tpu.trace_start"() <{level = 10 : i32, message = "bqk,bkd->bqd"}> : () -> ()
    %cst_11 = arith.constant dense<0.000000e+00> : vector<2x16x32xf32>
    %43 = tpu.matmul %41, %42, %cst_11 {dimension_numbers = #tpu.dot_dimension_numbers<[2], [1], [1], [2], [0, 0, 0, 1, 1, 2], [0], [0]>} : vector<2x16x16xbf16>, vector<2x16x32xbf16>, vector<2x16x32xf32> -> vector<2x16x32xf32>
    "tpu.trace_stop"() : () -> ()
    %44 = vector.extract_strided_slice %7 {offsets = [0, 0, 64], sizes = [2, 16, 32], strides = [1, 1, 1]} : vector<2x16x128xbf16> to vector<2x16x32xbf16>
    %45 = vector.extract_strided_slice %9 {offsets = [0, 0, 64], sizes = [2, 16, 32], strides = [1, 1, 1]} : vector<2x16x128xbf16> to vector<2x16x32xbf16>
    "tpu.trace_start"() <{level = 10 : i32, message = "bqd,bkd->bqk"}> : () -> ()
    %cst_12 = arith.constant dense<0.000000e+00> : vector<2x16x16xf32>
    %46 = tpu.matmul %44, %45, %cst_12 {dimension_numbers = #tpu.dot_dimension_numbers<[2], [2], [1], [1], [0, 0, 0, 1, 1, 1], [0], [0]>} : vector<2x16x32xbf16>, vector<2x16x32xbf16>, vector<2x16x16xf32> -> vector<2x16x16xf32>
    "tpu.trace_stop"() : () -> ()
    %cst_13 = arith.constant dense<0xFF800000> : vector<2x16xf32>
    %47 = vector.multi_reduction <maximumf>, %46, %cst_13 [2] : vector<2x16x16xf32> to vector<2x16xf32>
    %48 = vector.shape_cast %47 : vector<2x16xf32> to vector<2x16x1xf32>
    %49 = vector.broadcast %48 : vector<2x16x1xf32> to vector<2x16x16xf32>
    %50 = arith.subf %46, %49 : vector<2x16x16xf32>
    %51 = math.exp %50 : vector<2x16x16xf32>
    %cst_14 = arith.constant dense<0.000000e+00> : vector<2x16xf32>
    %52 = vector.multi_reduction <add>, %51, %cst_14 [2] : vector<2x16x16xf32> to vector<2x16xf32>
    %53 = vector.shape_cast %52 : vector<2x16xf32> to vector<2x16x1xf32>
    %54 = tpu.reciprocal %53 {approx = true} : vector<2x16x1xf32> -> vector<2x16x1xf32>
    %55 = vector.broadcast %54 : vector<2x16x1xf32> to vector<2x16x16xf32>
    %56 = arith.mulf %51, %55 : vector<2x16x16xf32>
    %57 = arith.truncf %56 : vector<2x16x16xf32> to vector<2x16x16xbf16>
    %58 = vector.extract_strided_slice %11 {offsets = [0, 0, 64], sizes = [2, 16, 32], strides = [1, 1, 1]} : vector<2x16x128xbf16> to vector<2x16x32xbf16>
    "tpu.trace_start"() <{level = 10 : i32, message = "bqk,bkd->bqd"}> : () -> ()
    %cst_15 = arith.constant dense<0.000000e+00> : vector<2x16x32xf32>
    %59 = tpu.matmul %57, %58, %cst_15 {dimension_numbers = #tpu.dot_dimension_numbers<[2], [1], [1], [2], [0, 0, 0, 1, 1, 2], [0], [0]>} : vector<2x16x16xbf16>, vector<2x16x32xbf16>, vector<2x16x32xf32> -> vector<2x16x32xf32>
    "tpu.trace_stop"() : () -> ()
    %60 = vector.extract_strided_slice %7 {offsets = [0, 0, 96], sizes = [2, 16, 32], strides = [1, 1, 1]} : vector<2x16x128xbf16> to vector<2x16x32xbf16>
    %61 = vector.extract_strided_slice %9 {offsets = [0, 0, 96], sizes = [2, 16, 32], strides = [1, 1, 1]} : vector<2x16x128xbf16> to vector<2x16x32xbf16>
    "tpu.trace_start"() <{level = 10 : i32, message = "bqd,bkd->bqk"}> : () -> ()
    %cst_16 = arith.constant dense<0.000000e+00> : vector<2x16x16xf32>
    %62 = tpu.matmul %60, %61, %cst_16 {dimension_numbers = #tpu.dot_dimension_numbers<[2], [2], [1], [1], [0, 0, 0, 1, 1, 1], [0], [0]>} : vector<2x16x32xbf16>, vector<2x16x32xbf16>, vector<2x16x16xf32> -> vector<2x16x16xf32>
    "tpu.trace_stop"() : () -> ()
    %cst_17 = arith.constant dense<0xFF800000> : vector<2x16xf32>
    %63 = vector.multi_reduction <maximumf>, %62, %cst_17 [2] : vector<2x16x16xf32> to vector<2x16xf32>
    %64 = vector.shape_cast %63 : vector<2x16xf32> to vector<2x16x1xf32>
    %65 = vector.broadcast %64 : vector<2x16x1xf32> to vector<2x16x16xf32>
    %66 = arith.subf %62, %65 : vector<2x16x16xf32>
    %67 = math.exp %66 : vector<2x16x16xf32>
    %cst_18 = arith.constant dense<0.000000e+00> : vector<2x16xf32>
    %68 = vector.multi_reduction <add>, %67, %cst_18 [2] : vector<2x16x16xf32> to vector<2x16xf32>
    %69 = vector.shape_cast %68 : vector<2x16xf32> to vector<2x16x1xf32>
    %70 = tpu.reciprocal %69 {approx = true} : vector<2x16x1xf32> -> vector<2x16x1xf32>
    %71 = vector.broadcast %70 : vector<2x16x1xf32> to vector<2x16x16xf32>
    %72 = arith.mulf %67, %71 : vector<2x16x16xf32>
    %73 = arith.truncf %72 : vector<2x16x16xf32> to vector<2x16x16xbf16>
    %74 = vector.extract_strided_slice %11 {offsets = [0, 0, 96], sizes = [2, 16, 32], strides = [1, 1, 1]} : vector<2x16x128xbf16> to vector<2x16x32xbf16>
    "tpu.trace_start"() <{level = 10 : i32, message = "bqk,bkd->bqd"}> : () -> ()
    %cst_19 = arith.constant dense<0.000000e+00> : vector<2x16x32xf32>
    %75 = tpu.matmul %73, %74, %cst_19 {dimension_numbers = #tpu.dot_dimension_numbers<[2], [1], [1], [2], [0, 0, 0, 1, 1, 2], [0], [0]>} : vector<2x16x16xbf16>, vector<2x16x32xbf16>, vector<2x16x32xf32> -> vector<2x16x32xf32>
    "tpu.trace_stop"() : () -> ()
    %76 = tpu.concatenate %27, %43, %59, %75 in 2 : vector<2x16x32xf32>, vector<2x16x32xf32>, vector<2x16x32xf32>, vector<2x16x32xf32> -> vector<2x16x128xf32>
    %77 = vector.shape_cast %76 : vector<2x16x128xf32> to vector<32x128xf32>
    %78 = arith.truncf %77 : vector<32x128xf32> to vector<32x128xbf16>
    %c0_20 = arith.constant 0 : index
    %c0_21 = arith.constant 0 : index
    %79 = vector.load %arg3[%c0_20, %c0_21] : memref<128x128xbf16, #tpu.memory_space<vmem>>, vector<128x128xbf16>
    %cst_22 = arith.constant dense<0.000000e+00> : vector<32x128xf32>
    %80 = tpu.matmul %78, %79, %cst_22 {dimension_numbers = #tpu.dot_dimension_numbers<[1], [0], [0], [1], [0, 0, 1, 1], [], []>} : vector<32x128xbf16>, vector<128x128xbf16>, vector<32x128xf32> -> vector<32x128xf32>
    %c0_23 = arith.constant 0 : index
    %c0_24 = arith.constant 0 : index
    %81 = vector.load %arg4[%c0_23, %c0_24] : memref<1x128xf32, #tpu.memory_space<vmem>>, vector<1x128xf32>
    %82 = vector.broadcast %81 : vector<1x128xf32> to vector<32x128xf32>
    %83 = arith.addf %80, %82 : vector<32x128xf32>
    %84 = arith.addf %1, %83 : vector<32x128xf32>
    %c0_25 = arith.constant 0 : index
    %c0_26 = arith.constant 0 : index
    %85 = vector.load %arg5[%c0_25, %c0_26] : memref<1x128xf32, #tpu.memory_space<vmem>>, vector<1x128xf32>
    %c0_27 = arith.constant 0 : index
    %c0_28 = arith.constant 0 : index
    %86 = vector.load %arg6[%c0_27, %c0_28] : memref<1x128xf32, #tpu.memory_space<vmem>>, vector<1x128xf32>
    %cst_29 = arith.constant dense<0.000000e+00> : vector<32xf32>
    %87 = vector.multi_reduction <add>, %84, %cst_29 [1] : vector<32x128xf32> to vector<32xf32>
    %88 = vector.shape_cast %87 : vector<32xf32> to vector<32x1xf32>
    %cst_30 = arith.constant 1.280000e+02 : f32
    %89 = vector.broadcast %cst_30 : f32 to vector<32x1xf32>
    %90 = arith.divf %88, %89 : vector<32x1xf32>
    %91 = vector.broadcast %90 : vector<32x1xf32> to vector<32x128xf32>
    %92 = arith.subf %84, %91 : vector<32x128xf32>
    %93 = arith.mulf %92, %92 : vector<32x128xf32>
    %cst_31 = arith.constant dense<0.000000e+00> : vector<32xf32>
    %94 = vector.multi_reduction <add>, %93, %cst_31 [1] : vector<32x128xf32> to vector<32xf32>
    %95 = vector.shape_cast %94 : vector<32xf32> to vector<32x1xf32>
    %cst_32 = arith.constant 1.280000e+02 : f32
    %96 = vector.broadcast %cst_32 : f32 to vector<32x1xf32>
    %97 = arith.divf %95, %96 : vector<32x1xf32>
    %cst_33 = arith.constant 9.99999974E-6 : f32
    %98 = vector.broadcast %cst_33 : f32 to vector<32x1xf32>
    %99 = arith.addf %97, %98 : vector<32x1xf32>
    %100 = math.rsqrt %99 : vector<32x1xf32>
    %101 = vector.broadcast %90 : vector<32x1xf32> to vector<32x128xf32>
    %102 = arith.subf %84, %101 : vector<32x128xf32>
    %103 = vector.broadcast %100 : vector<32x1xf32> to vector<32x128xf32>
    %104 = arith.mulf %102, %103 : vector<32x128xf32>
    %105 = vector.broadcast %85 : vector<1x128xf32> to vector<32x128xf32>
    %106 = arith.mulf %104, %105 : vector<32x128xf32>
    %107 = vector.broadcast %86 : vector<1x128xf32> to vector<32x128xf32>
    %108 = arith.addf %106, %107 : vector<32x128xf32>
    %109 = arith.truncf %108 : vector<32x128xf32> to vector<32x128xbf16>
    %c0_34 = arith.constant 0 : index
    %c0_35 = arith.constant 0 : index
    %110 = vector.load %arg7[%c0_34, %c0_35] : memref<128x512xbf16, #tpu.memory_space<vmem>>, vector<128x512xbf16>
    %cst_36 = arith.constant dense<0.000000e+00> : vector<32x512xf32>
    %111 = tpu.matmul %109, %110, %cst_36 {dimension_numbers = #tpu.dot_dimension_numbers<[1], [0], [0], [1], [0, 0, 1, 1], [], []>} : vector<32x128xbf16>, vector<128x512xbf16>, vector<32x512xf32> -> vector<32x512xf32>
    %c0_37 = arith.constant 0 : index
    %c0_38 = arith.constant 0 : index
    %112 = vector.load %arg8[%c0_37, %c0_38] : memref<1x512xf32, #tpu.memory_space<vmem>>, vector<1x512xf32>
    %113 = vector.broadcast %112 : vector<1x512xf32> to vector<32x512xf32>
    %114 = arith.addf %111, %113 : vector<32x512xf32>
    %cst_39 = arith.constant 5.000000e-01 : f32
    %115 = vector.broadcast %cst_39 : f32 to vector<32x512xf32>
    %116 = arith.mulf %114, %115 : vector<32x512xf32>
    %cst_40 = arith.constant 0.707106769 : f32
    %117 = vector.broadcast %cst_40 : f32 to vector<32x512xf32>
    %118 = arith.mulf %114, %117 : vector<32x512xf32>
    %119 = math.erf %118 : vector<32x512xf32>
    %cst_41 = arith.constant 1.000000e+00 : f32
    %120 = vector.broadcast %cst_41 : f32 to vector<32x512xf32>
    %121 = arith.addf %120, %119 : vector<32x512xf32>
    %122 = arith.mulf %116, %121 : vector<32x512xf32>
    %123 = arith.truncf %122 : vector<32x512xf32> to vector<32x512xbf16>
    %c0_42 = arith.constant 0 : index
    %c0_43 = arith.constant 0 : index
    %124 = vector.load %arg9[%c0_42, %c0_43] : memref<512x128xbf16, #tpu.memory_space<vmem>>, vector<512x128xbf16>
    %cst_44 = arith.constant dense<0.000000e+00> : vector<32x128xf32>
    %125 = tpu.matmul %123, %124, %cst_44 {dimension_numbers = #tpu.dot_dimension_numbers<[1], [0], [0], [1], [0, 0, 1, 1], [], []>} : vector<32x512xbf16>, vector<512x128xbf16>, vector<32x128xf32> -> vector<32x128xf32>
    %c0_45 = arith.constant 0 : index
    %c0_46 = arith.constant 0 : index
    %126 = vector.load %arg10[%c0_45, %c0_46] : memref<1x128xf32, #tpu.memory_space<vmem>>, vector<1x128xf32>
    %127 = vector.broadcast %126 : vector<1x128xf32> to vector<32x128xf32>
    %128 = arith.addf %125, %127 : vector<32x128xf32>
    %129 = arith.addf %108, %128 : vector<32x128xf32>
    %c0_47 = arith.constant 0 : index
    %c0_48 = arith.constant 0 : index
    %130 = vector.load %arg11[%c0_47, %c0_48] : memref<1x128xf32, #tpu.memory_space<vmem>>, vector<1x128xf32>
    %c0_49 = arith.constant 0 : index
    %c0_50 = arith.constant 0 : index
    %131 = vector.load %arg12[%c0_49, %c0_50] : memref<1x128xf32, #tpu.memory_space<vmem>>, vector<1x128xf32>
    %cst_51 = arith.constant dense<0.000000e+00> : vector<32xf32>
    %132 = vector.multi_reduction <add>, %129, %cst_51 [1] : vector<32x128xf32> to vector<32xf32>
    %133 = vector.shape_cast %132 : vector<32xf32> to vector<32x1xf32>
    %cst_52 = arith.constant 1.280000e+02 : f32
    %134 = vector.broadcast %cst_52 : f32 to vector<32x1xf32>
    %135 = arith.divf %133, %134 : vector<32x1xf32>
    %136 = vector.broadcast %135 : vector<32x1xf32> to vector<32x128xf32>
    %137 = arith.subf %129, %136 : vector<32x128xf32>
    %138 = arith.mulf %137, %137 : vector<32x128xf32>
    %cst_53 = arith.constant dense<0.000000e+00> : vector<32xf32>
    %139 = vector.multi_reduction <add>, %138, %cst_53 [1] : vector<32x128xf32> to vector<32xf32>
    %140 = vector.shape_cast %139 : vector<32xf32> to vector<32x1xf32>
    %cst_54 = arith.constant 1.280000e+02 : f32
    %141 = vector.broadcast %cst_54 : f32 to vector<32x1xf32>
    %142 = arith.divf %140, %141 : vector<32x1xf32>
    %cst_55 = arith.constant 9.99999974E-6 : f32
    %143 = vector.broadcast %cst_55 : f32 to vector<32x1xf32>
    %144 = arith.addf %142, %143 : vector<32x1xf32>
    %145 = math.rsqrt %144 : vector<32x1xf32>
    %146 = vector.broadcast %135 : vector<32x1xf32> to vector<32x128xf32>
    %147 = arith.subf %129, %146 : vector<32x128xf32>
    %148 = vector.broadcast %145 : vector<32x1xf32> to vector<32x128xf32>
    %149 = arith.mulf %147, %148 : vector<32x128xf32>
    %150 = vector.broadcast %130 : vector<1x128xf32> to vector<32x128xf32>
    %151 = arith.mulf %149, %150 : vector<32x128xf32>
    %152 = vector.broadcast %131 : vector<1x128xf32> to vector<32x128xf32>
    %153 = arith.addf %151, %152 : vector<32x128xf32>
    %154 = vector.shape_cast %153 : vector<32x128xf32> to vector<2x16x128xf32>
    %c0_56 = arith.constant 0 : index
    %c0_57 = arith.constant 0 : index
    %c0_58 = arith.constant 0 : index
    %155 = vector.load %arg13[%c0_56, %c0_57, %c0_58] : memref<2x16x128xf32, #tpu.memory_space<vmem>>, vector<2x16x128xf32>
    tpu.vector_store %arg13[%c0_56, %c0_57, %c0_58], %154 {strides = array<i32>} : memref<2x16x128xf32, #tpu.memory_space<vmem>>, vector<2x16x128xf32>,
    return
  }
  func.func @transform_0(%arg0: i32) -> (i32, i32, i32) {
    %c0_i32 = arith.constant 0 : i32
    %c0_i32_0 = arith.constant 0 : i32
    %c0_i32_1 = arith.constant 0 : i32
    return %arg0, %c0_i32, %c0_i32_0 : i32, i32, i32
  }
  func.func @transform_1(%arg0: i32) -> (i32, i32) {
    %c0_i32 = arith.constant 0 : i32
    %c0_i32_0 = arith.constant 0 : i32
    %c0_i32_1 = arith.constant 0 : i32
    return %c0_i32, %c0_i32_0 : i32, i32
  }
  func.func @transform_2(%arg0: i32) -> (i32, i32) {
    %c0_i32 = arith.constant 0 : i32
    %c0_i32_0 = arith.constant 0 : i32
    %c0_i32_1 = arith.constant 0 : i32
    return %c0_i32, %c0_i32_0 : i32, i32
  }
  func.func @transform_3(%arg0: i32) -> (i32, i32) {
    %c0_i32 = arith.constant 0 : i32
    %c0_i32_0 = arith.constant 0 : i32
    %c0_i32_1 = arith.constant 0 : i32
    return %c0_i32, %c0_i32_0 : i32, i32
  }
  func.func @transform_4(%arg0: i32) -> (i32, i32) {
    %c0_i32 = arith.constant 0 : i32
    %c0_i32_0 = arith.constant 0 : i32
    %c0_i32_1 = arith.constant 0 : i32
    return %c0_i32, %c0_i32_0 : i32, i32
  }
  func.func @transform_5(%arg0: i32) -> (i32, i32) {
    %c0_i32 = arith.constant 0 : i32
    %c0_i32_0 = arith.constant 0 : i32
    %c0_i32_1 = arith.constant 0 : i32
    return %c0_i32, %c0_i32_0 : i32, i32
  }
  func.func @transform_6(%arg0: i32) -> (i32, i32) {
    %c0_i32 = arith.constant 0 : i32
    %c0_i32_0 = arith.constant 0 : i32
    %c0_i32_1 = arith.constant 0 : i32
    return %c0_i32, %c0_i32_0 : i32, i32
  }
  func.func @transform_7(%arg0: i32) -> (i32, i32) {
    %c0_i32 = arith.constant 0 : i32
    %c0_i32_0 = arith.constant 0 : i32
    %c0_i32_1 = arith.constant 0 : i32
    return %c0_i32, %c0_i32_0 : i32, i32
  }
  func.func @transform_8(%arg0: i32) -> (i32, i32) {
    %c0_i32 = arith.constant 0 : i32
    %c0_i32_0 = arith.constant 0 : i32
    %c0_i32_1 = arith.constant 0 : i32
    return %c0_i32, %c0_i32_0 : i32, i32
  }
  func.func @transform_9(%arg0: i32) -> (i32, i32) {
    %c0_i32 = arith.constant 0 : i32
    %c0_i32_0 = arith.constant 0 : i32
    %c0_i32_1 = arith.constant 0 : i32
    return %c0_i32, %c0_i32_0 : i32, i32
  }
  func.func @transform_10(%arg0: i32) -> (i32, i32) {
    %c0_i32 = arith.constant 0 : i32
    %c0_i32_0 = arith.constant 0 : i32
    %c0_i32_1 = arith.constant 0 : i32
    return %c0_i32, %c0_i32_0 : i32, i32
  }
  func.func @transform_11(%arg0: i32) -> (i32, i32) {
    %c0_i32 = arith.constant 0 : i32
    %c0_i32_0 = arith.constant 0 : i32
    %c0_i32_1 = arith.constant 0 : i32
    return %c0_i32, %c0_i32_0 : i32, i32
  }
  func.func @transform_12(%arg0: i32) -> (i32, i32, i32) {
    %c0_i32 = arith.constant 0 : i32
    %c0_i32_0 = arith.constant 0 : i32
    %c0_i32_1 = arith.constant 0 : i32
    return %arg0, %c0_i32, %c0_i32_0 : i32, i32, i32
  }
}

module attributes {stable_mosaic.version = 11 : i64} {
  func.func @encoder_layer_kernel(%arg0: i32, %arg1: memref<2x16x128xf32, #tpu.memory_space<vmem>>, %arg2: memref<128x384xbf16, #tpu.memory_space<vmem>>, %arg3: memref<128x128xbf16, #tpu.memory_space<vmem>>, %arg4: memref<1x128xf32, #tpu.memory_space<vmem>>, %arg5: memref<1x128xf32, #tpu.memory_space<vmem>>, %arg6: memref<1x128xf32, #tpu.memory_space<vmem>>, %arg7: memref<128x512xbf16, #tpu.memory_space<vmem>>, %arg8: memref<1x512xf32, #tpu.memory_space<vmem>>, %arg9: memref<512x128xbf16, #tpu.memory_space<vmem>>, %arg10: memref<1x128xf32, #tpu.memory_space<vmem>>, %arg11: memref<1x128xf32, #tpu.memory_space<vmem>>, %arg12: memref<1x128xf32, #tpu.memory_space<vmem>>, %arg13: memref<2x16x128xf32, #tpu.memory_space<vmem>>) attributes {dimension_semantics = [#tpu.dimension_semantics<parallel>], iteration_bounds = array<i64: 2>, scalar_prefetch = 0 : i64, scratch_operands = 0 : i64, tpu.core_type = #tpu.core_type<tc>, window_params = [{transform_indices = @transform_0, window_bounds = array<i64: 2, 16, 128>}, {pipeline_mode = #tpu.pipeline_mode<synchronous>, transform_indices = @transform_1, window_bounds = array<i64: 128, 384>}, {pipeline_mode = #tpu.pipeline_mode<synchronous>, transform_indices = @transform_2, window_bounds = array<i64: 128, 128>}, {pipeline_mode = #tpu.pipeline_mode<synchronous>, transform_indices = @transform_3, window_bounds = array<i64: 1, 128>}, {pipeline_mode = #tpu.pipeline_mode<synchronous>, transform_indices = @transform_4, window_bounds = array<i64: 1, 128>}, {pipeline_mode = #tpu.pipeline_mode<synchronous>, transform_indices = @transform_5, window_bounds = array<i64: 1, 128>}, {pipeline_mode = #tpu.pipeline_mode<synchronous>, transform_indices = @transform_6, window_bounds = array<i64: 128, 512>}, {pipeline_mode = #tpu.pipeline_mode<synchronous>, transform_indices = @transform_7, window_bounds = array<i64: 1, 512>}, {pipeline_mode = #tpu.pipeline_mode<synchronous>, transform_indices = @transform_8, window_bounds = array<i64: 512, 128>}, {pipeline_mode = #tpu.pipeline_mode<synchronous>, transform_indices = @transform_9, window_bounds = array<i64: 1, 128>}, {pipeline_mode = #tpu.pipeline_mode<synchronous>, transform_indices = @transform_10, window_bounds = array<i64: 1, 128>}, {pipeline_mode = #tpu.pipeline_mode<synchronous>, transform_indices = @transform_11, window_bounds = array<i64: 1, 128>}, {transform_indices = @transform_12, window_bounds = array<i64: 2, 16, 128>}]} {
    %c0 = arith.constant 0 : index
    %c0_0 = arith.constant 0 : index
    %c0_1 = arith.constant 0 : index
    %0 = vector.load %arg1[%c0, %c0_0, %c0_1] : memref<2x16x128xf32, #tpu.memory_space<vmem>>, vector<2x16x128xf32>
    %1 = vector.shape_cast %0 : vector<2x16x128xf32> to vector<32x128xf32>
    %2 = arith.truncf %1 : vector<32x128xf32> to vector<32x128xbf16>
    %c0_2 = arith.constant 0 : index
    %c0_3 = arith.constant 0 : index
    %3 = vector.load %arg2[%c0_2, %c0_3] : memref<128x384xbf16, #tpu.memory_space<vmem>>, vector<128x384xbf16>
    %cst = arith.constant dense<0.000000e+00> : vector<32x384xf32>
    %4 = tpu.matmul %2, %3, %cst {dimension_numbers = #tpu.dot_dimension_numbers<[1], [0], [0], [1], [0, 0, 1, 1], [], []>} : vector<32x128xbf16>, vector<128x384xbf16>, vector<32x384xf32> -> vector<32x384xf32>
    %5 = arith.truncf %4 : vector<32x384xf32> to vector<32x384xbf16>
    %6 = vector.extract_strided_slice %5 {offsets = [0, 0], sizes = [32, 128], strides = [1, 1]} : vector<32x384xbf16> to vector<32x128xbf16>
    %7 = vector.shape_cast %6 : vector<32x128xbf16> to vector<2x16x128xbf16>
    %8 = vector.extract_strided_slice %5 {offsets = [0, 128], sizes = [32, 128], strides = [1, 1]} : vector<32x384xbf16> to vector<32x128xbf16>
    %9 = vector.shape_cast %8 : vector<32x128xbf16> to vector<2x16x128xbf16>
    %10 = vector.extract_strided_slice %5 {offsets = [0, 256], sizes = [32, 128], strides = [1, 1]} : vector<32x384xbf16> to vector<32x128xbf16>
    %11 = vector.shape_cast %10 : vector<32x128xbf16> to vector<2x16x128xbf16>
    %12 = vector.extract_strided_slice %7 {offsets = [0, 0, 0], sizes = [2, 16, 32], strides = [1, 1, 1]} : vector<2x16x128xbf16> to vector<2x16x32xbf16>
    %13 = vector.extract_strided_slice %9 {offsets = [0, 0, 0], sizes = [2, 16, 32], strides = [1, 1, 1]} : vector<2x16x128xbf16> to vector<2x16x32xbf16>
    "tpu.trace_start"() <{level = 10 : i32, message = "bqd,bkd->bqk"}> : () -> ()
    %cst_4 = arith.constant dense<0.000000e+00> : vector<2x16x16xf32>
    %14 = tpu.matmul %12, %13, %cst_4 {dimension_numbers = #tpu.dot_dimension_numbers<[2], [2], [1], [1], [0, 0, 0, 1, 1, 1], [0], [0]>} : vector<2x16x32xbf16>, vector<2x16x32xbf16>, vector<2x16x16xf32> -> vector<2x16x16xf32>
    "tpu.trace_stop"() : () -> ()
    %cst_5 = arith.constant dense<0xFF800000> : vector<2x16xf32>
    %15 = vector.multi_reduction <maximumf>, %14, %cst_5 [2] : vector<2x16x16xf32> to vector<2x16xf32>
    %16 = vector.shape_cast %15 : vector<2x16xf32> to vector<2x16x1xf32>
    %17 = vector.broadcast %16 : vector<2x16x1xf32> to vector<2x16x16xf32>
    %18 = arith.subf %14, %17 : vector<2x16x16xf32>
    %19 = math.exp %18 : vector<2x16x16xf32>
    %cst_6 = arith.constant dense<0.000000e+00> : vector<2x16xf32>
    %20 = vector.multi_reduction <add>, %19, %cst_6 [2] : vector<2x16x16xf32> to vector<2x16xf32>
    %21 = vector.shape_cast %20 : vector<2x16xf32> to vector<2x16x1xf32>
    %22 = tpu.reciprocal %21 {approx = true} : vector<2x16x1xf32> -> vector<2x16x1xf32>
    %23 = vector.broadcast %22 : vector<2x16x1xf32> to vector<2x16x16xf32>
    %24 = arith.mulf %19, %23 : vector<2x16x16xf32>
    %25 = arith.truncf %24 : vector<2x16x16xf32> to vector<2x16x16xbf16>
    %26 = vector.extract_strided_slice %11 {offsets = [0, 0, 0], sizes = [2, 16, 32], strides = [1, 1, 1]} : vector<2x16x128xbf16> to vector<2x16x32xbf16>
    "tpu.trace_start"() <{level = 10 : i32, message = "bqk,bkd->bqd"}> : () -> ()
    %cst_7 = arith.constant dense<0.000000e+00> : vector<2x16x32xf32>
    %27 = tpu.matmul %25, %26, %cst_7 {dimension_numbers = #tpu.dot_dimension_numbers<[2], [1], [1], [2], [0, 0, 0, 1, 1, 2], [0], [0]>} : vector<2x16x16xbf16>, vector<2x16x32xbf16>, vector<2x16x32xf32> -> vector<2x16x32xf32>
    "tpu.trace_stop"() : () -> ()
    %28 = vector.extract_strided_slice %7 {offsets = [0, 0, 32], sizes = [2, 16, 32], strides = [1, 1, 1]} : vector<2x16x128xbf16> to vector<2x16x32xbf16>
    %29 = vector.extract_strided_slice %9 {offsets = [0, 0, 32], sizes = [2, 16, 32], strides = [1, 1, 1]} : vector<2x16x128xbf16> to vector<2x16x32xbf16>
    "tpu.trace_start"() <{level = 10 : i32, message = "bqd,bkd->bqk"}> : () -> ()
    %cst_8 = arith.constant dense<0.000000e+00> : vector<2x16x16xf32>
    %30 = tpu.matmul %28, %29, %cst_8 {dimension_numbers = #tpu.dot_dimension_numbers<[2], [2], [1], [1], [0, 0, 0, 1, 1, 1], [0], [0]>} : vector<2x16x32xbf16>, vector<2x16x32xbf16>, vector<2x16x16xf32> -> vector<2x16x16xf32>
    "tpu.trace_stop"() : () -> ()
    %cst_9 = arith.constant dense<0xFF800000> : vector<2x16xf32>
    %31 = vector.multi_reduction <maximumf>, %30, %cst_9 [2] : vector<2x16x16xf32> to vector<2x16xf32>
    %32 = vector.shape_cast %31 : vector<2x16xf32> to vector<2x16x1xf32>
    %33 = vector.broadcast %32 : vector<2x16x1xf32> to vector<2x16x16xf32>
    %34 = arith.subf %30, %33 : vector<2x16x16xf32>
    %35 = math.exp %34 : vector<2x16x16xf32>
    %cst_10 = arith.constant dense<0.000000e+00> : vector<2x16xf32>
    %36 = vector.multi_reduction <add>, %35, %cst_10 [2] : vector<2x16x16xf32> to vector<2x16xf32>
    %37 = vector.shape_cast %36 : vector<2x16xf32> to vector<2x16x1xf32>
    %38 = tpu.reciprocal %37 {approx = true} : vector<2x16x1xf32> -> vector<2x16x1xf32>
    %39 = vector.broadcast %38 : vector<2x16x1xf32> to vector<2x16x16xf32>
    %40 = arith.mulf %35, %39 : vector<2x16x16xf32>
    %41 = arith.truncf %40 : vector<2x16x16xf32> to vector<2x16x16xbf16>
    %42 = vector.extract_strided_slice %11 {offsets = [0, 0, 32], sizes = [2, 16, 32], strides = [1, 1, 1]} : vector<2x16x128xbf16> to vector<2x16x32xbf16>
    "tpu.trace_start"() <{level = 10 : i32, message = "bqk,bkd->bqd"}> : () -> ()
    %cst_11 = arith.constant dense<0.000000e+00> : vector<2x16x32xf32>
    %43 = tpu.matmul %41, %42, %cst_11 {dimension_numbers = #tpu.dot_dimension_numbers<[2], [1], [1], [2], [0, 0, 0, 1, 1, 2], [0], [0]>} : vector<2x16x16xbf16>, vector<2x16x32xbf16>, vector<2x16x32xf32> -> vector<2x16x32xf32>
    "tpu.trace_stop"() : () -> ()
    %44 = vector.extract_strided_slice %7 {offsets = [0, 0, 64], sizes = [2, 16, 32], strides = [1, 1, 1]} : vector<2x16x128xbf16> to vector<2x16x32xbf16>
    %45 = vector.extract_strided_slice %9 {offsets = [0, 0, 64], sizes = [2, 16, 32], strides = [1, 1, 1]} : vector<2x16x128xbf16> to vector<2x16x32xbf16>
    "tpu.trace_start"() <{level = 10 : i32, message = "bqd,bkd->bqk"}> : () -> ()
    %cst_12 = arith.constant dense<0.000000e+00> : vector<2x16x16xf32>
    %46 = tpu.matmul %44, %45, %cst_12 {dimension_numbers = #tpu.dot_dimension_numbers<[2], [2], [1], [1], [0, 0, 0, 1, 1, 1], [0], [0]>} : vector<2x16x32xbf16>, vector<2x16x32xbf16>, vector<2x16x16xf32> -> vector<2x16x16xf32>
    "tpu.trace_stop"() : () -> ()
    %cst_13 = arith.constant dense<0xFF800000> : vector<2x16xf32>
    %47 = vector.multi_reduction <maximumf>, %46, %cst_13 [2] : vector<2x16x16xf32> to vector<2x16xf32>
    %48 = vector.shape_cast %47 : vector<2x16xf32> to vector<2x16x1xf32>
    %49 = vector.broadcast %48 : vector<2x16x1xf32> to vector<2x16x16xf32>
    %50 = arith.subf %46, %49 : vector<2x16x16xf32>
    %51 = math.exp %50 : vector<2x16x16xf32>
    %cst_14 = arith.constant dense<0.000000e+00> : vector<2x16xf32>
    %52 = vector.multi_reduction <add>, %51, %cst_14 [2] : vector<2x16x16xf32> to vector<2x16xf32>
    %53 = vector.shape_cast %52 : vector<2x16xf32> to vector<2x16x1xf32>
    %54 = tpu.reciprocal %53 {approx = true} : vector<2x16x1xf32> -> vector<2x16x1xf32>
    %55 = vector.broadcast %54 : vector<2x16x1xf32> to vector<2x16x16xf32>
    %56 = arith.mulf %51, %55 : vector<2x16x16xf32>
    %57 = arith.truncf %56 : vector<2x16x16xf32> to vector<2x16x16xbf16>
    %58 = vector.extract_strided_slice %11 {offsets = [0, 0, 64], sizes = [2, 16, 32], strides = [1, 1, 1]} : vector<2x16x128xbf16> to vector<2x16x32xbf16>
    "tpu.trace_start"() <{level = 10 : i32, message = "bqk,bkd->bqd"}> : () -> ()
    %cst_15 = arith.constant dense<0.000000e+00> : vector<2x16x32xf32>
    %59 = tpu.matmul %57, %58, %cst_15 {dimension_numbers = #tpu.dot_dimension_numbers<[2], [1], [1], [2], [0, 0, 0, 1, 1, 2], [0], [0]>} : vector<2x16x16xbf16>, vector<2x16x32xbf16>, vector<2x16x32xf32> -> vector<2x16x32xf32>
    "tpu.trace_stop"() : () -> ()
    %60 = vector.extract_strided_slice %7 {offsets = [0, 0, 96], sizes = [2, 16, 32], strides = [1, 1, 1]} : vector<2x16x128xbf16> to vector<2x16x32xbf16>
    %61 = vector.extract_strided_slice %9 {offsets = [0, 0, 96], sizes = [2, 16, 32], strides = [1, 1, 1]} : vector<2x16x128xbf16> to vector<2x16x32xbf16>
    "tpu.trace_start"() <{level = 10 : i32, message = "bqd,bkd->bqk"}> : () -> ()
    %cst_16 = arith.constant dense<0.000000e+00> : vector<2x16x16xf32>
    %62 = tpu.matmul %60, %61, %cst_16 {dimension_numbers = #tpu.dot_dimension_numbers<[2], [2], [1], [1], [0, 0, 0, 1, 1, 1], [0], [0]>} : vector<2x16x32xbf16>, vector<2x16x32xbf16>, vector<2x16x16xf32> -> vector<2x16x16xf32>
    "tpu.trace_stop"() : () -> ()
    %cst_17 = arith.constant dense<0xFF800000> : vector<2x16xf32>
    %63 = vector.multi_reduction <maximumf>, %62, %cst_17 [2] : vector<2x16x16xf32> to vector<2x16xf32>
    %64 = vector.shape_cast %63 : vector<2x16xf32> to vector<2x16x1xf32>
    %65 = vector.broadcast %64 : vector<2x16x1xf32> to vector<2x16x16xf32>
    %66 = arith.subf %62, %65 : vector<2x16x16xf32>
    %67 = math.exp %66 : vector<2x16x16xf32>
    %cst_18 = arith.constant dense<0.000000e+00> : vector<2x16xf32>
    %68 = vector.multi_reduction <add>, %67, %cst_18 [2] : vector<2x16x16xf32> to vector<2x16xf32>
    %69 = vector.shape_cast %68 : vector<2x16xf32> to vector<2x16x1xf32>
    %70 = tpu.reciprocal %69 {approx = true} : vector<2x16x1xf32> -> vector<2x16x1xf32>
    %71 = vector.broadcast %70 : vector<2x16x1xf32> to vector<2x16x16xf32>
    %72 = arith.mulf %67, %71 : vector<2x16x16xf32>
    %73 = arith.truncf %72 : vector<2x16x16xf32> to vector<2x16x16xbf16>
    %74 = vector.extract_strided_slice %11 {offsets = [0, 0, 96], sizes = [2, 16, 32], strides = [1, 1, 1]} : vector<2x16x128xbf16> to vector<2x16x32xbf16>
    "tpu.trace_start"() <{level = 10 : i32, message = "bqk,bkd->bqd"}> : () -> ()
    %cst_19 = arith.constant dense<0.000000e+00> : vector<2x16x32xf32>
    %75 = tpu.matmul %73, %74, %cst_19 {dimension_numbers = #tpu.dot_dimension_numbers<[2], [1], [1], [2], [0, 0, 0, 1, 1, 2], [0], [0]>} : vector<2x16x16xbf16>, vector<2x16x32xbf16>, vector<2x16x32xf32> -> vector<2x16x32xf32>
    "tpu.trace_stop"() : () -> ()
    %76 = tpu.concatenate %27, %43, %59, %75 in 2 : vector<2x16x32xf32>, vector<2x16x32xf32>, vector<2x16x32xf32>, vector<2x16x32xf32> -> vector<2x16x128xf32>
    %77 = vector.shape_cast %76 : vector<2x16x128xf32> to vector<32x128xf32>
    %78 = arith.truncf %77 : vector<32x128xf32> to vector<32x128xbf16>
    %c0_20 = arith.constant 0 : index
    %c0_21 = arith.constant 0 : index
    %79 = vector.load %arg3[%c0_20, %c0_21] : memref<128x128xbf16, #tpu.memory_space<vmem>>, vector<128x128xbf16>
    %cst_22 = arith.constant dense<0.000000e+00> : vector<32x128xf32>
    %80 = tpu.matmul %78, %79, %cst_22 {dimension_numbers = #tpu.dot_dimension_numbers<[1], [0], [0], [1], [0, 0, 1, 1], [], []>} : vector<32x128xbf16>, vector<128x128xbf16>, vector<32x128xf32> -> vector<32x128xf32>
    %c0_23 = arith.constant 0 : index
    %c0_24 = arith.constant 0 : index
    %81 = vector.load %arg4[%c0_23, %c0_24] : memref<1x128xf32, #tpu.memory_space<vmem>>, vector<1x128xf32>
    %82 = vector.broadcast %81 : vector<1x128xf32> to vector<32x128xf32>
    %83 = arith.addf %80, %82 : vector<32x128xf32>
    %84 = arith.addf %1, %83 : vector<32x128xf32>
    %c0_25 = arith.constant 0 : index
    %c0_26 = arith.constant 0 : index
    %85 = vector.load %arg5[%c0_25, %c0_26] : memref<1x128xf32, #tpu.memory_space<vmem>>, vector<1x128xf32>
    %c0_27 = arith.constant 0 : index
    %c0_28 = arith.constant 0 : index
    %86 = vector.load %arg6[%c0_27, %c0_28] : memref<1x128xf32, #tpu.memory_space<vmem>>, vector<1x128xf32>
    %cst_29 = arith.constant dense<0.000000e+00> : vector<32xf32>
    %87 = vector.multi_reduction <add>, %84, %cst_29 [1] : vector<32x128xf32> to vector<32xf32>
    %88 = vector.shape_cast %87 : vector<32xf32> to vector<32x1xf32>
    %cst_30 = arith.constant 1.280000e+02 : f32
    %89 = vector.broadcast %cst_30 : f32 to vector<32x1xf32>
    %90 = arith.divf %88, %89 : vector<32x1xf32>
    %91 = vector.broadcast %90 : vector<32x1xf32> to vector<32x128xf32>
    %92 = arith.subf %84, %91 : vector<32x128xf32>
    %93 = arith.mulf %92, %92 : vector<32x128xf32>
    %cst_31 = arith.constant dense<0.000000e+00> : vector<32xf32>
    %94 = vector.multi_reduction <add>, %93, %cst_31 [1] : vector<32x128xf32> to vector<32xf32>
    %95 = vector.shape_cast %94 : vector<32xf32> to vector<32x1xf32>
    %cst_32 = arith.constant 1.280000e+02 : f32
    %96 = vector.broadcast %cst_32 : f32 to vector<32x1xf32>
    %97 = arith.divf %95, %96 : vector<32x1xf32>
    %cst_33 = arith.constant 9.99999974E-6 : f32
    %98 = vector.broadcast %cst_33 : f32 to vector<32x1xf32>
    %99 = arith.addf %97, %98 : vector<32x1xf32>
    %100 = math.rsqrt %99 : vector<32x1xf32>
    %101 = vector.broadcast %90 : vector<32x1xf32> to vector<32x128xf32>
    %102 = arith.subf %84, %101 : vector<32x128xf32>
    %103 = vector.broadcast %100 : vector<32x1xf32> to vector<32x128xf32>
    %104 = arith.mulf %102, %103 : vector<32x128xf32>
    %105 = vector.broadcast %85 : vector<1x128xf32> to vector<32x128xf32>
    %106 = arith.mulf %104, %105 : vector<32x128xf32>
    %107 = vector.broadcast %86 : vector<1x128xf32> to vector<32x128xf32>
    %108 = arith.addf %106, %107 : vector<32x128xf32>
    %109 = arith.truncf %108 : vector<32x128xf32> to vector<32x128xbf16>
    %c0_34 = arith.constant 0 : index
    %c0_35 = arith.constant 0 : index
    %110 = vector.load %arg7[%c0_34, %c0_35] : memref<128x512xbf16, #tpu.memory_space<vmem>>, vector<128x512xbf16>
    %cst_36 = arith.constant dense<0.000000e+00> : vector<32x512xf32>
    %111 = tpu.matmul %109, %110, %cst_36 {dimension_numbers = #tpu.dot_dimension_numbers<[1], [0], [0], [1], [0, 0, 1, 1], [], []>} : vector<32x128xbf16>, vector<128x512xbf16>, vector<32x512xf32> -> vector<32x512xf32>
    %c0_37 = arith.constant 0 : index
    %c0_38 = arith.constant 0 : index
    %112 = vector.load %arg8[%c0_37, %c0_38] : memref<1x512xf32, #tpu.memory_space<vmem>>, vector<1x512xf32>
    %113 = vector.broadcast %112 : vector<1x512xf32> to vector<32x512xf32>
    %114 = arith.addf %111, %113 : vector<32x512xf32>
    %cst_39 = arith.constant 5.000000e-01 : f32
    %115 = vector.broadcast %cst_39 : f32 to vector<32x512xf32>
    %116 = arith.mulf %114, %115 : vector<32x512xf32>
    %cst_40 = arith.constant 0.707106769 : f32
    %117 = vector.broadcast %cst_40 : f32 to vector<32x512xf32>
    %118 = arith.mulf %114, %117 : vector<32x512xf32>
    %119 = math.erf %118 : vector<32x512xf32>
    %cst_41 = arith.constant 1.000000e+00 : f32
    %120 = vector.broadcast %cst_41 : f32 to vector<32x512xf32>
    %121 = arith.addf %120, %119 : vector<32x512xf32>
    %122 = arith.mulf %116, %121 : vector<32x512xf32>
    %123 = arith.truncf %122 : vector<32x512xf32> to vector<32x512xbf16>
    %c0_42 = arith.constant 0 : index
    %c0_43 = arith.constant 0 : index
    %124 = vector.load %arg9[%c0_42, %c0_43] : memref<512x128xbf16, #tpu.memory_space<vmem>>, vector<512x128xbf16>
    %cst_44 = arith.constant dense<0.000000e+00> : vector<32x128xf32>
    %125 = tpu.matmul %123, %124, %cst_44 {dimension_numbers = #tpu.dot_dimension_numbers<[1], [0], [0], [1], [0, 0, 1, 1], [], []>} : vector<32x512xbf16>, vector<512x128xbf16>, vector<32x128xf32> -> vector<32x128xf32>
    %c0_45 = arith.constant 0 : index
    %c0_46 = arith.constant 0 : index
    %126 = vector.load %arg10[%c0_45, %c0_46] : memref<1x128xf32, #tpu.memory_space<vmem>>, vector<1x128xf32>
    %127 = vector.broadcast %126 : vector<1x128xf32> to vector<32x128xf32>
    %128 = arith.addf %125, %127 : vector<32x128xf32>
    %129 = arith.addf %108, %128 : vector<32x128xf32>
    %c0_47 = arith.constant 0 : index
    %c0_48 = arith.constant 0 : index
    %130 = vector.load %arg11[%c0_47, %c0_48] : memref<1x128xf32, #tpu.memory_space<vmem>>, vector<1x128xf32>
    %c0_49 = arith.constant 0 : index
    %c0_50 = arith.constant 0 : index
    %131 = vector.load %arg12[%c0_49, %c0_50] : memref<1x128xf32, #tpu.memory_space<vmem>>, vector<1x128xf32>
    %cst_51 = arith.constant dense<0.000000e+00> : vector<32xf32>
    %132 = vector.multi_reduction <add>, %129, %cst_51 [1] : vector<32x128xf32> to vector<32xf32>
    %133 = vector.shape_cast %132 : vector<32xf32> to vector<32x1xf32>
    %cst_52 = arith.constant 1.280000e+02 : f32
    %134 = vector.broadcast %cst_52 : f32 to vector<32x1xf32>
    %135 = arith.divf %133, %134 : vector<32x1xf32>
    %136 = vector.broadcast %135 : vector<32x1xf32> to vector<32x128xf32>
    %137 = arith.subf %129, %136 : vector<32x128xf32>
    %138 = arith.mulf %137, %137 : vector<32x128xf32>
    %cst_53 = arith.constant dense<0.000000e+00> : vector<32xf32>
    %139 = vector.multi_reduction <add>, %138, %cst_53 [1] : vector<32x128xf32> to vector<32xf32>
    %140 = vector.shape_cast %139 : vector<32xf32> to vector<32x1xf32>
    %cst_54 = arith.constant 1.280000e+02 : f32
    %141 = vector.broadcast %cst_54 : f32 to vector<32x1xf32>
    %142 = arith.divf %140, %141 : vector<32x1xf32>
    %cst_55 = arith.constant 9.99999974E-6 : f32
    %143 = vector.broadcast %cst_55 : f32 to vector<32x1xf32>
    %144 = arith.addf %142, %143 : vector<32x1xf32>
    %145 = math.rsqrt %144 : vector<32x1xf32>
    %146 = vector.broadcast %135 : vector<32x1xf32> to vector<32x128xf32>
    %147 = arith.subf %129, %146 : vector<32x128xf32>
    %148 = vector.broadcast %145 : vector<32x1xf32> to vector<32x128xf32>
    %149 = arith.mulf %147, %148 : vector<32x128xf32>
    %150 = vector.broadcast %130 : vector<1x128xf32> to vector<32x128xf32>
    %151 = arith.mulf %149, %150 : vector<32x128xf32>
    %152 = vector.broadcast %131 : vector<1x128xf32> to vector<32x128xf32>
    %153 = arith.addf %151, %152 : vector<32x128xf32>
    %154 = vector.shape_cast %153 : vector<32x128xf32> to vector<2x16x128xf32>
    %c0_56 = arith.constant 0 : index
    %c0_57 = arith.constant 0 : index
    %c0_58 = arith.constant 0 : index
    %155 = vector.load %arg13[%c0_56, %c0_57, %c0_58] : memref<2x16x128xf32, #tpu.memory_space<vmem>>, vector<2x16x128xf32>
    tpu.vector_store %arg13[%c0_56, %c0_57, %c0_58], %154 {strides = array<i32>} : memref<2x16x128xf32, #tpu.memory_space<vmem>>, vector<2x16x128xf32>,
    return
  }
  func.func @transform_0(%arg0: i32) -> (i32, i32, i32) {
    %c0_i32 = arith.constant 0 : i32
    %c0_i32_0 = arith.constant 0 : i32
    %c0_i32_1 = arith.constant 0 : i32
    return %arg0, %c0_i32, %c0_i32_0 : i32, i32, i32
  }
  func.func @transform_1(%arg0: i32) -> (i32, i32) {
    %c0_i32 = arith.constant 0 : i32
    %c0_i32_0 = arith.constant 0 : i32
    %c0_i32_1 = arith.constant 0 : i32
    return %c0_i32, %c0_i32_0 : i32, i32
  }
  func.func @transform_2(%arg0: i32) -> (i32, i32) {
    %c0_i32 = arith.constant 0 : i32
    %c0_i32_0 = arith.constant 0 : i32
    %c0_i32_1 = arith.constant 0 : i32
    return %c0_i32, %c0_i32_0 : i32, i32
  }
  func.func @transform_3(%arg0: i32) -> (i32, i32) {
    %c0_i32 = arith.constant 0 : i32
    %c0_i32_0 = arith.constant 0 : i32
    %c0_i32_1 = arith.constant 0 : i32
    return %c0_i32, %c0_i32_0 : i32, i32
  }
  func.func @transform_4(%arg0: i32) -> (i32, i32) {
    %c0_i32 = arith.constant 0 : i32
    %c0_i32_0 = arith.constant 0 : i32
    %c0_i32_1 = arith.constant 0 : i32
    return %c0_i32, %c0_i32_0 : i32, i32
  }
  func.func @transform_5(%arg0: i32) -> (i32, i32) {
    %c0_i32 = arith.constant 0 : i32
    %c0_i32_0 = arith.constant 0 : i32
    %c0_i32_1 = arith.constant 0 : i32
    return %c0_i32, %c0_i32_0 : i32, i32
  }
  func.func @transform_6(%arg0: i32) -> (i32, i32) {
    %c0_i32 = arith.constant 0 : i32
    %c0_i32_0 = arith.constant 0 : i32
    %c0_i32_1 = arith.constant 0 : i32
    return %c0_i32, %c0_i32_0 : i32, i32
  }
  func.func @transform_7(%arg0: i32) -> (i32, i32) {
    %c0_i32 = arith.constant 0 : i32
    %c0_i32_0 = arith.constant 0 : i32
    %c0_i32_1 = arith.constant 0 : i32
    return %c0_i32, %c0_i32_0 : i32, i32
  }
  func.func @transform_8(%arg0: i32) -> (i32, i32) {
    %c0_i32 = arith.constant 0 : i32
    %c0_i32_0 = arith.constant 0 : i32
    %c0_i32_1 = arith.constant 0 : i32
    return %c0_i32, %c0_i32_0 : i32, i32
  }
  func.func @transform_9(%arg0: i32) -> (i32, i32) {
    %c0_i32 = arith.constant 0 : i32
    %c0_i32_0 = arith.constant 0 : i32
    %c0_i32_1 = arith.constant 0 : i32
    return %c0_i32, %c0_i32_0 : i32, i32
  }
  func.func @transform_10(%arg0: i32) -> (i32, i32) {
    %c0_i32 = arith.constant 0 : i32
    %c0_i32_0 = arith.constant 0 : i32
    %c0_i32_1 = arith.constant 0 : i32
    return %c0_i32, %c0_i32_0 : i32, i32
  }
  func.func @transform_11(%arg0: i32) -> (i32, i32) {
    %c0_i32 = arith.constant 0 : i32
    %c0_i32_0 = arith.constant 0 : i32
    %c0_i32_1 = arith.constant 0 : i32
    return %c0_i32, %c0_i32_0 : i32, i32
  }
  func.func @transform_12(%arg0: i32) -> (i32, i32, i32) {
    %c0_i32 = arith.constant 0 : i32
    %c0_i32_0 = arith.constant 0 : i32
    %c0_i32_1 = arith.constant 0 : i32
    return %arg0, %c0_i32, %c0_i32_0 : i32, i32, i32
  }
}

</mosaic_0001>

<llo_original>
// kernel: tpu_custom_call.1
$region0: #{tpu_custom_call.1}
  #allocation0 [shape = 'u32[]', space=smem, size = 0x4, offset = 0x4, fixed_abs, tag = 'smem constant byte address 0x4 - core index']
  #allocation1 [shape = 'u32[144,128]{1,0:T(1,128)}', space=vmem, size = 0x12000, scoped, tag = 'internal scratch']
  %s0 = inlined_call_operand.hbm [shape: f32[4,16,128], index: 0, kind: input, shape index: {}]
  %s1 = inlined_call_operand.hbm [shape: bf16[128,384], index: 1, kind: input, shape index: {}]
  %s2 = inlined_call_operand.hbm [shape: bf16[128,128], index: 2, kind: input, shape index: {}]
  %s3 = inlined_call_operand.vmem [shape: f32[1,128], index: 3, kind: input, shape index: {}]
  %s4 = inlined_call_operand.vmem [shape: f32[1,128], index: 4, kind: input, shape index: {}]
  %s5 = inlined_call_operand.vmem [shape: f32[1,128], index: 5, kind: input, shape index: {}]
  %s6 = inlined_call_operand.hbm [shape: bf16[128,512], index: 6, kind: input, shape index: {}]
  %s7 = inlined_call_operand.vmem [shape: f32[1,512], index: 7, kind: input, shape index: {}]
  %s8 = inlined_call_operand.hbm [shape: bf16[512,128], index: 8, kind: input, shape index: {}]
  %s9 = inlined_call_operand.vmem [shape: f32[1,128], index: 9, kind: input, shape index: {}]
  %s10 = inlined_call_operand.vmem [shape: f32[1,128], index: 10, kind: input, shape index: {}]
  %s11 = inlined_call_operand.vmem [shape: f32[1,128], index: 11, kind: input, shape index: {}]
  %s12 = inlined_call_operand.hbm [shape: f32[4,16,128], index: 12, kind: output, shape index: {}]
  %s13 = sld [smem:[#allocation0]]
  $region101: #{tpu_custom_call.1} parent=0
    _
  %s15 = ssub.s32 1, %s13
  %s16 = scalar_select 0, %s15, %s13
  $region1: #{tpu_custom_call.1} parent=0
    #allocation2 [shape = 'u8[32768]{0}', space=vmem, size = 0x8000, scoped, tag = 'input window, operand 0']
    #allocation3 [shape = 's32[2]{0}', space=sflag, size = 0x8, scoped, tag = 'scoped memory for tpu_custom_call.1']
    #allocation4 [shape = 's32[2]{0}', space=sflag, size = 0x8, scoped, tag = 'scoped memory for tpu_custom_call.1']
    #allocation5 [shape = 'u8[98304]{0}', space=vmem, size = 0x18000, scoped, tag = 'input window, operand 1, single buffered']
    #allocation6 [shape = 's32[1]{0}', space=sflag, size = 0x4, scoped, tag = 'scoped memory for tpu_custom_call.1']
    #allocation7 [shape = 'u8[32768]{0}', space=vmem, size = 0x8000, scoped, tag = 'input window, operand 2, single buffered']
    #allocation8 [shape = 'u8[131072]{0}', space=vmem, size = 0x20000, scoped, tag = 'input window, operand 6, single buffered']
    #allocation9 [shape = 's32[1]{0}', space=sflag, size = 0x4, scoped, tag = 'scoped memory for tpu_custom_call.1']
    #allocation10 [shape = 'u8[131072]{0}', space=vmem, size = 0x20000, scoped, tag = 'input window, operand 8, single buffered']
    #allocation11 [shape = 'u8[32768]{0}', space=vmem, size = 0x8000, scoped, tag = 'output window, operand 0']
    %17 = vsyncpa [#allocation3], 0
    %s18 = scalar_lea.sflag [#allocation3], 1
    %19 = vsyncpa %s18, 0
    %20 = vsyncpa [#allocation6], 0
    %21 = vsyncpa [#allocation9], 0
    %22 = vsyncpa [#allocation4], 0
    %s23 = scalar_lea.sflag [#allocation4], 1
    %24 = vsyncpa %s23, 0
    loop: start=0, step=1, limit=4
    $region2: #{tpu_custom_call.1} parent=1 // loop_pre_header
      _
    $region3: #{tpu_custom_call.1} parent=1 // loop_header
      %s26 = sphi 0, %s30
      %p27 = scmp.ge.s32.totalorder %s26, 4
      %s36 = sphi 0, %s38
      %s39 = sphi 0, %s36
      %s40 = sphi 0, %s39
      %s56 = sphi 0, %s40
      %s60 = sphi 0, %s60
      %s62 = sphi 0, %s60
      %s63 = sphi 0, %s62
      %s77 = sphi 0, %s63
      %s81 = sphi 0, %s81
      %s83 = sphi 0, %s81
      %s84 = sphi 0, %s83
      %s98 = sphi 0, %s84
      %s102 = sphi 0, %s102
      %s104 = sphi 0, %s102
      %s105 = sphi 0, %s104
      %s119 = sphi 0, %s105
      %s123 = sphi 0, %s123
      %s125 = sphi 0, %s123
      %s126 = sphi 0, %s125
      %s140 = sphi 0, %s126
      %s144 = sphi 0, %s144
      %s146 = sphi 0, %s144
      %s147 = sphi 0, %s146
      %s161 = sphi 0, %s147
      %s165 = sphi 0, %s165
      %s167 = sphi 0, %s165
      %s168 = sphi 0, %s167
      %s182 = sphi 0, %s168
      %s186 = sphi 0, %s186
      %s188 = sphi 0, %s186
      %s189 = sphi 0, %s188
      %s203 = sphi 0, %s189
      %s207 = sphi 0, %s207
      %s209 = sphi 0, %s207
      %s210 = sphi 0, %s209
      %s224 = sphi 0, %s210
      %s228 = sphi 0, %s228
      %s230 = sphi 0, %s228
      %s231 = sphi 0, %s230
      %s245 = sphi 0, %s231
      %s249 = sphi 0, %s249
      %s251 = sphi 0, %s249
      %s252 = sphi 0, %s251
      %s266 = sphi 0, %s252
      %s270 = sphi 0, %s270
      %s272 = sphi 0, %s270
      %s273 = sphi 0, %s272
      %s287 = sphi 0, %s273
      %s293 = sphi 0, %s295
      %s296 = sphi 0, %s293
      %s297 = sphi 0, %s296
      %s313 = sphi 0, %s297
    $region4: #{tpu_custom_call.1} parent=1 // loop_header_branch
      %29 = sbr.rel (%p27) target = $region8
    $region5: #{tpu_custom_call.1} parent=1 // loop_body
      %s31 = ssub.s32 %s26, 1
      %s32 = ssub.s32 %s26, 2
      %s33 = sadd.s32 %s26, 1
      %s34 = ssub.s32 %s26, %s33
      %p35 = scmp.eq.s32.totalorder %s34, 0
      %s37 = sadd.s32 %s36, 1
      %s38 = scalar_select %p35, %s36, %s37
      %p41 = pneg %p35
      %p42 = scmp.eq.s32.totalorder %s26, 1
      %p43 = por %p41, %p42
      %p44 = scmp.ne.s32.totalorder %s36, %s39
      %p45 = scmp.eq.s32.totalorder %s26, 0
      %p46 = por %p44, %p45
      %p47 = scmp.ne.s32.totalorder %s36, %s39
      %p48 = scmp.eq.s32.totalorder %s31, 1
      %p49 = por %p47, %p48
      %p50 = scmp.ne.s32.totalorder %s39, %s40
      %p51 = scmp.eq.s32.totalorder %s31, 0
      %p52 = por %p50, %p51
      %p53 = scmp.ne.s32.totalorder %s39, %s40
      %p54 = scmp.eq.s32.totalorder %s32, 1
      %p55 = por %p53, %p54
      %p57 = scmp.ne.s32.totalorder %s40, %s56
      %p58 = scmp.eq.s32.totalorder %s32, 0
      %p59 = por %p57, %p58
      %s61 = sadd.s32 %s60, 1
      %p64 = scmp.eq.s32.totalorder %s26, 1
      %p65 = scmp.ne.s32.totalorder %s60, %s62
      %p66 = scmp.eq.s32.totalorder %s26, 0
      %p67 = por %p65, %p66
      %p68 = scmp.ne.s32.totalorder %s60, %s62
      %p69 = scmp.eq.s32.totalorder %s31, 1
      %p70 = por %p68, %p69
      %p71 = scmp.ne.s32.totalorder %s62, %s63
      %p72 = scmp.eq.s32.totalorder %s31, 0
      %p73 = por %p71, %p72
      %p74 = scmp.ne.s32.totalorder %s62, %s63
      %p75 = scmp.eq.s32.totalorder %s32, 1
      %p76 = por %p74, %p75
      %p78 = scmp.ne.s32.totalorder %s63, %s77
      %p79 = scmp.eq.s32.totalorder %s32, 0
      %p80 = por %p78, %p79
      %s82 = sadd.s32 %s81, 1
      %p85 = scmp.eq.s32.totalorder %s26, 1
      %p86 = scmp.ne.s32.totalorder %s81, %s83
      %p87 = scmp.eq.s32.totalorder %s26, 0
      %p88 = por %p86, %p87
      %p89 = scmp.ne.s32.totalorder %s81, %s83
      %p90 = scmp.eq.s32.totalorder %s31, 1
      %p91 = por %p89, %p90
      %p92 = scmp.ne.s32.totalorder %s83, %s84
      %p93 = scmp.eq.s32.totalorder %s31, 0
      %p94 = por %p92, %p93
      %p95 = scmp.ne.s32.totalorder %s83, %s84
      %p96 = scmp.eq.s32.totalorder %s32, 1
      %p97 = por %p95, %p96
      %p99 = scmp.ne.s32.totalorder %s84, %s98
      %p100 = scmp.eq.s32.totalorder %s32, 0
      %p101 = por %p99, %p100
      %s103 = sadd.s32 %s102, 1
      %p106 = scmp.eq.s32.totalorder %s26, 1
      %p107 = scmp.ne.s32.totalorder %s102, %s104
      %p108 = scmp.eq.s32.totalorder %s26, 0
      %p109 = por %p107, %p108
      %p110 = scmp.ne.s32.totalorder %s102, %s104
      %p111 = scmp.eq.s32.totalorder %s31, 1
      %p112 = por %p110, %p111
      %p113 = scmp.ne.s32.totalorder %s104, %s105
      %p114 = scmp.eq.s32.totalorder %s31, 0
      %p115 = por %p113, %p114
      %p116 = scmp.ne.s32.totalorder %s104, %s105
      %p117 = scmp.eq.s32.totalorder %s32, 1
      %p118 = por %p116, %p117
      %p120 = scmp.ne.s32.totalorder %s105, %s119
      %p121 = scmp.eq.s32.totalorder %s32, 0
      %p122 = por %p120, %p121
      %s124 = sadd.s32 %s123, 1
      %p127 = scmp.eq.s32.totalorder %s26, 1
      %p128 = scmp.ne.s32.totalorder %s123, %s125
      %p129 = scmp.eq.s32.totalorder %s26, 0
      %p130 = por %p128, %p129
      %p131 = scmp.ne.s32.totalorder %s123, %s125
      %p132 = scmp.eq.s32.totalorder %s31, 1
      %p133 = por %p131, %p132
      %p134 = scmp.ne.s32.totalorder %s125, %s126
      %p135 = scmp.eq.s32.totalorder %s31, 0
      %p136 = por %p134, %p135
      %p137 = scmp.ne.s32.totalorder %s125, %s126
      %p138 = scmp.eq.s32.totalorder %s32, 1
      %p139 = por %p137, %p138
      %p141 = scmp.ne.s32.totalorder %s126, %s140
      %p142 = scmp.eq.s32.totalorder %s32, 0
      %p143 = por %p141, %p142
      %s145 = sadd.s32 %s144, 1
      %p148 = scmp.eq.s32.totalorder %s26, 1
      %p149 = scmp.ne.s32.totalorder %s144, %s146
      %p150 = scmp.eq.s32.totalorder %s26, 0
      %p151 = por %p149, %p150
      %p152 = scmp.ne.s32.totalorder %s144, %s146
      %p153 = scmp.eq.s32.totalorder %s31, 1
      %p154 = por %p152, %p153
      %p155 = scmp.ne.s32.totalorder %s146, %s147
      %p156 = scmp.eq.s32.totalorder %s31, 0
      %p157 = por %p155, %p156
      %p158 = scmp.ne.s32.totalorder %s146, %s147
      %p159 = scmp.eq.s32.totalorder %s32, 1
      %p160 = por %p158, %p159
      %p162 = scmp.ne.s32.totalorder %s147, %s161
      %p163 = scmp.eq.s32.totalorder %s32, 0
      %p164 = por %p162, %p163
      %s166 = sadd.s32 %s165, 1
      %p169 = scmp.eq.s32.totalorder %s26, 1
      %p170 = scmp.ne.s32.totalorder %s165, %s167
      %p171 = scmp.eq.s32.totalorder %s26, 0
      %p172 = por %p170, %p171
      %p173 = scmp.ne.s32.totalorder %s165, %s167
      %p174 = scmp.eq.s32.totalorder %s31, 1
      %p175 = por %p173, %p174
      %p176 = scmp.ne.s32.totalorder %s167, %s168
      %p177 = scmp.eq.s32.totalorder %s31, 0
      %p178 = por %p176, %p177
      %p179 = scmp.ne.s32.totalorder %s167, %s168
      %p180 = scmp.eq.s32.totalorder %s32, 1
      %p181 = por %p179, %p180
      %p183 = scmp.ne.s32.totalorder %s168, %s182
      %p184 = scmp.eq.s32.totalorder %s32, 0
      %p185 = por %p183, %p184
      %s187 = sadd.s32 %s186, 1
      %p190 = scmp.eq.s32.totalorder %s26, 1
      %p191 = scmp.ne.s32.totalorder %s186, %s188
      %p192 = scmp.eq.s32.totalorder %s26, 0
      %p193 = por %p191, %p192
      %p194 = scmp.ne.s32.totalorder %s186, %s188
      %p195 = scmp.eq.s32.totalorder %s31, 1
      %p196 = por %p194, %p195
      %p197 = scmp.ne.s32.totalorder %s188, %s189
      %p198 = scmp.eq.s32.totalorder %s31, 0
      %p199 = por %p197, %p198
      %p200 = scmp.ne.s32.totalorder %s188, %s189
      %p201 = scmp.eq.s32.totalorder %s32, 1
      %p202 = por %p200, %p201
      %p204 = scmp.ne.s32.totalorder %s189, %s203
      %p205 = scmp.eq.s32.totalorder %s32, 0
      %p206 = por %p204, %p205
      %s208 = sadd.s32 %s207, 1
      %p211 = scmp.eq.s32.totalorder %s26, 1
      %p212 = scmp.ne.s32.totalorder %s207, %s209
      %p213 = scmp.eq.s32.totalorder %s26, 0
      %p214 = por %p212, %p213
      %p215 = scmp.ne.s32.totalorder %s207, %s209
      %p216 = scmp.eq.s32.totalorder %s31, 1
      %p217 = por %p215, %p216
      %p218 = scmp.ne.s32.totalorder %s209, %s210
      %p219 = scmp.eq.s32.totalorder %s31, 0
      %p220 = por %p218, %p219
      %p221 = scmp.ne.s32.totalorder %s209, %s210
      %p222 = scmp.eq.s32.totalorder %s32, 1
      %p223 = por %p221, %p222
      %p225 = scmp.ne.s32.totalorder %s210, %s224
      %p226 = scmp.eq.s32.totalorder %s32, 0
      %p227 = por %p225, %p226
      %s229 = sadd.s32 %s228, 1
      %p232 = scmp.eq.s32.totalorder %s26, 1
      %p233 = scmp.ne.s32.totalorder %s228, %s230
      %p234 = scmp.eq.s32.totalorder %s26, 0
      %p235 = por %p233, %p234
      %p236 = scmp.ne.s32.totalorder %s228, %s230
      %p237 = scmp.eq.s32.totalorder %s31, 1
      %p238 = por %p236, %p237
      %p239 = scmp.ne.s32.totalorder %s230, %s231
      %p240 = scmp.eq.s32.totalorder %s31, 0
      %p241 = por %p239, %p240
      %p242 = scmp.ne.s32.totalorder %s230, %s231
      %p243 = scmp.eq.s32.totalorder %s32, 1
      %p244 = por %p242, %p243
      %p246 = scmp.ne.s32.totalorder %s231, %s245
      %p247 = scmp.eq.s32.totalorder %s32, 0
      %p248 = por %p246, %p247
      %s250 = sadd.s32 %s249, 1
      %p253 = scmp.eq.s32.totalorder %s26, 1
      %p254 = scmp.ne.s32.totalorder %s249, %s251
      %p255 = scmp.eq.s32.totalorder %s26, 0
      %p256 = por %p254, %p255
      %p257 = scmp.ne.s32.totalorder %s249, %s251
      %p258 = scmp.eq.s32.totalorder %s31, 1
      %p259 = por %p257, %p258
      %p260 = scmp.ne.s32.totalorder %s251, %s252
      %p261 = scmp.eq.s32.totalorder %s31, 0
      %p262 = por %p260, %p261
      %p263 = scmp.ne.s32.totalorder %s251, %s252
      %p264 = scmp.eq.s32.totalorder %s32, 1
      %p265 = por %p263, %p264
      %p267 = scmp.ne.s32.totalorder %s252, %s266
      %p268 = scmp.eq.s32.totalorder %s32, 0
      %p269 = por %p267, %p268
      %s271 = sadd.s32 %s270, 1
      %p274 = scmp.eq.s32.totalorder %s26, 1
      %p275 = scmp.ne.s32.totalorder %s270, %s272
      %p276 = scmp.eq.s32.totalorder %s26, 0
      %p277 = por %p275, %p276
      %p278 = scmp.ne.s32.totalorder %s270, %s272
      %p279 = scmp.eq.s32.totalorder %s31, 1
      %p280 = por %p278, %p279
      %p281 = scmp.ne.s32.totalorder %s272, %s273
      %p282 = scmp.eq.s32.totalorder %s31, 0
      %p283 = por %p281, %p282
      %p284 = scmp.ne.s32.totalorder %s272, %s273
      %p285 = scmp.eq.s32.totalorder %s32, 1
      %p286 = por %p284, %p285
      %p288 = scmp.ne.s32.totalorder %s273, %s287
      %p289 = scmp.eq.s32.totalorder %s32, 0
      %p290 = por %p288, %p289
      %s291 = ssub.s32 %s26, %s33
      %p292 = scmp.eq.s32.totalorder %s291, 0
      %s294 = sadd.s32 %s293, 1
      %s295 = scalar_select %p292, %s293, %s294
      %p298 = pneg %p292
      %p299 = scmp.eq.s32.totalorder %s26, 1
      %p300 = por %p298, %p299
      %p301 = scmp.ne.s32.totalorder %s293, %s296
      %p302 = scmp.eq.s32.totalorder %s26, 0
      %p303 = por %p301, %p302
      %p304 = scmp.ne.s32.totalorder %s293, %s296
      %p305 = scmp.eq.s32.totalorder %s31, 1
      %p306 = por %p304, %p305
      %p307 = scmp.ne.s32.totalorder %s296, %s297
      %p308 = scmp.eq.s32.totalorder %s31, 0
      %p309 = por %p307, %p308
      %p310 = scmp.ne.s32.totalorder %s296, %s297
      %p311 = scmp.eq.s32.totalorder %s32, 1
      %p312 = por %p310, %p311
      %p314 = scmp.ne.s32.totalorder %s297, %s313
      %p315 = scmp.eq.s32.totalorder %s32, 0
      %p316 = por %p314, %p315
      %p317 = scmp.le.s32.totalorder 1, %s26
      %p318 = scmp.lt.s32.totalorder %s26, 3
      %p319 = pnand %p317, %p318
      %p320 = pneg %p319
      // Predicated region
      $region9: #{tpu_custom_call.1} parent=5 // pred_check
        _
      $region10: #{tpu_custom_call.1} parent=5 // pred_check_branch
        %322 = sbr.rel (%p319) target = $region12
      $region11: #{tpu_custom_call.1} parent=5 // pred_region
        %s323 = ssub.s32 %s26, 1
        // Predicated region
        $region13: #{tpu_custom_call.1} parent=11 // pred_check
          %p324 = pneg %p73
        $region14: #{tpu_custom_call.1} parent=11 // pred_check_branch
          %326 = sbr.rel (%p324) target = $region16
        $region15: #{tpu_custom_call.1} parent=11 // pred_region
          %s328 = ssub.s32 3072, 3072
          %329 = vsyncadd [#allocation6], %s328
          %s330 = sshll.u32 [#allocation5], 4
          %s331 = int_to_ptr.vmem [resolvable:$true] %s330
          %336 = dma.hbm_to_vmem [thread:$0]  %s1, 3072, %s331, [#allocation6], 192, 192, 12
        $region16: #{tpu_custom_call.1} parent=11 // pred_fallthru
          _
        // Predicated region
        $region17: #{tpu_custom_call.1} parent=11 // pred_check
          %p337 = pneg %p94
        $region18: #{tpu_custom_call.1} parent=11 // pred_check_branch
          %339 = sbr.rel (%p337) target = $region20
        $region19: #{tpu_custom_call.1} parent=11 // pred_region
          %s341 = ssub.s32 1024, 1024
          %342 = vsyncadd [#allocation6], %s341
          %s343 = sshll.u32 [#allocation7], 4
          %s344 = int_to_ptr.vmem [resolvable:$true] %s343
          %349 = dma.hbm_to_vmem [thread:$0]  %s2, 1024, %s344, [#allocation6], 64, 64, 4
        $region20: #{tpu_custom_call.1} parent=11 // pred_fallthru
          _
        // Predicated region
        $region21: #{tpu_custom_call.1} parent=11 // pred_check
          %p350 = pneg %p115
        $region22: #{tpu_custom_call.1} parent=11 // pred_check_branch
          %352 = sbr.rel (%p350) target = $region24
        $region23: #{tpu_custom_call.1} parent=11 // pred_region
          _
        $region24: #{tpu_custom_call.1} parent=11 // pred_fallthru
          _
        // Predicated region
        $region25: #{tpu_custom_call.1} parent=11 // pred_check
          %p353 = pneg %p136
        $region26: #{tpu_custom_call.1} parent=11 // pred_check_branch
          %355 = sbr.rel (%p353) target = $region28
        $region27: #{tpu_custom_call.1} parent=11 // pred_region
          _
        $region28: #{tpu_custom_call.1} parent=11 // pred_fallthru
          _
        // Predicated region
        $region29: #{tpu_custom_call.1} parent=11 // pred_check
          %p356 = pneg %p157
        $region30: #{tpu_custom_call.1} parent=11 // pred_check_branch
          %358 = sbr.rel (%p356) target = $region32
        $region31: #{tpu_custom_call.1} parent=11 // pred_region
          _
        $region32: #{tpu_custom_call.1} parent=11 // pred_fallthru
          _
        // Predicated region
        $region33: #{tpu_custom_call.1} parent=11 // pred_check
          %p359 = pneg %p178
        $region34: #{tpu_custom_call.1} parent=11 // pred_check_branch
          %361 = sbr.rel (%p359) target = $region36
        $region35: #{tpu_custom_call.1} parent=11 // pred_region
          %s363 = ssub.s32 4096, 4096
          %364 = vsyncadd [#allocation9], %s363
          %s365 = sshll.u32 [#allocation8], 4
          %s366 = int_to_ptr.vmem [resolvable:$true] %s365
          %371 = dma.hbm_to_vmem [thread:$0]  %s6, 4096, %s366, [#allocation9], 256, 256, 16
        $region36: #{tpu_custom_call.1} parent=11 // pred_fallthru
          _
        // Predicated region
        $region37: #{tpu_custom_call.1} parent=11 // pred_check
          %p372 = pneg %p199
        $region38: #{tpu_custom_call.1} parent=11 // pred_check_branch
          %374 = sbr.rel (%p372) target = $region40
        $region39: #{tpu_custom_call.1} parent=11 // pred_region
          _
        $region40: #{tpu_custom_call.1} parent=11 // pred_fallthru
          _
        // Predicated region
        $region41: #{tpu_custom_call.1} parent=11 // pred_check
          %p375 = pneg %p220
        $region42: #{tpu_custom_call.1} parent=11 // pred_check_branch
          %377 = sbr.rel (%p375) target = $region44
        $region43: #{tpu_custom_call.1} parent=11 // pred_region
          %s379 = ssub.s32 4096, 4096
          %380 = vsyncadd [#allocation9], %s379
          %s381 = sshll.u32 [#allocation10], 4
          %s382 = int_to_ptr.vmem [resolvable:$true] %s381
          %387 = dma.hbm_to_vmem [thread:$0]  %s8, 4096, %s382, [#allocation9], 64, 64, 4
        $region44: #{tpu_custom_call.1} parent=11 // pred_fallthru
          _
        // Predicated region
        $region45: #{tpu_custom_call.1} parent=11 // pred_check
          %p388 = pneg %p241
        $region46: #{tpu_custom_call.1} parent=11 // pred_check_branch
          %390 = sbr.rel (%p388) target = $region48
        $region47: #{tpu_custom_call.1} parent=11 // pred_region
          _
        $region48: #{tpu_custom_call.1} parent=11 // pred_fallthru
          _
        // Predicated region
        $region49: #{tpu_custom_call.1} parent=11 // pred_check
          %p391 = pneg %p262
        $region50: #{tpu_custom_call.1} parent=11 // pred_check_branch
          %393 = sbr.rel (%p391) target = $region52
        $region51: #{tpu_custom_call.1} parent=11 // pred_region
          _
        $region52: #{tpu_custom_call.1} parent=11 // pred_fallthru
          _
        // Predicated region
        $region53: #{tpu_custom_call.1} parent=11 // pred_check
          %p394 = pneg %p283
        $region54: #{tpu_custom_call.1} parent=11 // pred_check_branch
          %396 = sbr.rel (%p394) target = $region56
        $region55: #{tpu_custom_call.1} parent=11 // pred_region
          _
        $region56: #{tpu_custom_call.1} parent=11 // pred_fallthru
          _
      $region12: #{tpu_custom_call.1} parent=5 // pred_fallthru
        _
      %p397 = scmp.lt.s32.totalorder %s26, 2
      // Predicated region
      $region57: #{tpu_custom_call.1} parent=5 // pred_check
        %p398 = pneg %p397
      $region58: #{tpu_custom_call.1} parent=5 // pred_check_branch
        %400 = sbr.rel (%p398) target = $region60
      $region59: #{tpu_custom_call.1} parent=5 // pred_region
        // Predicated region
        $region61: #{tpu_custom_call.1} parent=59 // pred_check
          %p401 = pneg %p46
        $region62: #{tpu_custom_call.1} parent=59 // pred_check_branch
          %403 = sbr.rel (%p401) target = $region64
        $region63: #{tpu_custom_call.1} parent=59 // pred_region
          %s404 = sand.u32 %s36, 1
          %s405 = scalar_lea.sflag [#allocation3], %s404
          %s406 = sand.u32 %s36, 1
          %s407 = smul.addr %s406, 32
          %s408 = scalar_lea.vmem [#allocation2], %s407
          %s409 = smul.u32 2, %s26
          %s411 = ssub.s32 512, 512
          %412 = vsyncadd %s405, %s411
          %s413 = smul.addr %s409, 2
          %s414 = smul.addr %s413, 128
          %s415 = scalar_lea.hbm %s0, %s414
          %s416 = sshll.u32 %s408, 4
          %s417 = int_to_ptr.vmem [resolvable:$true] %s416
          %422 = dma.hbm_to_vmem [thread:$0]  %s415, 512, %s417, %s405, 128, 128, 8
        $region64: #{tpu_custom_call.1} parent=59 // pred_fallthru
          _
      $region60: #{tpu_custom_call.1} parent=5 // pred_fallthru
        _
      %p423 = scmp.le.s32.totalorder 1, %s26
      %p424 = scmp.lt.s32.totalorder %s26, 3
      %p425 = pnand %p423, %p424
      %p426 = pneg %p425
      // Predicated region
      $region65: #{tpu_custom_call.1} parent=5 // pred_check
        _
      $region66: #{tpu_custom_call.1} parent=5 // pred_check_branch
        %428 = sbr.rel (%p425) target = $region68
      $region67: #{tpu_custom_call.1} parent=5 // pred_region
        %s429 = ssub.s32 %s26, 1
        %s430 = sand.u32 %s39, 1
        %s431 = scalar_lea.sflag [#allocation3], %s430
        %s432 = sand.u32 %s39, 1
        %s433 = smul.addr %s432, 32
        %s434 = scalar_lea.vmem [#allocation2], %s433
        // Predicated region
        $region69: #{tpu_custom_call.1} parent=67 // pred_check
          %p435 = pneg %p52
        $region70: #{tpu_custom_call.1} parent=67 // pred_check_branch
          %437 = sbr.rel (%p435) target = $region72
        $region71: #{tpu_custom_call.1} parent=67 // pred_region
          %438 = dma.done %s431, 512
        $region72: #{tpu_custom_call.1} parent=67 // pred_fallthru
          _
        // Predicated region
        $region73: #{tpu_custom_call.1} parent=67 // pred_check
          %p439 = pneg %p73
        $region74: #{tpu_custom_call.1} parent=67 // pred_check_branch
          %441 = sbr.rel (%p439) target = $region76
        $region75: #{tpu_custom_call.1} parent=67 // pred_region
          %442 = dma.done [#allocation6], 3072
        $region76: #{tpu_custom_call.1} parent=67 // pred_fallthru
          _
        // Predicated region
        $region77: #{tpu_custom_call.1} parent=67 // pred_check
          %p443 = pneg %p94
        $region78: #{tpu_custom_call.1} parent=67 // pred_check_branch
          %445 = sbr.rel (%p443) target = $region80
        $region79: #{tpu_custom_call.1} parent=67 // pred_region
          %446 = dma.done [#allocation6], 1024
        $region80: #{tpu_custom_call.1} parent=67 // pred_fallthru
          _
        // Predicated region
        $region81: #{tpu_custom_call.1} parent=67 // pred_check
          %p447 = pneg %p178
        $region82: #{tpu_custom_call.1} parent=67 // pred_check_branch
          %449 = sbr.rel (%p447) target = $region84
        $region83: #{tpu_custom_call.1} parent=67 // pred_region
          %450 = dma.done [#allocation9], 4096
        $region84: #{tpu_custom_call.1} parent=67 // pred_fallthru
          _
        // Predicated region
        $region85: #{tpu_custom_call.1} parent=67 // pred_check
          %p451 = pneg %p220
        $region86: #{tpu_custom_call.1} parent=67 // pred_check_branch
          %453 = sbr.rel (%p451) target = $region88
        $region87: #{tpu_custom_call.1} parent=67 // pred_region
          %454 = dma.done [#allocation9], 4096
        $region88: #{tpu_custom_call.1} parent=67 // pred_fallthru
          _
        %s455 = sand.u32 %s39, 1
        %s456 = scalar_lea.sflag [#allocation3], %s455
        %s457 = sand.u32 %s39, 1
        %s458 = smul.addr %s457, 32
        %s459 = scalar_lea.vmem [#allocation2], %s458
        %p460 = pneg %p52
        %p461 = pneg %p49
        %p462 = pneg %p73
        %p463 = pneg %p70
        %p464 = pneg %p94
        %p465 = pneg %p91
        %p466 = pneg %p115
        %p467 = pneg %p112
        %p468 = pneg %p136
        %p469 = pneg %p133
        %p470 = pneg %p157
        %p471 = pneg %p154
        %p472 = pneg %p178
        %p473 = pneg %p175
        %p474 = pneg %p199
        %p475 = pneg %p196
        %p476 = pneg %p220
        %p477 = pneg %p217
        %p478 = pneg %p241
        %p479 = pneg %p238
        %p480 = pneg %p262
        %p481 = pneg %p259
        %p482 = pneg %p283
        %p483 = pneg %p280
        %p484 = pneg %p309
        %p485 = pneg %p306
        %s486 = sand.u32 %s296, 1
        %s487 = scalar_lea.sflag [#allocation4], %s486
        %s488 = sand.u32 %s296, 1
        %s489 = smul.addr %s488, 32
        %s490 = scalar_lea.vmem [#allocation11], %s489
        %s491 = smul.u32 2, %s31
        %s492 = smul.u32 2, %s31
        %v494 = vld [vmem:[%s434] sm:$0xff]
        %v495 = vld [vmem:[%s434 + $0x8] sm:$0xff]
        %v496 = vld [vmem:[%s434 + $0x10] sm:$0xff]
        %v497 = vld [vmem:[%s434 + $0x18] sm:$0xff]
        %v498 = vpack.c.bf16 %v495, %v494
        %v499 = vpack.c.bf16 %v497, %v496
        %v500 = vld [vmem:[#allocation5] sm:$0xff]
        %v501 = vld [vmem:[#allocation5 + $0x8] sm:$0xf]
        %v502 = vld [vmem:[#allocation5 + $0xc] sm:$0xff]
        %v503 = vld [vmem:[#allocation5 + $0x14] sm:$0xf]
        %v504 = vld [vmem:[#allocation5 + $0x18] sm:$0xff]
        %v505 = vld [vmem:[#allocation5 + $0x20] sm:$0xf]
        %v506 = vld [vmem:[#allocation5 + $0x24] sm:$0xff]
        %v507 = vld [vmem:[#allocation5 + $0x2c] sm:$0xf]
        %v508 = vld [vmem:[#allocation5 + $0x30] sm:$0xff]
        %v509 = vld [vmem:[#allocation5 + $0x38] sm:$0xf]
        %v510 = vld [vmem:[#allocation5 + $0x3c] sm:$0xff]
        %v511 = vld [vmem:[#allocation5 + $0x44] sm:$0xf]
        %v512 = vld [vmem:[#allocation5 + $0x48] sm:$0xff]
        %v513 = vld [vmem:[#allocation5 + $0x50] sm:$0xf]
        %v514 = vld [vmem:[#allocation5 + $0x54] sm:$0xff]
        %v515 = vld [vmem:[#allocation5 + $0x5c] sm:$0xf]
        %v516 = vld [vmem:[#allocation5 + $0x60] sm:$0xff]
        %v517 = vld [vmem:[#allocation5 + $0x68] sm:$0xf]
        %v518 = vld [vmem:[#allocation5 + $0x6c] sm:$0xff]
        %v519 = vld [vmem:[#allocation5 + $0x74] sm:$0xf]
        %v520 = vld [vmem:[#allocation5 + $0x78] sm:$0xff]
        %v521 = vld [vmem:[#allocation5 + $0x80] sm:$0xf]
        %v522 = vld [vmem:[#allocation5 + $0x84] sm:$0xff]
        %v523 = vld [vmem:[#allocation5 + $0x8c] sm:$0xf]
        %v524 = vld [vmem:[#allocation5 + $0x90] sm:$0xff]
        %v525 = vld [vmem:[#allocation5 + $0x98] sm:$0xf]
        %v526 = vld [vmem:[#allocation5 + $0x9c] sm:$0xff]
        %v527 = vld [vmem:[#allocation5 + $0xa4] sm:$0xf]
        %v528 = vld [vmem:[#allocation5 + $0xa8] sm:$0xff]
        %v529 = vld [vmem:[#allocation5 + $0xb0] sm:$0xf]
        %v530 = vld [vmem:[#allocation5 + $0xb4] sm:$0xff]
        %v531 = vld [vmem:[#allocation5 + $0xbc] sm:$0xf]
        %v564 = vunpack.c.l.b16 %v500
        %v565 = vunpack.c.h.b16 %v500
        %v566 = vunpack.c.l.b16 %v501
        %v567 = vunpack.c.l.b16 %v502
        %v568 = vunpack.c.h.b16 %v502
        %v569 = vunpack.c.l.b16 %v503
        %v570 = vunpack.c.l.b16 %v504
        %v571 = vunpack.c.h.b16 %v504
        %v572 = vunpack.c.l.b16 %v505
        %v573 = vunpack.c.l.b16 %v506
        %v574 = vunpack.c.h.b16 %v506
        %v575 = vunpack.c.l.b16 %v507
        %v576 = vunpack.c.l.b16 %v508
        %v577 = vunpack.c.h.b16 %v508
        %v578 = vunpack.c.l.b16 %v509
        %v579 = vunpack.c.l.b16 %v510
        %v580 = vunpack.c.h.b16 %v510
        %v581 = vunpack.c.l.b16 %v511
        %v582 = vunpack.c.l.b16 %v512
        %v583 = vunpack.c.h.b16 %v512
        %v584 = vunpack.c.l.b16 %v513
        %v585 = vunpack.c.l.b16 %v514
        %v586 = vunpack.c.h.b16 %v514
        %v587 = vunpack.c.l.b16 %v515
        %v588 = vunpack.c.l.b16 %v516
        %v589 = vunpack.c.h.b16 %v516
        %v590 = vunpack.c.l.b16 %v517
        %v591 = vunpack.c.l.b16 %v518
        %v592 = vunpack.c.h.b16 %v518
        %v593 = vunpack.c.l.b16 %v519
        %v594 = vunpack.c.l.b16 %v520
        %v595 = vunpack.c.h.b16 %v520
        %v596 = vunpack.c.l.b16 %v521
        %v597 = vunpack.c.l.b16 %v522
        %v598 = vunpack.c.h.b16 %v522
        %v599 = vunpack.c.l.b16 %v523
        %v600 = vunpack.c.l.b16 %v524
        %v601 = vunpack.c.h.b16 %v524
        %v602 = vunpack.c.l.b16 %v525
        %v603 = vunpack.c.l.b16 %v526
        %v604 = vunpack.c.h.b16 %v526
        %v605 = vunpack.c.l.b16 %v527
        %v606 = vunpack.c.l.b16 %v528
        %v607 = vunpack.c.h.b16 %v528
        %v608 = vunpack.c.l.b16 %v529
        %v609 = vunpack.c.l.b16 %v530
        %v610 = vunpack.c.h.b16 %v530
        %v611 = vunpack.c.l.b16 %v531
        %v612 = vpack.c.b16 %v567, %v564
        %v613 = vpack.c.b16 %v568, %v565
        %v614 = vpack.c.b16 %v569, %v566
        %v615 = vpack.c.b16 %v573, %v570
        %v616 = vpack.c.b16 %v574, %v571
        %v617 = vpack.c.b16 %v575, %v572
        %v618 = vpack.c.b16 %v579, %v576
        %v619 = vpack.c.b16 %v580, %v577
        %v620 = vpack.c.b16 %v581, %v578
        %v621 = vpack.c.b16 %v585, %v582
        %v622 = vpack.c.b16 %v586, %v583
        %v623 = vpack.c.b16 %v587, %v584
        %v624 = vpack.c.b16 %v591, %v588
        %v625 = vpack.c.b16 %v592, %v589
        %v626 = vpack.c.b16 %v593, %v590
        %v627 = vpack.c.b16 %v597, %v594
        %v628 = vpack.c.b16 %v598, %v595
        %v629 = vpack.c.b16 %v599, %v596
        %v630 = vpack.c.b16 %v603, %v600
        %v631 = vpack.c.b16 %v604, %v601
        %v632 = vpack.c.b16 %v605, %v602
        %v633 = vpack.c.b16 %v609, %v606
        %v634 = vpack.c.b16 %v610, %v607
        %v635 = vpack.c.b16 %v611, %v608
        %660 = vmatprep.subr.bf16.mxu0 %v613
        %661 = vmatpush1.bf16.msra.mxu0 %v612
        %662 = vmatprep.subr.bf16.mxu0 %v616
        %663 = vmatpush1.bf16.msra.mxu0 %v615
        %664 = vmatprep.subr.bf16.mxu0 %v619
        %665 = vmatpush1.bf16.msra.mxu0 %v618
        %666 = vmatprep.subr.bf16.mxu0 %v622
        %667 = vmatpush1.bf16.msra.mxu0 %v621
        %668 = vmatprep.subr.bf16.mxu0 %v625
        %669 = vmatpush1.bf16.msra.mxu0 %v624
        %670 = vmatprep.subr.bf16.mxu0 %v628
        %671 = vmatpush1.bf16.msra.mxu0 %v627
        %672 = vmatprep.subr.bf16.mxu0 %v631
        %673 = vmatpush1.bf16.msra.mxu0 %v630
        %674 = vmatprep.subr.bf16.mxu0 %v634
        %675 = vmatpush1.bf16.msra.mxu0 %v633
        %676 = vmatprep.subr.bf16.mxu0 0
        %677 = vmatpush1.bf16.msra.mxu0 0
        %678 = vmatprep.subr.bf16.mxu0 0
        %679 = vmatpush1.bf16.msra.mxu0 0
        %680 = vmatprep.subr.bf16.mxu0 0
        %681 = vmatpush1.bf16.msra.mxu0 0
        %682 = vmatprep.subr.bf16.mxu0 0
        %683 = vmatpush1.bf16.msra.mxu0 0
        %684 = vmatprep.subr.bf16.mxu0 0
        %685 = vmatpush1.bf16.msra.mxu0 0
        %686 = vmatprep.subr.bf16.mxu0 0
        %687 = vmatpush1.bf16.msra.mxu0 0
        %688 = vmatprep.subr.bf16.mxu0 0
        %689 = vmatpush1.bf16.msra.mxu0 0
        %690 = vmatprep.subr.bf16.mxu0 0
        %691 = vmatpush1.bf16.msra.mxu0 0
        %692 = vmatprep.mubr.bf16.mxu0 0
        %693 = vmatmul.mubr.bf16.gmra.mrb[0].mxu0 %v498
        %v694 = vpop.f32.mrb[0].mxu0
        %v695 = vadd.f32 0.0, %v694
        %v696 = vpop.f32.mrb[0].mxu0
        %v697 = vadd.f32 0.0, %v696
        %v698 = vpop.f32.mrb[0].mxu0
        %v699 = vadd.f32 0.0, %v698
        %v700 = vpop.f32.mrb[0].mxu0
        %v701 = vadd.f32 0.0, %v700
        %702 = vmatprep.mubr.bf16.mxu0 0
        %703 = vmatmul.mubr.bf16.gmra.mrb[0].mxu0 %v499
        %v704 = vpop.f32.mrb[0].mxu0
        %v705 = vadd.f32 0.0, %v704
        %v706 = vpop.f32.mrb[0].mxu0
        %v707 = vadd.f32 0.0, %v706
        %v708 = vpop.f32.mrb[0].mxu0
        %v709 = vadd.f32 0.0, %v708
        %v710 = vpop.f32.mrb[0].mxu0
        %v711 = vadd.f32 0.0, %v710
        %712 = vdwg.mxu0
        %713 = vmatprep.subr.bf16.mxu0 0
        %714 = vmatpush1.bf16.msra.mxu0 %v614
        %715 = vmatprep.subr.bf16.mxu0 0
        %716 = vmatpush1.bf16.msra.mxu0 %v617
        %717 = vmatprep.subr.bf16.mxu0 0
        %718 = vmatpush1.bf16.msra.mxu0 %v620
        %719 = vmatprep.subr.bf16.mxu0 0
        %720 = vmatpush1.bf16.msra.mxu0 %v623
        %721 = vmatprep.subr.bf16.mxu0 0
        %722 = vmatpush1.bf16.msra.mxu0 %v626
        %723 = vmatprep.subr.bf16.mxu0 0
        %724 = vmatpush1.bf16.msra.mxu0 %v629
        %725 = vmatprep.subr.bf16.mxu0 0
        %726 = vmatpush1.bf16.msra.mxu0 %v632
        %727 = vmatprep.subr.bf16.mxu0 0
        %728 = vmatpush1.bf16.msra.mxu0 %v635
        %729 = vmatprep.subr.bf16.mxu0 0
        %730 = vmatpush1.bf16.msra.mxu0 0
        %731 = vmatprep.subr.bf16.mxu0 0
        %732 = vmatpush1.bf16.msra.mxu0 0
        %733 = vmatprep.subr.bf16.mxu0 0
        %734 = vmatpush1.bf16.msra.mxu0 0
        %735 = vmatprep.subr.bf16.mxu0 0
        %736 = vmatpush1.bf16.msra.mxu0 0
        %737 = vmatprep.subr.bf16.mxu0 0
        %738 = vmatpush1.bf16.msra.mxu0 0
        %739 = vmatprep.subr.bf16.mxu0 0
        %740 = vmatpush1.bf16.msra.mxu0 0
        %741 = vmatprep.subr.bf16.mxu0 0
        %742 = vmatpush1.bf16.msra.mxu0 0
        %743 = vmatprep.subr.bf16.mxu0 0
        %744 = vmatpush1.bf16.msra.mxu0 0
        %745 = vmatprep.mubr.bf16.mxu0 0
        %746 = vmatmul.mubr.bf16.gmra.mrb[0].mxu0 %v498
        %v747 = vpop.f32.mrb[0].mxu0
        %v748 = vadd.f32 0.0, %v747
        %v749 = vpop.f32.mrb[0].mxu0
        %v750 = vpop.f32.mrb[0].mxu0
        %v751 = vadd.f32 0.0, %v750
        %v752 = vpop.f32.mrb[0].mxu0
        %753 = vmatprep.mubr.bf16.mxu0 0
        %754 = vmatmul.mubr.bf16.gmra.mrb[0].mxu0 %v499
        %v755 = vpop.f32.mrb[0].mxu0
        %v756 = vadd.f32 0.0, %v755
        %v757 = vpop.f32.mrb[0].mxu0
        %v758 = vpop.f32.mrb[0].mxu0
        %v759 = vadd.f32 0.0, %v758
        %v760 = vpop.f32.mrb[0].mxu0
        %761 = vdwg.mxu0
        %v762 = vpack.c.bf16 %v699, %v695
        %v763 = vpack.c.bf16 %v701, %v697
        %v764 = vpack.c.bf16 %v751, %v748
        %v765 = vpack.c.bf16 %v709, %v705
        %v766 = vpack.c.bf16 %v711, %v707
        %v767 = vpack.c.bf16 %v759, %v756
        %vm768 = vcmask 261120
        %v770 = vsel %vm768, %v762, 0
        %v773 = vsel %vm768, %v763, 0
        %775 = vmatprep.subr.bf16.mxu0 0
        %776 = vmatpush1.bf16.xpose.msra.mxu0 %v773
        %777 = vmatprep.subr.bf16.mxu0 0
        %778 = vmatpush1.bf16.xpose.msra.mxu0 0
        %779 = vmatprep.subr.bf16.mxu0 0
        %780 = vmatpush1.bf16.xpose.msra.mxu0 0
        %781 = vmatprep.subr.bf16.mxu0 0
        %782 = vmatpush1.bf16.xpose.msra.mxu0 0
        %783 = vmatprep.subr.bf16.mxu0 0
        %784 = vmatpush1.bf16.xpose.msra.mxu0 0
        %785 = vmatprep.subr.bf16.mxu0 0
        %786 = vmatpush1.bf16.xpose.msra.mxu0 0
        %787 = vmatprep.subr.bf16.mxu0 0
        %788 = vmatpush1.bf16.xpose.msra.mxu0 0
        %789 = vmatprep.subr.bf16.mxu0 0
        %790 = vmatpush1.bf16.xpose.msra.mxu0 0
        %791 = vmatprep.subr.bf16.mxu0 0
        %792 = vmatpush1.bf16.xpose.msra.mxu0 0
        %793 = vmatprep.subr.bf16.mxu0 0
        %794 = vmatpush1.bf16.xpose.msra.mxu0 0
        %795 = vmatprep.subr.bf16.mxu0 0
        %796 = vmatpush1.bf16.xpose.msra.mxu0 0
        %797 = vmatprep.subr.bf16.mxu0 0
        %798 = vmatpush1.bf16.xpose.msra.mxu0 0
        %799 = vmatprep.subr.bf16.mxu0 0
        %800 = vmatpush1.bf16.xpose.msra.mxu0 0
        %801 = vmatprep.subr.bf16.mxu0 0
        %802 = vmatpush1.bf16.xpose.msra.mxu0 0
        %803 = vmatprep.subr.bf16.mxu0 0
        %804 = vmatpush1.bf16.xpose.msra.mxu0 0
        %805 = vmatprep.subr.bf16.mxu0 0
        %806 = vmatpush1.bf16.xpose.msra.mxu0 0
        %807 = vmatprep.mubr.bf16.mxu0 0
        %808 = vmatmul.mubr.bf16.gmra.mrb[0].mxu0 %v770
        %v809 = vpop.f32.mrb[0].mxu0
        %v810 = vadd.f32 0.0, %v809
        %v811 = vpop.f32.mrb[0].mxu0
        %v812 = vpop.f32.mrb[0].mxu0
        %v813 = vadd.f32 0.0, %v812
        %v814 = vpop.f32.mrb[0].mxu0
        %815 = vdwg.mxu0
        %v817 = vsel %vm768, %v765, 0
        %v820 = vsel %vm768, %v766, 0
        %822 = vmatprep.subr.bf16.mxu0 0
        %823 = vmatpush1.bf16.xpose.msra.mxu0 %v820
        %824 = vmatprep.subr.bf16.mxu0 0
        %825 = vmatpush1.bf16.xpose.msra.mxu0 0
        %826 = vmatprep.subr.bf16.mxu0 0
        %827 = vmatpush1.bf16.xpose.msra.mxu0 0
        %828 = vmatprep.subr.bf16.mxu0 0
        %829 = vmatpush1.bf16.xpose.msra.mxu0 0
        %830 = vmatprep.subr.bf16.mxu0 0
        %831 = vmatpush1.bf16.xpose.msra.mxu0 0
        %832 = vmatprep.subr.bf16.mxu0 0
        %833 = vmatpush1.bf16.xpose.msra.mxu0 0
        %834 = vmatprep.subr.bf16.mxu0 0
        %835 = vmatpush1.bf16.xpose.msra.mxu0 0
        %836 = vmatprep.subr.bf16.mxu0 0
        %837 = vmatpush1.bf16.xpose.msra.mxu0 0
        %838 = vmatprep.subr.bf16.mxu0 0
        %839 = vmatpush1.bf16.xpose.msra.mxu0 0
        %840 = vmatprep.subr.bf16.mxu0 0
        %841 = vmatpush1.bf16.xpose.msra.mxu0 0
        %842 = vmatprep.subr.bf16.mxu0 0
        %843 = vmatpush1.bf16.xpose.msra.mxu0 0
        %844 = vmatprep.subr.bf16.mxu0 0
        %845 = vmatpush1.bf16.xpose.msra.mxu0 0
        %846 = vmatprep.subr.bf16.mxu0 0
        %847 = vmatpush1.bf16.xpose.msra.mxu0 0
        %848 = vmatprep.subr.bf16.mxu0 0
        %849 = vmatpush1.bf16.xpose.msra.mxu0 0
        %850 = vmatprep.subr.bf16.mxu0 0
        %851 = vmatpush1.bf16.xpose.msra.mxu0 0
        %852 = vmatprep.subr.bf16.mxu0 0
        %853 = vmatpush1.bf16.xpose.msra.mxu0 0
        %854 = vmatprep.mubr.bf16.mxu0 0
        %855 = vmatmul.mubr.bf16.gmra.mrb[0].mxu0 %v817
        %v856 = vpop.f32.mrb[0].mxu0
        %v857 = vadd.f32 0.0, %v856
        %v858 = vpop.f32.mrb[0].mxu0
        %v859 = vpop.f32.mrb[0].mxu0
        %v860 = vadd.f32 0.0, %v859
        %v861 = vpop.f32.mrb[0].mxu0
        %862 = vdwg.mxu0
        %vm863 = vcmask 130048
        %v864 = vsel %vm863, %v810, -inf
        %865 = vmax.xlane.f32.xlu0 %v864
        %v866 = vpop.xlane.xlu0 %865
        %v867 = vsel %vm863, %v813, -inf
        %868 = vmax.xlane.f32.xlu0 %v867
        %v869 = vpop.xlane.xlu0 %868
        %v870 = vsel %vm863, %v857, -inf
        %871 = vmax.xlane.f32.xlu0 %v870
        %v872 = vpop.xlane.xlu0 %871
        %v873 = vsel %vm863, %v860, -inf
        %874 = vmax.xlane.f32.xlu0 %v873
        %v875 = vpop.xlane.xlu0 %874
        %v876 = vsub.f32 %v810, %v866
        %v877 = vsub.f32 %v813, %v869
        %v878 = vsub.f32 %v857, %v872
        %v879 = vsub.f32 %v860, %v875
        %v880 = vmul.f32 %v876, 1.442695
        %v881 = vpow.pop %v880
        %v882 = vmul.f32 %v877, 1.442695
        %v883 = vpow.pop %v882
        %v884 = vmul.f32 %v878, 1.442695
        %v885 = vpow.pop %v884
        %v886 = vmul.f32 %v879, 1.442695
        %v887 = vpow.pop %v886
        %v888 = vsel %vm863, %v881, 0.0
        %889 = vadd.xlane.f32.xlu0 %v888
        %v890 = vpop.xlane.xlu0 %889
        %v891 = vsel %vm863, %v883, 0.0
        %892 = vadd.xlane.f32.xlu0 %v891
        %v893 = vpop.xlane.xlu0 %892
        %v894 = vsel %vm863, %v885, 0.0
        %895 = vadd.xlane.f32.xlu0 %v894
        %v896 = vpop.xlane.xlu0 %895
        %v897 = vsel %vm863, %v887, 0.0
        %898 = vadd.xlane.f32.xlu0 %v897
        %v899 = vpop.xlane.xlu0 %898
        %v900 = vrcp.pop %v890
        %v901 = vrcp.pop %v893
        %v902 = vrcp.pop %v896
        %v903 = vrcp.pop %v899
        %v904 = vmul.f32 %v881, %v900
        %v905 = vmul.f32 %v883, %v901
        %v906 = vmul.f32 %v885, %v902
        %v907 = vmul.f32 %v887, %v903
        %v908 = vpack.c.bf16 %v905, %v904
        %v909 = vpack.c.bf16 %v907, %v906
        %v911 = vsel %vm863, %v908, 0
        %913 = vmatprep.subr.bf16.mxu0 0
        %914 = vmatpush1.bf16.msra.mxu0 %v764
        %915 = vmatprep.subr.bf16.mxu0 0
        %916 = vmatpush1.bf16.msra.mxu0 0
        %917 = vmatprep.subr.bf16.mxu0 0
        %918 = vmatpush1.bf16.msra.mxu0 0
        %919 = vmatprep.subr.bf16.mxu0 0
        %920 = vmatpush1.bf16.msra.mxu0 0
        %921 = vmatprep.subr.bf16.mxu0 0
        %922 = vmatpush1.bf16.msra.mxu0 0
        %923 = vmatprep.subr.bf16.mxu0 0
        %924 = vmatpush1.bf16.msra.mxu0 0
        %925 = vmatprep.subr.bf16.mxu0 0
        %926 = vmatpush1.bf16.msra.mxu0 0
        %927 = vmatprep.subr.bf16.mxu0 0
        %928 = vmatpush1.bf16.msra.mxu0 0
        %929 = vmatprep.subr.bf16.mxu0 0
        %930 = vmatpush1.bf16.msra.mxu0 0
        %931 = vmatprep.subr.bf16.mxu0 0
        %932 = vmatpush1.bf16.msra.mxu0 0
        %933 = vmatprep.subr.bf16.mxu0 0
        %934 = vmatpush1.bf16.msra.mxu0 0
        %935 = vmatprep.subr.bf16.mxu0 0
        %936 = vmatpush1.bf16.msra.mxu0 0
        %937 = vmatprep.subr.bf16.mxu0 0
        %938 = vmatpush1.bf16.msra.mxu0 0
        %939 = vmatprep.subr.bf16.mxu0 0
        %940 = vmatpush1.bf16.msra.mxu0 0
        %941 = vmatprep.subr.bf16.mxu0 0
        %942 = vmatpush1.bf16.msra.mxu0 0
        %943 = vmatprep.subr.bf16.mxu0 0
        %944 = vmatpush1.bf16.msra.mxu0 0
        %945 = vmatprep.mubr.bf16.mxu0 0
        %946 = vmatmul.mubr.bf16.gmra.mrb[0].mxu0 %v911
        %v947 = vpop.f32.mrb[0].mxu0
        %v948 = vadd.f32 0.0, %v947
        %v949 = vpop.f32.mrb[0].mxu0
        %v950 = vpop.f32.mrb[0].mxu0
        %v951 = vadd.f32 0.0, %v950
        %v952 = vpop.f32.mrb[0].mxu0
        %953 = vdwg.mxu0
        %v955 = vsel %vm863, %v909, 0
        %957 = vmatprep.subr.bf16.mxu0 0
        %958 = vmatpush1.bf16.msra.mxu0 %v767
        %959 = vmatprep.subr.bf16.mxu0 0
        %960 = vmatpush1.bf16.msra.mxu0 0
        %961 = vmatprep.subr.bf16.mxu0 0
        %962 = vmatpush1.bf16.msra.mxu0 0
        %963 = vmatprep.subr.bf16.mxu0 0
        %964 = vmatpush1.bf16.msra.mxu0 0
        %965 = vmatprep.subr.bf16.mxu0 0
        %966 = vmatpush1.bf16.msra.mxu0 0
        %967 = vmatprep.subr.bf16.mxu0 0
        %968 = vmatpush1.bf16.msra.mxu0 0
        %969 = vmatprep.subr.bf16.mxu0 0
        %970 = vmatpush1.bf16.msra.mxu0 0
        %971 = vmatprep.subr.bf16.mxu0 0
        %972 = vmatpush1.bf16.msra.mxu0 0
        %973 = vmatprep.subr.bf16.mxu0 0
        %974 = vmatpush1.bf16.msra.mxu0 0
        %975 = vmatprep.subr.bf16.mxu0 0
        %976 = vmatpush1.bf16.msra.mxu0 0
        %977 = vmatprep.subr.bf16.mxu0 0
        %978 = vmatpush1.bf16.msra.mxu0 0
        %979 = vmatprep.subr.bf16.mxu0 0
        %980 = vmatpush1.bf16.msra.mxu0 0
        %981 = vmatprep.subr.bf16.mxu0 0
        %982 = vmatpush1.bf16.msra.mxu0 0
        %983 = vmatprep.subr.bf16.mxu0 0
        %984 = vmatpush1.bf16.msra.mxu0 0
        %985 = vmatprep.subr.bf16.mxu0 0
        %986 = vmatpush1.bf16.msra.mxu0 0
        %987 = vmatprep.subr.bf16.mxu0 0
        %988 = vmatpush1.bf16.msra.mxu0 0
        %989 = vmatprep.mubr.bf16.mxu0 0
        %990 = vmatmul.mubr.bf16.gmra.mrb[0].mxu0 %v955
        %v991 = vpop.f32.mrb[0].mxu0
        %v992 = vadd.f32 0.0, %v991
        %v993 = vpop.f32.mrb[0].mxu0
        %v994 = vpop.f32.mrb[0].mxu0
        %v995 = vadd.f32 0.0, %v994
        %v996 = vpop.f32.mrb[0].mxu0
        %997 = vdwg.mxu0
        %999 = vrot.lane.b32.xlu0 %v762, 96
        %v1000 = vpop.permute.xlu0 %999
        %1002 = vrot.lane.b32.xlu0 %v763, 96
        %v1003 = vpop.permute.xlu0 %1002
        %v1005 = vsel %vm768, %v1000, 0
        %v1008 = vsel %vm768, %v1003, 0
        %1010 = vmatprep.subr.bf16.mxu0 0
        %1011 = vmatpush1.bf16.xpose.msra.mxu0 %v1008
        %1012 = vmatprep.subr.bf16.mxu0 0
        %1013 = vmatpush1.bf16.xpose.msra.mxu0 0
        %1014 = vmatprep.subr.bf16.mxu0 0
        %1015 = vmatpush1.bf16.xpose.msra.mxu0 0
        %1016 = vmatprep.subr.bf16.mxu0 0
        %1017 = vmatpush1.bf16.xpose.msra.mxu0 0
        %1018 = vmatprep.subr.bf16.mxu0 0
        %1019 = vmatpush1.bf16.xpose.msra.mxu0 0
        %1020 = vmatprep.subr.bf16.mxu0 0
        %1021 = vmatpush1.bf16.xpose.msra.mxu0 0
        %1022 = vmatprep.subr.bf16.mxu0 0
        %1023 = vmatpush1.bf16.xpose.msra.mxu0 0
        %1024 = vmatprep.subr.bf16.mxu0 0
        %1025 = vmatpush1.bf16.xpose.msra.mxu0 0
        %1026 = vmatprep.subr.bf16.mxu0 0
        %1027 = vmatpush1.bf16.xpose.msra.mxu0 0
        %1028 = vmatprep.subr.bf16.mxu0 0
        %1029 = vmatpush1.bf16.xpose.msra.mxu0 0
        %1030 = vmatprep.subr.bf16.mxu0 0
        %1031 = vmatpush1.bf16.xpose.msra.mxu0 0
        %1032 = vmatprep.subr.bf16.mxu0 0
        %1033 = vmatpush1.bf16.xpose.msra.mxu0 0
        %1034 = vmatprep.subr.bf16.mxu0 0
        %1035 = vmatpush1.bf16.xpose.msra.mxu0 0
        %1036 = vmatprep.subr.bf16.mxu0 0
        %1037 = vmatpush1.bf16.xpose.msra.mxu0 0
        %1038 = vmatprep.subr.bf16.mxu0 0
        %1039 = vmatpush1.bf16.xpose.msra.mxu0 0
        %1040 = vmatprep.subr.bf16.mxu0 0
        %1041 = vmatpush1.bf16.xpose.msra.mxu0 0
        %1042 = vmatprep.mubr.bf16.mxu0 0
        %1043 = vmatmul.mubr.bf16.gmra.mrb[0].mxu0 %v1005
        %v1044 = vpop.f32.mrb[0].mxu0
        %v1045 = vadd.f32 0.0, %v1044
        %v1046 = vpop.f32.mrb[0].mxu0
        %v1047 = vpop.f32.mrb[0].mxu0
        %v1048 = vadd.f32 0.0, %v1047
        %v1049 = vpop.f32.mrb[0].mxu0
        %1050 = vdwg.mxu0
        %1052 = vrot.lane.b32.xlu0 %v765, 96
        %v1053 = vpop.permute.xlu0 %1052
        %1055 = vrot.lane.b32.xlu0 %v766, 96
        %v1056 = vpop.permute.xlu0 %1055
        %v1058 = vsel %vm768, %v1053, 0
        %v1061 = vsel %vm768, %v1056, 0
        %1063 = vmatprep.subr.bf16.mxu0 0
        %1064 = vmatpush1.bf16.xpose.msra.mxu0 %v1061
        %1065 = vmatprep.subr.bf16.mxu0 0
        %1066 = vmatpush1.bf16.xpose.msra.mxu0 0
        %1067 = vmatprep.subr.bf16.mxu0 0
        %1068 = vmatpush1.bf16.xpose.msra.mxu0 0
        %1069 = vmatprep.subr.bf16.mxu0 0
        %1070 = vmatpush1.bf16.xpose.msra.mxu0 0
        %1071 = vmatprep.subr.bf16.mxu0 0
        %1072 = vmatpush1.bf16.xpose.msra.mxu0 0
        %1073 = vmatprep.subr.bf16.mxu0 0
        %1074 = vmatpush1.bf16.xpose.msra.mxu0 0
        %1075 = vmatprep.subr.bf16.mxu0 0
        %1076 = vmatpush1.bf16.xpose.msra.mxu0 0
        %1077 = vmatprep.subr.bf16.mxu0 0
        %1078 = vmatpush1.bf16.xpose.msra.mxu0 0
        %1079 = vmatprep.subr.bf16.mxu0 0
        %1080 = vmatpush1.bf16.xpose.msra.mxu0 0
        %1081 = vmatprep.subr.bf16.mxu0 0
        %1082 = vmatpush1.bf16.xpose.msra.mxu0 0
        %1083 = vmatprep.subr.bf16.mxu0 0
        %1084 = vmatpush1.bf16.xpose.msra.mxu0 0
        %1085 = vmatprep.subr.bf16.mxu0 0
        %1086 = vmatpush1.bf16.xpose.msra.mxu0 0
        %1087 = vmatprep.subr.bf16.mxu0 0
        %1088 = vmatpush1.bf16.xpose.msra.mxu0 0
        %1089 = vmatprep.subr.bf16.mxu0 0
        %1090 = vmatpush1.bf16.xpose.msra.mxu0 0
        %1091 = vmatprep.subr.bf16.mxu0 0
        %1092 = vmatpush1.bf16.xpose.msra.mxu0 0
        %1093 = vmatprep.subr.bf16.mxu0 0
        %1094 = vmatpush1.bf16.xpose.msra.mxu0 0
        %1095 = vmatprep.mubr.bf16.mxu0 0
        %1096 = vmatmul.mubr.bf16.gmra.mrb[0].mxu0 %v1058
        %v1097 = vpop.f32.mrb[0].mxu0
        %v1098 = vadd.f32 0.0, %v1097
        %v1099 = vpop.f32.mrb[0].mxu0
        %v1100 = vpop.f32.mrb[0].mxu0
        %v1101 = vadd.f32 0.0, %v1100
        %v1102 = vpop.f32.mrb[0].mxu0
        %1103 = vdwg.mxu0
        %v1104 = vsel %vm863, %v1045, -inf
        %1105 = vmax.xlane.f32.xlu0 %v1104
        %v1106 = vpop.xlane.xlu0 %1105
        %v1107 = vsel %vm863, %v1048, -inf
        %1108 = vmax.xlane.f32.xlu0 %v1107
        %v1109 = vpop.xlane.xlu0 %1108
        %v1110 = vsel %vm863, %v1098, -inf
        %1111 = vmax.xlane.f32.xlu0 %v1110
        %v1112 = vpop.xlane.xlu0 %1111
        %v1113 = vsel %vm863, %v1101, -inf
        %1114 = vmax.xlane.f32.xlu0 %v1113
        %v1115 = vpop.xlane.xlu0 %1114
        %v1116 = vsub.f32 %v1045, %v1106
        %v1117 = vsub.f32 %v1048, %v1109
        %v1118 = vsub.f32 %v1098, %v1112
        %v1119 = vsub.f32 %v1101, %v1115
        %v1120 = vmul.f32 %v1116, 1.442695
        %v1121 = vpow.pop %v1120
        %v1122 = vmul.f32 %v1117, 1.442695
        %v1123 = vpow.pop %v1122
        %v1124 = vmul.f32 %v1118, 1.442695
        %v1125 = vpow.pop %v1124
        %v1126 = vmul.f32 %v1119, 1.442695
        %v1127 = vpow.pop %v1126
        %v1128 = vsel %vm863, %v1121, 0.0
        %1129 = vadd.xlane.f32.xlu0 %v1128
        %v1130 = vpop.xlane.xlu0 %1129
        %v1131 = vsel %vm863, %v1123, 0.0
        %1132 = vadd.xlane.f32.xlu0 %v1131
        %v1133 = vpop.xlane.xlu0 %1132
        %v1134 = vsel %vm863, %v1125, 0.0
        %1135 = vadd.xlane.f32.xlu0 %v1134
        %v1136 = vpop.xlane.xlu0 %1135
        %v1137 = vsel %vm863, %v1127, 0.0
        %1138 = vadd.xlane.f32.xlu0 %v1137
        %v1139 = vpop.xlane.xlu0 %1138
        %v1140 = vrcp.pop %v1130
        %v1141 = vrcp.pop %v1133
        %v1142 = vrcp.pop %v1136
        %v1143 = vrcp.pop %v1139
        %v1144 = vmul.f32 %v1121, %v1140
        %v1145 = vmul.f32 %v1123, %v1141
        %v1146 = vmul.f32 %v1125, %v1142
        %v1147 = vmul.f32 %v1127, %v1143
        %v1148 = vpack.c.bf16 %v1145, %v1144
        %v1149 = vpack.c.bf16 %v1147, %v1146
        %1151 = vrot.lane.b32.xlu0 %v764, 96
        %v1152 = vpop.permute.xlu0 %1151
        %v1155 = vsel %vm863, %v1148, 0
        %1157 = vmatprep.subr.bf16.mxu0 0
        %1158 = vmatpush1.bf16.msra.mxu0 %v1152
        %1159 = vmatprep.subr.bf16.mxu0 0
        %1160 = vmatpush1.bf16.msra.mxu0 0
        %1161 = vmatprep.subr.bf16.mxu0 0
        %1162 = vmatpush1.bf16.msra.mxu0 0
        %1163 = vmatprep.subr.bf16.mxu0 0
        %1164 = vmatpush1.bf16.msra.mxu0 0
        %1165 = vmatprep.subr.bf16.mxu0 0
        %1166 = vmatpush1.bf16.msra.mxu0 0
        %1167 = vmatprep.subr.bf16.mxu0 0
        %1168 = vmatpush1.bf16.msra.mxu0 0
        %1169 = vmatprep.subr.bf16.mxu0 0
        %1170 = vmatpush1.bf16.msra.mxu0 0
        %1171 = vmatprep.subr.bf16.mxu0 0
        %1172 = vmatpush1.bf16.msra.mxu0 0
        %1173 = vmatprep.subr.bf16.mxu0 0
        %1174 = vmatpush1.bf16.msra.mxu0 0
        %1175 = vmatprep.subr.bf16.mxu0 0
        %1176 = vmatpush1.bf16.msra.mxu0 0
        %1177 = vmatprep.subr.bf16.mxu0 0
        %1178 = vmatpush1.bf16.msra.mxu0 0
        %1179 = vmatprep.subr.bf16.mxu0 0
        %1180 = vmatpush1.bf16.msra.mxu0 0
        %1181 = vmatprep.subr.bf16.mxu0 0
        %1182 = vmatpush1.bf16.msra.mxu0 0
        %1183 = vmatprep.subr.bf16.mxu0 0
        %1184 = vmatpush1.bf16.msra.mxu0 0
        %1185 = vmatprep.subr.bf16.mxu0 0
        %1186 = vmatpush1.bf16.msra.mxu0 0
        %1187 = vmatprep.subr.bf16.mxu0 0
        %1188 = vmatpush1.bf16.msra.mxu0 0
        %1189 = vmatprep.mubr.bf16.mxu0 0
        %1190 = vmatmul.mubr.bf16.gmra.mrb[0].mxu0 %v1155
        %v1191 = vpop.f32.mrb[0].mxu0
        %v1192 = vadd.f32 0.0, %v1191
        %v1193 = vpop.f32.mrb[0].mxu0
        %v1194 = vpop.f32.mrb[0].mxu0
        %v1195 = vadd.f32 0.0, %v1194
        %v1196 = vpop.f32.mrb[0].mxu0
        %1197 = vdwg.mxu0
        %1199 = vrot.lane.b32.xlu0 %v767, 96
        %v1200 = vpop.permute.xlu0 %1199
        %v1203 = vsel %vm863, %v1149, 0
        %1205 = vmatprep.subr.bf16.mxu0 0
        %1206 = vmatpush1.bf16.msra.mxu0 %v1200
        %1207 = vmatprep.subr.bf16.mxu0 0
        %1208 = vmatpush1.bf16.msra.mxu0 0
        %1209 = vmatprep.subr.bf16.mxu0 0
        %1210 = vmatpush1.bf16.msra.mxu0 0
        %1211 = vmatprep.subr.bf16.mxu0 0
        %1212 = vmatpush1.bf16.msra.mxu0 0
        %1213 = vmatprep.subr.bf16.mxu0 0
        %1214 = vmatpush1.bf16.msra.mxu0 0
        %1215 = vmatprep.subr.bf16.mxu0 0
        %1216 = vmatpush1.bf16.msra.mxu0 0
        %1217 = vmatprep.subr.bf16.mxu0 0
        %1218 = vmatpush1.bf16.msra.mxu0 0
        %1219 = vmatprep.subr.bf16.mxu0 0
        %1220 = vmatpush1.bf16.msra.mxu0 0
        %1221 = vmatprep.subr.bf16.mxu0 0
        %1222 = vmatpush1.bf16.msra.mxu0 0
        %1223 = vmatprep.subr.bf16.mxu0 0
        %1224 = vmatpush1.bf16.msra.mxu0 0
        %1225 = vmatprep.subr.bf16.mxu0 0
        %1226 = vmatpush1.bf16.msra.mxu0 0
        %1227 = vmatprep.subr.bf16.mxu0 0
        %1228 = vmatpush1.bf16.msra.mxu0 0
        %1229 = vmatprep.subr.bf16.mxu0 0
        %1230 = vmatpush1.bf16.msra.mxu0 0
        %1231 = vmatprep.subr.bf16.mxu0 0
        %1232 = vmatpush1.bf16.msra.mxu0 0
        %1233 = vmatprep.subr.bf16.mxu0 0
        %1234 = vmatpush1.bf16.msra.mxu0 0
        %1235 = vmatprep.subr.bf16.mxu0 0
        %1236 = vmatpush1.bf16.msra.mxu0 0
        %1237 = vmatprep.mubr.bf16.mxu0 0
        %1238 = vmatmul.mubr.bf16.gmra.mrb[0].mxu0 %v1203
        %v1239 = vpop.f32.mrb[0].mxu0
        %v1240 = vadd.f32 0.0, %v1239
        %v1241 = vpop.f32.mrb[0].mxu0
        %v1242 = vpop.f32.mrb[0].mxu0
        %v1243 = vadd.f32 0.0, %v1242
        %v1244 = vpop.f32.mrb[0].mxu0
        %1245 = vdwg.mxu0
        %1246 = vrot.lane.b32.xlu0 %v762, 64
        %v1247 = vpop.permute.xlu0 %1246
        %1248 = vrot.lane.b32.xlu0 %v763, 64
        %v1249 = vpop.permute.xlu0 %1248
        %v1251 = vsel %vm768, %v1247, 0
        %v1254 = vsel %vm768, %v1249, 0
        %1256 = vmatprep.subr.bf16.mxu0 0
        %1257 = vmatpush1.bf16.xpose.msra.mxu0 %v1254
        %1258 = vmatprep.subr.bf16.mxu0 0
        %1259 = vmatpush1.bf16.xpose.msra.mxu0 0
        %1260 = vmatprep.subr.bf16.mxu0 0
        %1261 = vmatpush1.bf16.xpose.msra.mxu0 0
        %1262 = vmatprep.subr.bf16.mxu0 0
        %1263 = vmatpush1.bf16.xpose.msra.mxu0 0
        %1264 = vmatprep.subr.bf16.mxu0 0
        %1265 = vmatpush1.bf16.xpose.msra.mxu0 0
        %1266 = vmatprep.subr.bf16.mxu0 0
        %1267 = vmatpush1.bf16.xpose.msra.mxu0 0
        %1268 = vmatprep.subr.bf16.mxu0 0
        %1269 = vmatpush1.bf16.xpose.msra.mxu0 0
        %1270 = vmatprep.subr.bf16.mxu0 0
        %1271 = vmatpush1.bf16.xpose.msra.mxu0 0
        %1272 = vmatprep.subr.bf16.mxu0 0
        %1273 = vmatpush1.bf16.xpose.msra.mxu0 0
        %1274 = vmatprep.subr.bf16.mxu0 0
        %1275 = vmatpush1.bf16.xpose.msra.mxu0 0
        %1276 = vmatprep.subr.bf16.mxu0 0
        %1277 = vmatpush1.bf16.xpose.msra.mxu0 0
        %1278 = vmatprep.subr.bf16.mxu0 0
        %1279 = vmatpush1.bf16.xpose.msra.mxu0 0
        %1280 = vmatprep.subr.bf16.mxu0 0
        %1281 = vmatpush1.bf16.xpose.msra.mxu0 0
        %1282 = vmatprep.subr.bf16.mxu0 0
        %1283 = vmatpush1.bf16.xpose.msra.mxu0 0
        %1284 = vmatprep.subr.bf16.mxu0 0
        %1285 = vmatpush1.bf16.xpose.msra.mxu0 0
        %1286 = vmatprep.subr.bf16.mxu0 0
        %1287 = vmatpush1.bf16.xpose.msra.mxu0 0
        %1288 = vmatprep.mubr.bf16.mxu0 0
        %1289 = vmatmul.mubr.bf16.gmra.mrb[0].mxu0 %v1251
        %v1290 = vpop.f32.mrb[0].mxu0
        %v1291 = vadd.f32 0.0, %v1290
        %v1292 = vpop.f32.mrb[0].mxu0
        %v1293 = vpop.f32.mrb[0].mxu0
        %v1294 = vadd.f32 0.0, %v1293
        %v1295 = vpop.f32.mrb[0].mxu0
        %1296 = vdwg.mxu0
        %1297 = vrot.lane.b32.xlu0 %v765, 64
        %v1298 = vpop.permute.xlu0 %1297
        %1299 = vrot.lane.b32.xlu0 %v766, 64
        %v1300 = vpop.permute.xlu0 %1299
        %v1302 = vsel %vm768, %v1298, 0
        %v1305 = vsel %vm768, %v1300, 0
        %1307 = vmatprep.subr.bf16.mxu0 0
        %1308 = vmatpush1.bf16.xpose.msra.mxu0 %v1305
        %1309 = vmatprep.subr.bf16.mxu0 0
        %1310 = vmatpush1.bf16.xpose.msra.mxu0 0
        %1311 = vmatprep.subr.bf16.mxu0 0
        %1312 = vmatpush1.bf16.xpose.msra.mxu0 0
        %1313 = vmatprep.subr.bf16.mxu0 0
        %1314 = vmatpush1.bf16.xpose.msra.mxu0 0
        %1315 = vmatprep.subr.bf16.mxu0 0
        %1316 = vmatpush1.bf16.xpose.msra.mxu0 0
        %1317 = vmatprep.subr.bf16.mxu0 0
        %1318 = vmatpush1.bf16.xpose.msra.mxu0 0
        %1319 = vmatprep.subr.bf16.mxu0 0
        %1320 = vmatpush1.bf16.xpose.msra.mxu0 0
        %1321 = vmatprep.subr.bf16.mxu0 0
        %1322 = vmatpush1.bf16.xpose.msra.mxu0 0
        %1323 = vmatprep.subr.bf16.mxu0 0
        %1324 = vmatpush1.bf16.xpose.msra.mxu0 0
        %1325 = vmatprep.subr.bf16.mxu0 0
        %1326 = vmatpush1.bf16.xpose.msra.mxu0 0
        %1327 = vmatprep.subr.bf16.mxu0 0
        %1328 = vmatpush1.bf16.xpose.msra.mxu0 0
        %1329 = vmatprep.subr.bf16.mxu0 0
        %1330 = vmatpush1.bf16.xpose.msra.mxu0 0
        %1331 = vmatprep.subr.bf16.mxu0 0
        %1332 = vmatpush1.bf16.xpose.msra.mxu0 0
        %1333 = vmatprep.subr.bf16.mxu0 0
        %1334 = vmatpush1.bf16.xpose.msra.mxu0 0
        %1335 = vmatprep.subr.bf16.mxu0 0
        %1336 = vmatpush1.bf16.xpose.msra.mxu0 0
        %1337 = vmatprep.subr.bf16.mxu0 0
        %1338 = vmatpush1.bf16.xpose.msra.mxu0 0
        %1339 = vmatprep.mubr.bf16.mxu0 0
        %1340 = vmatmul.mubr.bf16.gmra.mrb[0].mxu0 %v1302
        %v1341 = vpop.f32.mrb[0].mxu0
        %v1342 = vadd.f32 0.0, %v1341
        %v1343 = vpop.f32.mrb[0].mxu0
        %v1344 = vpop.f32.mrb[0].mxu0
        %v1345 = vadd.f32 0.0, %v1344
        %v1346 = vpop.f32.mrb[0].mxu0
        %1347 = vdwg.mxu0
        %v1348 = vsel %vm863, %v1291, -inf
        %1349 = vmax.xlane.f32.xlu0 %v1348
        %v1350 = vpop.xlane.xlu0 %1349
        %v1351 = vsel %vm863, %v1294, -inf
        %1352 = vmax.xlane.f32.xlu0 %v1351
        %v1353 = vpop.xlane.xlu0 %1352
        %v1354 = vsel %vm863, %v1342, -inf
        %1355 = vmax.xlane.f32.xlu0 %v1354
        %v1356 = vpop.xlane.xlu0 %1355
        %v1357 = vsel %vm863, %v1345, -inf
        %1358 = vmax.xlane.f32.xlu0 %v1357
        %v1359 = vpop.xlane.xlu0 %1358
        %v1360 = vsub.f32 %v1291, %v1350
        %v1361 = vsub.f32 %v1294, %v1353
        %v1362 = vsub.f32 %v1342, %v1356
        %v1363 = vsub.f32 %v1345, %v1359
        %v1364 = vmul.f32 %v1360, 1.442695
        %v1365 = vpow.pop %v1364
        %v1366 = vmul.f32 %v1361, 1.442695
        %v1367 = vpow.pop %v1366
        %v1368 = vmul.f32 %v1362, 1.442695
        %v1369 = vpow.pop %v1368
        %v1370 = vmul.f32 %v1363, 1.442695
        %v1371 = vpow.pop %v1370
        %v1372 = vsel %vm863, %v1365, 0.0
        %1373 = vadd.xlane.f32.xlu0 %v1372
        %v1374 = vpop.xlane.xlu0 %1373
        %v1375 = vsel %vm863, %v1367, 0.0
        %1376 = vadd.xlane.f32.xlu0 %v1375
        %v1377 = vpop.xlane.xlu0 %1376
        %v1378 = vsel %vm863, %v1369, 0.0
        %1379 = vadd.xlane.f32.xlu0 %v1378
        %v1380 = vpop.xlane.xlu0 %1379
        %v1381 = vsel %vm863, %v1371, 0.0
        %1382 = vadd.xlane.f32.xlu0 %v1381
        %v1383 = vpop.xlane.xlu0 %1382
        %v1384 = vrcp.pop %v1374
        %v1385 = vrcp.pop %v1377
        %v1386 = vrcp.pop %v1380
        %v1387 = vrcp.pop %v1383
        %v1388 = vmul.f32 %v1365, %v1384
        %v1389 = vmul.f32 %v1367, %v1385
        %v1390 = vmul.f32 %v1369, %v1386
        %v1391 = vmul.f32 %v1371, %v1387
        %v1392 = vpack.c.bf16 %v1389, %v1388
        %v1393 = vpack.c.bf16 %v1391, %v1390
        %1394 = vrot.lane.b32.xlu0 %v764, 64
        %v1395 = vpop.permute.xlu0 %1394
        %v1398 = vsel %vm863, %v1392, 0
        %1400 = vmatprep.subr.bf16.mxu0 0
        %1401 = vmatpush1.bf16.msra.mxu0 %v1395
        %1402 = vmatprep.subr.bf16.mxu0 0
        %1403 = vmatpush1.bf16.msra.mxu0 0
        %1404 = vmatprep.subr.bf16.mxu0 0
        %1405 = vmatpush1.bf16.msra.mxu0 0
        %1406 = vmatprep.subr.bf16.mxu0 0
        %1407 = vmatpush1.bf16.msra.mxu0 0
        %1408 = vmatprep.subr.bf16.mxu0 0
        %1409 = vmatpush1.bf16.msra.mxu0 0
        %1410 = vmatprep.subr.bf16.mxu0 0
        %1411 = vmatpush1.bf16.msra.mxu0 0
        %1412 = vmatprep.subr.bf16.mxu0 0
        %1413 = vmatpush1.bf16.msra.mxu0 0
        %1414 = vmatprep.subr.bf16.mxu0 0
        %1415 = vmatpush1.bf16.msra.mxu0 0
        %1416 = vmatprep.subr.bf16.mxu0 0
        %1417 = vmatpush1.bf16.msra.mxu0 0
        %1418 = vmatprep.subr.bf16.mxu0 0
        %1419 = vmatpush1.bf16.msra.mxu0 0
        %1420 = vmatprep.subr.bf16.mxu0 0
        %1421 = vmatpush1.bf16.msra.mxu0 0
        %1422 = vmatprep.subr.bf16.mxu0 0
        %1423 = vmatpush1.bf16.msra.mxu0 0
        %1424 = vmatprep.subr.bf16.mxu0 0
        %1425 = vmatpush1.bf16.msra.mxu0 0
        %1426 = vmatprep.subr.bf16.mxu0 0
        %1427 = vmatpush1.bf16.msra.mxu0 0
        %1428 = vmatprep.subr.bf16.mxu0 0
        %1429 = vmatpush1.bf16.msra.mxu0 0
        %1430 = vmatprep.subr.bf16.mxu0 0
        %1431 = vmatpush1.bf16.msra.mxu0 0
        %1432 = vmatprep.mubr.bf16.mxu0 0
        %1433 = vmatmul.mubr.bf16.gmra.mrb[0].mxu0 %v1398
        %v1434 = vpop.f32.mrb[0].mxu0
        %v1435 = vadd.f32 0.0, %v1434
        %v1436 = vpop.f32.mrb[0].mxu0
        %v1437 = vpop.f32.mrb[0].mxu0
        %v1438 = vadd.f32 0.0, %v1437
        %v1439 = vpop.f32.mrb[0].mxu0
        %1440 = vdwg.mxu0
        %1441 = vrot.lane.b32.xlu0 %v767, 64
        %v1442 = vpop.permute.xlu0 %1441
        %v1445 = vsel %vm863, %v1393, 0
        %1447 = vmatprep.subr.bf16.mxu0 0
        %1448 = vmatpush1.bf16.msra.mxu0 %v1442
        %1449 = vmatprep.subr.bf16.mxu0 0
        %1450 = vmatpush1.bf16.msra.mxu0 0
        %1451 = vmatprep.subr.bf16.mxu0 0
        %1452 = vmatpush1.bf16.msra.mxu0 0
        %1453 = vmatprep.subr.bf16.mxu0 0
        %1454 = vmatpush1.bf16.msra.mxu0 0
        %1455 = vmatprep.subr.bf16.mxu0 0
        %1456 = vmatpush1.bf16.msra.mxu0 0
        %1457 = vmatprep.subr.bf16.mxu0 0
        %1458 = vmatpush1.bf16.msra.mxu0 0
        %1459 = vmatprep.subr.bf16.mxu0 0
        %1460 = vmatpush1.bf16.msra.mxu0 0
        %1461 = vmatprep.subr.bf16.mxu0 0
        %1462 = vmatpush1.bf16.msra.mxu0 0
        %1463 = vmatprep.subr.bf16.mxu0 0
        %1464 = vmatpush1.bf16.msra.mxu0 0
        %1465 = vmatprep.subr.bf16.mxu0 0
        %1466 = vmatpush1.bf16.msra.mxu0 0
        %1467 = vmatprep.subr.bf16.mxu0 0
        %1468 = vmatpush1.bf16.msra.mxu0 0
        %1469 = vmatprep.subr.bf16.mxu0 0
        %1470 = vmatpush1.bf16.msra.mxu0 0
        %1471 = vmatprep.subr.bf16.mxu0 0
        %1472 = vmatpush1.bf16.msra.mxu0 0
        %1473 = vmatprep.subr.bf16.mxu0 0
        %1474 = vmatpush1.bf16.msra.mxu0 0
        %1475 = vmatprep.subr.bf16.mxu0 0
        %1476 = vmatpush1.bf16.msra.mxu0 0
        %1477 = vmatprep.subr.bf16.mxu0 0
        %1478 = vmatpush1.bf16.msra.mxu0 0
        %1479 = vmatprep.mubr.bf16.mxu0 0
        %1480 = vmatmul.mubr.bf16.gmra.mrb[0].mxu0 %v1445
        %v1481 = vpop.f32.mrb[0].mxu0
        %v1482 = vadd.f32 0.0, %v1481
        %v1483 = vpop.f32.mrb[0].mxu0
        %v1484 = vpop.f32.mrb[0].mxu0
        %v1485 = vadd.f32 0.0, %v1484
        %v1486 = vpop.f32.mrb[0].mxu0
        %1487 = vdwg.mxu0
        %1488 = vrot.lane.b32.xlu0 %v762, 32
        %v1489 = vpop.permute.xlu0 %1488
        %1490 = vrot.lane.b32.xlu0 %v763, 32
        %v1491 = vpop.permute.xlu0 %1490
        %v1493 = vsel %vm768, %v1489, 0
        %v1496 = vsel %vm768, %v1491, 0
        %1498 = vmatprep.subr.bf16.mxu0 0
        %1499 = vmatpush1.bf16.xpose.msra.mxu0 %v1496
        %1500 = vmatprep.subr.bf16.mxu0 0
        %1501 = vmatpush1.bf16.xpose.msra.mxu0 0
        %1502 = vmatprep.subr.bf16.mxu0 0
        %1503 = vmatpush1.bf16.xpose.msra.mxu0 0
        %1504 = vmatprep.subr.bf16.mxu0 0
        %1505 = vmatpush1.bf16.xpose.msra.mxu0 0
        %1506 = vmatprep.subr.bf16.mxu0 0
        %1507 = vmatpush1.bf16.xpose.msra.mxu0 0
        %1508 = vmatprep.subr.bf16.mxu0 0
        %1509 = vmatpush1.bf16.xpose.msra.mxu0 0
        %1510 = vmatprep.subr.bf16.mxu0 0
        %1511 = vmatpush1.bf16.xpose.msra.mxu0 0
        %1512 = vmatprep.subr.bf16.mxu0 0
        %1513 = vmatpush1.bf16.xpose.msra.mxu0 0
        %1514 = vmatprep.subr.bf16.mxu0 0
        %1515 = vmatpush1.bf16.xpose.msra.mxu0 0
        %1516 = vmatprep.subr.bf16.mxu0 0
        %1517 = vmatpush1.bf16.xpose.msra.mxu0 0
        %1518 = vmatprep.subr.bf16.mxu0 0
        %1519 = vmatpush1.bf16.xpose.msra.mxu0 0
        %1520 = vmatprep.subr.bf16.mxu0 0
        %1521 = vmatpush1.bf16.xpose.msra.mxu0 0
        %1522 = vmatprep.subr.bf16.mxu0 0
        %1523 = vmatpush1.bf16.xpose.msra.mxu0 0
        %1524 = vmatprep.subr.bf16.mxu0 0
        %1525 = vmatpush1.bf16.xpose.msra.mxu0 0
        %1526 = vmatprep.subr.bf16.mxu0 0
        %1527 = vmatpush1.bf16.xpose.msra.mxu0 0
        %1528 = vmatprep.subr.bf16.mxu0 0
        %1529 = vmatpush1.bf16.xpose.msra.mxu0 0
        %1530 = vmatprep.mubr.bf16.mxu0 0
        %1531 = vmatmul.mubr.bf16.gmra.mrb[0].mxu0 %v1493
        %v1532 = vpop.f32.mrb[0].mxu0
        %v1533 = vadd.f32 0.0, %v1532
        %v1534 = vpop.f32.mrb[0].mxu0
        %v1535 = vpop.f32.mrb[0].mxu0
        %v1536 = vadd.f32 0.0, %v1535
        %v1537 = vpop.f32.mrb[0].mxu0
        %1538 = vdwg.mxu0
        %1539 = vrot.lane.b32.xlu0 %v765, 32
        %v1540 = vpop.permute.xlu0 %1539
        %1541 = vrot.lane.b32.xlu0 %v766, 32
        %v1542 = vpop.permute.xlu0 %1541
        %v1544 = vsel %vm768, %v1540, 0
        %v1547 = vsel %vm768, %v1542, 0
        %1549 = vmatprep.subr.bf16.mxu0 0
        %1550 = vmatpush1.bf16.xpose.msra.mxu0 %v1547
        %1551 = vmatprep.subr.bf16.mxu0 0
        %1552 = vmatpush1.bf16.xpose.msra.mxu0 0
        %1553 = vmatprep.subr.bf16.mxu0 0
        %1554 = vmatpush1.bf16.xpose.msra.mxu0 0
        %1555 = vmatprep.subr.bf16.mxu0 0
        %1556 = vmatpush1.bf16.xpose.msra.mxu0 0
        %1557 = vmatprep.subr.bf16.mxu0 0
        %1558 = vmatpush1.bf16.xpose.msra.mxu0 0
        %1559 = vmatprep.subr.bf16.mxu0 0
        %1560 = vmatpush1.bf16.xpose.msra.mxu0 0
        %1561 = vmatprep.subr.bf16.mxu0 0
        %1562 = vmatpush1.bf16.xpose.msra.mxu0 0
        %1563 = vmatprep.subr.bf16.mxu0 0
        %1564 = vmatpush1.bf16.xpose.msra.mxu0 0
        %1565 = vmatprep.subr.bf16.mxu0 0
        %1566 = vmatpush1.bf16.xpose.msra.mxu0 0
        %1567 = vmatprep.subr.bf16.mxu0 0
        %1568 = vmatpush1.bf16.xpose.msra.mxu0 0
        %1569 = vmatprep.subr.bf16.mxu0 0
        %1570 = vmatpush1.bf16.xpose.msra.mxu0 0
        %1571 = vmatprep.subr.bf16.mxu0 0
        %1572 = vmatpush1.bf16.xpose.msra.mxu0 0
        %1573 = vmatprep.subr.bf16.mxu0 0
        %1574 = vmatpush1.bf16.xpose.msra.mxu0 0
        %1575 = vmatprep.subr.bf16.mxu0 0
        %1576 = vmatpush1.bf16.xpose.msra.mxu0 0
        %1577 = vmatprep.subr.bf16.mxu0 0
        %1578 = vmatpush1.bf16.xpose.msra.mxu0 0
        %1579 = vmatprep.subr.bf16.mxu0 0
        %1580 = vmatpush1.bf16.xpose.msra.mxu0 0
        %1581 = vmatprep.mubr.bf16.mxu0 0
        %1582 = vmatmul.mubr.bf16.gmra.mrb[0].mxu0 %v1544
        %v1583 = vpop.f32.mrb[0].mxu0
        %v1584 = vadd.f32 0.0, %v1583
        %v1585 = vpop.f32.mrb[0].mxu0
        %v1586 = vpop.f32.mrb[0].mxu0
        %v1587 = vadd.f32 0.0, %v1586
        %v1588 = vpop.f32.mrb[0].mxu0
        %1589 = vdwg.mxu0
        %v1590 = vsel %vm863, %v1533, -inf
        %1591 = vmax.xlane.f32.xlu0 %v1590
        %v1592 = vpop.xlane.xlu0 %1591
        %v1593 = vsel %vm863, %v1536, -inf
        %1594 = vmax.xlane.f32.xlu0 %v1593
        %v1595 = vpop.xlane.xlu0 %1594
        %v1596 = vsel %vm863, %v1584, -inf
        %1597 = vmax.xlane.f32.xlu0 %v1596
        %v1598 = vpop.xlane.xlu0 %1597
        %v1599 = vsel %vm863, %v1587, -inf
        %1600 = vmax.xlane.f32.xlu0 %v1599
        %v1601 = vpop.xlane.xlu0 %1600
        %v1602 = vsub.f32 %v1533, %v1592
        %v1603 = vsub.f32 %v1536, %v1595
        %v1604 = vsub.f32 %v1584, %v1598
        %v1605 = vsub.f32 %v1587, %v1601
        %v1606 = vmul.f32 %v1602, 1.442695
        %v1607 = vpow.pop %v1606
        %v1608 = vmul.f32 %v1603, 1.442695
        %v1609 = vpow.pop %v1608
        %v1610 = vmul.f32 %v1604, 1.442695
        %v1611 = vpow.pop %v1610
        %v1612 = vmul.f32 %v1605, 1.442695
        %v1613 = vpow.pop %v1612
        %v1614 = vsel %vm863, %v1607, 0.0
        %1615 = vadd.xlane.f32.xlu0 %v1614
        %v1616 = vpop.xlane.xlu0 %1615
        %v1617 = vsel %vm863, %v1609, 0.0
        %1618 = vadd.xlane.f32.xlu0 %v1617
        %v1619 = vpop.xlane.xlu0 %1618
        %v1620 = vsel %vm863, %v1611, 0.0
        %1621 = vadd.xlane.f32.xlu0 %v1620
        %v1622 = vpop.xlane.xlu0 %1621
        %v1623 = vsel %vm863, %v1613, 0.0
        %1624 = vadd.xlane.f32.xlu0 %v1623
        %v1625 = vpop.xlane.xlu0 %1624
        %v1626 = vrcp.pop %v1616
        %v1627 = vrcp.pop %v1619
        %v1628 = vrcp.pop %v1622
        %v1629 = vrcp.pop %v1625
        %v1630 = vmul.f32 %v1607, %v1626
        %v1631 = vmul.f32 %v1609, %v1627
        %v1632 = vmul.f32 %v1611, %v1628
        %v1633 = vmul.f32 %v1613, %v1629
        %v1634 = vpack.c.bf16 %v1631, %v1630
        %v1635 = vpack.c.bf16 %v1633, %v1632
        %1636 = vrot.lane.b32.xlu0 %v764, 32
        %v1637 = vpop.permute.xlu0 %1636
        %v1640 = vsel %vm863, %v1634, 0
        %1642 = vmatprep.subr.bf16.mxu0 0
        %1643 = vmatpush1.bf16.msra.mxu0 %v1637
        %1644 = vmatprep.subr.bf16.mxu0 0
        %1645 = vmatpush1.bf16.msra.mxu0 0
        %1646 = vmatprep.subr.bf16.mxu0 0
        %1647 = vmatpush1.bf16.msra.mxu0 0
        %1648 = vmatprep.subr.bf16.mxu0 0
        %1649 = vmatpush1.bf16.msra.mxu0 0
        %1650 = vmatprep.subr.bf16.mxu0 0
        %1651 = vmatpush1.bf16.msra.mxu0 0
        %1652 = vmatprep.subr.bf16.mxu0 0
        %1653 = vmatpush1.bf16.msra.mxu0 0
        %1654 = vmatprep.subr.bf16.mxu0 0
        %1655 = vmatpush1.bf16.msra.mxu0 0
        %1656 = vmatprep.subr.bf16.mxu0 0
        %1657 = vmatpush1.bf16.msra.mxu0 0
        %1658 = vmatprep.subr.bf16.mxu0 0
        %1659 = vmatpush1.bf16.msra.mxu0 0
        %1660 = vmatprep.subr.bf16.mxu0 0
        %1661 = vmatpush1.bf16.msra.mxu0 0
        %1662 = vmatprep.subr.bf16.mxu0 0
        %1663 = vmatpush1.bf16.msra.mxu0 0
        %1664 = vmatprep.subr.bf16.mxu0 0
        %1665 = vmatpush1.bf16.msra.mxu0 0
        %1666 = vmatprep.subr.bf16.mxu0 0
        %1667 = vmatpush1.bf16.msra.mxu0 0
        %1668 = vmatprep.subr.bf16.mxu0 0
        %1669 = vmatpush1.bf16.msra.mxu0 0
        %1670 = vmatprep.subr.bf16.mxu0 0
        %1671 = vmatpush1.bf16.msra.mxu0 0
        %1672 = vmatprep.subr.bf16.mxu0 0
        %1673 = vmatpush1.bf16.msra.mxu0 0
        %1674 = vmatprep.mubr.bf16.mxu0 0
        %1675 = vmatmul.mubr.bf16.gmra.mrb[0].mxu0 %v1640
        %v1676 = vpop.f32.mrb[0].mxu0
        %v1677 = vadd.f32 0.0, %v1676
        %v1678 = vpop.f32.mrb[0].mxu0
        %v1679 = vpop.f32.mrb[0].mxu0
        %v1680 = vadd.f32 0.0, %v1679
        %v1681 = vpop.f32.mrb[0].mxu0
        %1682 = vdwg.mxu0
        %1683 = vrot.lane.b32.xlu0 %v767, 32
        %v1684 = vpop.permute.xlu0 %1683
        %v1687 = vsel %vm863, %v1635, 0
        %1689 = vmatprep.subr.bf16.mxu0 0
        %1690 = vmatpush1.bf16.msra.mxu0 %v1684
        %1691 = vmatprep.subr.bf16.mxu0 0
        %1692 = vmatpush1.bf16.msra.mxu0 0
        %1693 = vmatprep.subr.bf16.mxu0 0
        %1694 = vmatpush1.bf16.msra.mxu0 0
        %1695 = vmatprep.subr.bf16.mxu0 0
        %1696 = vmatpush1.bf16.msra.mxu0 0
        %1697 = vmatprep.subr.bf16.mxu0 0
        %1698 = vmatpush1.bf16.msra.mxu0 0
        %1699 = vmatprep.subr.bf16.mxu0 0
        %1700 = vmatpush1.bf16.msra.mxu0 0
        %1701 = vmatprep.subr.bf16.mxu0 0
        %1702 = vmatpush1.bf16.msra.mxu0 0
        %1703 = vmatprep.subr.bf16.mxu0 0
        %1704 = vmatpush1.bf16.msra.mxu0 0
        %1705 = vmatprep.subr.bf16.mxu0 0
        %1706 = vmatpush1.bf16.msra.mxu0 0
        %1707 = vmatprep.subr.bf16.mxu0 0
        %1708 = vmatpush1.bf16.msra.mxu0 0
        %1709 = vmatprep.subr.bf16.mxu0 0
        %1710 = vmatpush1.bf16.msra.mxu0 0
        %1711 = vmatprep.subr.bf16.mxu0 0
        %1712 = vmatpush1.bf16.msra.mxu0 0
        %1713 = vmatprep.subr.bf16.mxu0 0
        %1714 = vmatpush1.bf16.msra.mxu0 0
        %1715 = vmatprep.subr.bf16.mxu0 0
        %1716 = vmatpush1.bf16.msra.mxu0 0
        %1717 = vmatprep.subr.bf16.mxu0 0
        %1718 = vmatpush1.bf16.msra.mxu0 0
        %1719 = vmatprep.subr.bf16.mxu0 0
        %1720 = vmatpush1.bf16.msra.mxu0 0
        %1721 = vmatprep.mubr.bf16.mxu0 0
        %1722 = vmatmul.mubr.bf16.gmra.mrb[0].mxu0 %v1687
        %v1723 = vpop.f32.mrb[0].mxu0
        %v1724 = vadd.f32 0.0, %v1723
        %v1725 = vpop.f32.mrb[0].mxu0
        %v1726 = vpop.f32.mrb[0].mxu0
        %v1727 = vadd.f32 0.0, %v1726
        %v1728 = vpop.f32.mrb[0].mxu0
        %1729 = vdwg.mxu0
        %1734 = vrot.lane.b32.xlu0 %v1192, 32
        %v1735 = vpop.permute.xlu0 %1734
        %1736 = vrot.lane.b32.xlu0 %v1195, 32
        %v1737 = vpop.permute.xlu0 %1736
        %1738 = vrot.lane.b32.xlu0 %v1240, 32
        %v1739 = vpop.permute.xlu0 %1738
        %1740 = vrot.lane.b32.xlu0 %v1243, 32
        %v1741 = vpop.permute.xlu0 %1740
        %1750 = vrot.lane.b32.xlu0 %v1435, 64
        %v1751 = vpop.permute.xlu0 %1750
        %1752 = vrot.lane.b32.xlu0 %v1438, 64
        %v1753 = vpop.permute.xlu0 %1752
        %1754 = vrot.lane.b32.xlu0 %v1482, 64
        %v1755 = vpop.permute.xlu0 %1754
        %1756 = vrot.lane.b32.xlu0 %v1485, 64
        %v1757 = vpop.permute.xlu0 %1756
        %1766 = vrot.lane.b32.xlu0 %v1677, 96
        %v1767 = vpop.permute.xlu0 %1766
        %1768 = vrot.lane.b32.xlu0 %v1680, 96
        %v1769 = vpop.permute.xlu0 %1768
        %1770 = vrot.lane.b32.xlu0 %v1724, 96
        %v1771 = vpop.permute.xlu0 %1770
        %1772 = vrot.lane.b32.xlu0 %v1727, 96
        %v1773 = vpop.permute.xlu0 %1772
        %v1778 = vsel %vm768, %v948, %v1735
        %v1779 = vsel %vm768, %v951, %v1737
        %v1780 = vsel %vm768, %v992, %v1739
        %v1781 = vsel %vm768, %v995, %v1741
        %vm1782 = vcmask 523264
        %v1783 = vsel %vm1782, %v1778, %v1751
        %v1784 = vsel %vm1782, %v1779, %v1753
        %v1785 = vsel %vm1782, %v1780, %v1755
        %v1786 = vsel %vm1782, %v1781, %v1757
        %vm1787 = vcmask 785408
        %v1788 = vsel %vm1787, %v1783, %v1767
        %v1789 = vsel %vm1787, %v1784, %v1769
        %v1790 = vsel %vm1787, %v1785, %v1771
        %v1791 = vsel %vm1787, %v1786, %v1773
        %v1792 = vpack.c.bf16 %v1789, %v1788
        %v1793 = vpack.c.bf16 %v1791, %v1790
        %v1794 = vld [vmem:[#allocation7] sm:$0xf]
        %v1795 = vld [vmem:[#allocation7 + $0x4] sm:$0xf]
        %v1796 = vld [vmem:[#allocation7 + $0x8] sm:$0xf]
        %v1797 = vld [vmem:[#allocation7 + $0xc] sm:$0xf]
        %v1798 = vld [vmem:[#allocation7 + $0x10] sm:$0xf]
        %v1799 = vld [vmem:[#allocation7 + $0x14] sm:$0xf]
        %v1800 = vld [vmem:[#allocation7 + $0x18] sm:$0xf]
        %v1801 = vld [vmem:[#allocation7 + $0x1c] sm:$0xf]
        %v1802 = vld [vmem:[#allocation7 + $0x20] sm:$0xf]
        %v1803 = vld [vmem:[#allocation7 + $0x24] sm:$0xf]
        %v1804 = vld [vmem:[#allocation7 + $0x28] sm:$0xf]
        %v1805 = vld [vmem:[#allocation7 + $0x2c] sm:$0xf]
        %v1806 = vld [vmem:[#allocation7 + $0x30] sm:$0xf]
        %v1807 = vld [vmem:[#allocation7 + $0x34] sm:$0xf]
        %v1808 = vld [vmem:[#allocation7 + $0x38] sm:$0xf]
        %v1809 = vld [vmem:[#allocation7 + $0x3c] sm:$0xf]
        %v1810 = vld [vmem:[%s3] sm:$0x1]
        %v1812 = vlaneseq
        %v1813 = vshrl.u32 %v1812, 7
        %v1814 = vsub.s32 0, %v1813
        %v1815 = vrot.slane %v1810, %v1814
        %v1833 = vunpack.c.l.b16 %v1794
        %v1834 = vunpack.c.l.b16 %v1795
        %v1835 = vunpack.c.l.b16 %v1796
        %v1836 = vunpack.c.l.b16 %v1797
        %v1837 = vunpack.c.l.b16 %v1798
        %v1838 = vunpack.c.l.b16 %v1799
        %v1839 = vunpack.c.l.b16 %v1800
        %v1840 = vunpack.c.l.b16 %v1801
        %v1841 = vunpack.c.l.b16 %v1802
        %v1842 = vunpack.c.l.b16 %v1803
        %v1843 = vunpack.c.l.b16 %v1804
        %v1844 = vunpack.c.l.b16 %v1805
        %v1845 = vunpack.c.l.b16 %v1806
        %v1846 = vunpack.c.l.b16 %v1807
        %v1847 = vunpack.c.l.b16 %v1808
        %v1848 = vunpack.c.l.b16 %v1809
        %v1849 = vpack.c.b16 %v1834, %v1833
        %v1850 = vpack.c.b16 %v1836, %v1835
        %v1851 = vpack.c.b16 %v1838, %v1837
        %v1852 = vpack.c.b16 %v1840, %v1839
        %v1853 = vpack.c.b16 %v1842, %v1841
        %v1854 = vpack.c.b16 %v1844, %v1843
        %v1855 = vpack.c.b16 %v1846, %v1845
        %v1856 = vpack.c.b16 %v1848, %v1847
        %1865 = vmatprep.subr.bf16.mxu0 0
        %1866 = vmatpush1.bf16.msra.mxu0 %v1849
        %1867 = vmatprep.subr.bf16.mxu0 0
        %1868 = vmatpush1.bf16.msra.mxu0 %v1850
        %1869 = vmatprep.subr.bf16.mxu0 0
        %1870 = vmatpush1.bf16.msra.mxu0 %v1851
        %1871 = vmatprep.subr.bf16.mxu0 0
        %1872 = vmatpush1.bf16.msra.mxu0 %v1852
        %1873 = vmatprep.subr.bf16.mxu0 0
        %1874 = vmatpush1.bf16.msra.mxu0 %v1853
        %1875 = vmatprep.subr.bf16.mxu0 0
        %1876 = vmatpush1.bf16.msra.mxu0 %v1854
        %1877 = vmatprep.subr.bf16.mxu0 0
        %1878 = vmatpush1.bf16.msra.mxu0 %v1855
        %1879 = vmatprep.subr.bf16.mxu0 0
        %1880 = vmatpush1.bf16.msra.mxu0 %v1856
        %1881 = vmatprep.subr.bf16.mxu0 0
        %1882 = vmatpush1.bf16.msra.mxu0 0
        %1883 = vmatprep.subr.bf16.mxu0 0
        %1884 = vmatpush1.bf16.msra.mxu0 0
        %1885 = vmatprep.subr.bf16.mxu0 0
        %1886 = vmatpush1.bf16.msra.mxu0 0
        %1887 = vmatprep.subr.bf16.mxu0 0
        %1888 = vmatpush1.bf16.msra.mxu0 0
        %1889 = vmatprep.subr.bf16.mxu0 0
        %1890 = vmatpush1.bf16.msra.mxu0 0
        %1891 = vmatprep.subr.bf16.mxu0 0
        %1892 = vmatpush1.bf16.msra.mxu0 0
        %1893 = vmatprep.subr.bf16.mxu0 0
        %1894 = vmatpush1.bf16.msra.mxu0 0
        %1895 = vmatprep.subr.bf16.mxu0 0
        %1896 = vmatpush1.bf16.msra.mxu0 0
        %1897 = vmatprep.mubr.bf16.mxu0 0
        %1898 = vmatmul.mubr.bf16.gmra.mrb[0].mxu0 %v1792
        %v1899 = vpop.f32.mrb[0].mxu0
        %v1900 = vadd.f32 %v1815, %v1899
        %v1901 = vpop.f32.mrb[0].mxu0
        %v1902 = vpop.f32.mrb[0].mxu0
        %v1903 = vadd.f32 %v1815, %v1902
        %v1904 = vpop.f32.mrb[0].mxu0
        %1905 = vmatprep.mubr.bf16.mxu0 0
        %1906 = vmatmul.mubr.bf16.gmra.mrb[0].mxu0 %v1793
        %v1907 = vpop.f32.mrb[0].mxu0
        %v1908 = vadd.f32 %v1815, %v1907
        %v1909 = vpop.f32.mrb[0].mxu0
        %v1910 = vpop.f32.mrb[0].mxu0
        %v1911 = vadd.f32 %v1815, %v1910
        %v1912 = vpop.f32.mrb[0].mxu0
        %1913 = vdwg.mxu0
        %v1914 = vadd.f32 %v494, %v1900
        %v1915 = vadd.f32 %v495, %v1903
        %v1916 = vadd.f32 %v496, %v1908
        %v1917 = vadd.f32 %v497, %v1911
        %v1918 = vld [vmem:[%s4] sm:$0x1]
        %v1919 = vld [vmem:[%s5] sm:$0x1]
        %1920 = vadd.xlane.f32.xlu0 %v1914
        %v1921 = vpop.xlane.xlu0 %1920
        %1922 = vadd.xlane.f32.xlu0 %v1915
        %v1923 = vpop.xlane.xlu0 %1922
        %1924 = vadd.xlane.f32.xlu0 %v1916
        %v1925 = vpop.xlane.xlu0 %1924
        %1926 = vadd.xlane.f32.xlu0 %v1917
        %v1927 = vpop.xlane.xlu0 %1926
        %v1928 = vrcp.pop 128.0
        %v1929 = vmul.f32 %v1921, %v1928
        %v1930 = vmul.f32 %v1923, %v1928
        %v1931 = vmul.f32 %v1925, %v1928
        %v1932 = vmul.f32 %v1927, %v1928
        %v1933 = vsub.f32 %v1914, %v1929
        %v1934 = vsub.f32 %v1915, %v1930
        %v1935 = vsub.f32 %v1916, %v1931
        %v1936 = vsub.f32 %v1917, %v1932
        %v1937 = vmul.f32 %v1933, %v1933
        %v1938 = vmul.f32 %v1934, %v1934
        %v1939 = vmul.f32 %v1935, %v1935
        %v1940 = vmul.f32 %v1936, %v1936
        %1941 = vadd.xlane.f32.xlu0 %v1937
        %v1942 = vpop.xlane.xlu0 %1941
        %1943 = vadd.xlane.f32.xlu0 %v1938
        %v1944 = vpop.xlane.xlu0 %1943
        %1945 = vadd.xlane.f32.xlu0 %v1939
        %v1946 = vpop.xlane.xlu0 %1945
        %1947 = vadd.xlane.f32.xlu0 %v1940
        %v1948 = vpop.xlane.xlu0 %1947
        %v1949 = vmul.f32 %v1942, %v1928
        %v1950 = vmul.f32 %v1944, %v1928
        %v1951 = vmul.f32 %v1946, %v1928
        %v1952 = vmul.f32 %v1948, %v1928
        %v1953 = vadd.f32 %v1949, 1e-05
        %v1954 = vadd.f32 %v1950, 1e-05
        %v1955 = vadd.f32 %v1951, 1e-05
        %v1956 = vadd.f32 %v1952, 1e-05
        %v1957 = vrsqrt.pop %v1953
        %v1958 = vrsqrt.pop %v1954
        %v1959 = vrsqrt.pop %v1955
        %v1960 = vrsqrt.pop %v1956
        %v1961 = vmul.f32 %v1933, %v1957
        %v1962 = vmul.f32 %v1934, %v1958
        %v1963 = vmul.f32 %v1935, %v1959
        %v1964 = vmul.f32 %v1936, %v1960
        %v1966 = vlaneseq
        %v1967 = vshrl.u32 %v1966, 7
        %v1968 = vsub.s32 0, %v1967
        %v1969 = vrot.slane %v1918, %v1968
        %v1971 = vmul.f32 %v1961, %v1969
        %v1972 = vmul.f32 %v1962, %v1969
        %v1973 = vmul.f32 %v1963, %v1969
        %v1974 = vmul.f32 %v1964, %v1969
        %v1976 = vlaneseq
        %v1977 = vshrl.u32 %v1976, 7
        %v1978 = vsub.s32 0, %v1977
        %v1979 = vrot.slane %v1919, %v1978
        %v1981 = vadd.f32 %v1971, %v1979
        %v1982 = vadd.f32 %v1972, %v1979
        %v1983 = vadd.f32 %v1973, %v1979
        %v1984 = vadd.f32 %v1974, %v1979
        %v1985 = vpack.c.bf16 %v1982, %v1981
        %v1986 = vpack.c.bf16 %v1984, %v1983
        %v1987 = vld [vmem:[#allocation8] sm:$0xff]
        %v1988 = vld [vmem:[#allocation8 + $0x8] sm:$0xff]
        %v1989 = vld [vmem:[#allocation8 + $0x10] sm:$0xff]
        %v1990 = vld [vmem:[#allocation8 + $0x18] sm:$0xff]
        %v1991 = vld [vmem:[#allocation8 + $0x20] sm:$0xff]
        %v1992 = vld [vmem:[#allocation8 + $0x28] sm:$0xff]
        %v1993 = vld [vmem:[#allocation8 + $0x30] sm:$0xff]
        %v1994 = vld [vmem:[#allocation8 + $0x38] sm:$0xff]
        %v1995 = vld [vmem:[#allocation8 + $0x40] sm:$0xff]
        %v1996 = vld [vmem:[#allocation8 + $0x48] sm:$0xff]
        %v1997 = vld [vmem:[#allocation8 + $0x50] sm:$0xff]
        %v1998 = vld [vmem:[#allocation8 + $0x58] sm:$0xff]
        %v1999 = vld [vmem:[#allocation8 + $0x60] sm:$0xff]
        %v2000 = vld [vmem:[#allocation8 + $0x68] sm:$0xff]
        %v2001 = vld [vmem:[#allocation8 + $0x70] sm:$0xff]
        %v2002 = vld [vmem:[#allocation8 + $0x78] sm:$0xff]
        %v2003 = vld [vmem:[#allocation8 + $0x80] sm:$0xff]
        %v2004 = vld [vmem:[#allocation8 + $0x88] sm:$0xff]
        %v2005 = vld [vmem:[#allocation8 + $0x90] sm:$0xff]
        %v2006 = vld [vmem:[#allocation8 + $0x98] sm:$0xff]
        %v2007 = vld [vmem:[#allocation8 + $0xa0] sm:$0xff]
        %v2008 = vld [vmem:[#allocation8 + $0xa8] sm:$0xff]
        %v2009 = vld [vmem:[#allocation8 + $0xb0] sm:$0xff]
        %v2010 = vld [vmem:[#allocation8 + $0xb8] sm:$0xff]
        %v2011 = vld [vmem:[#allocation8 + $0xc0] sm:$0xff]
        %v2012 = vld [vmem:[#allocation8 + $0xc8] sm:$0xff]
        %v2013 = vld [vmem:[#allocation8 + $0xd0] sm:$0xff]
        %v2014 = vld [vmem:[#allocation8 + $0xd8] sm:$0xff]
        %v2015 = vld [vmem:[#allocation8 + $0xe0] sm:$0xff]
        %v2016 = vld [vmem:[#allocation8 + $0xe8] sm:$0xff]
        %v2017 = vld [vmem:[#allocation8 + $0xf0] sm:$0xff]
        %v2018 = vld [vmem:[#allocation8 + $0xf8] sm:$0xff]
        %v2019 = vld [vmem:[%s7] sm:$0xf]
        %v2021 = vlaneseq
        %v2022 = vshrl.u32 %v2021, 7
        %v2023 = vsub.s32 0, %v2022
        %v2024 = vrot.slane %v2019, %v2023
        %v2025 = vlaneseq
        %v2026 = vshrl.u32 %v2025, 7
        %v2027 = vsub.s32 1, %v2026
        %v2028 = vrot.slane %v2019, %v2027
        %v2029 = vlaneseq
        %v2030 = vshrl.u32 %v2029, 7
        %v2031 = vsub.s32 2, %v2030
        %v2032 = vrot.slane %v2019, %v2031
        %v2033 = vlaneseq
        %v2034 = vshrl.u32 %v2033, 7
        %v2035 = vsub.s32 3, %v2034
        %v2036 = vrot.slane %v2019, %v2035
        %v2073 = vunpack.c.l.b16 %v1987
        %v2074 = vunpack.c.h.b16 %v1987
        %v2075 = vunpack.c.l.b16 %v1988
        %v2076 = vunpack.c.h.b16 %v1988
        %v2077 = vunpack.c.l.b16 %v1989
        %v2078 = vunpack.c.h.b16 %v1989
        %v2079 = vunpack.c.l.b16 %v1990
        %v2080 = vunpack.c.h.b16 %v1990
        %v2081 = vunpack.c.l.b16 %v1991
        %v2082 = vunpack.c.h.b16 %v1991
        %v2083 = vunpack.c.l.b16 %v1992
        %v2084 = vunpack.c.h.b16 %v1992
        %v2085 = vunpack.c.l.b16 %v1993
        %v2086 = vunpack.c.h.b16 %v1993
        %v2087 = vunpack.c.l.b16 %v1994
        %v2088 = vunpack.c.h.b16 %v1994
        %v2089 = vunpack.c.l.b16 %v1995
        %v2090 = vunpack.c.h.b16 %v1995
        %v2091 = vunpack.c.l.b16 %v1996
        %v2092 = vunpack.c.h.b16 %v1996
        %v2093 = vunpack.c.l.b16 %v1997
        %v2094 = vunpack.c.h.b16 %v1997
        %v2095 = vunpack.c.l.b16 %v1998
        %v2096 = vunpack.c.h.b16 %v1998
        %v2097 = vunpack.c.l.b16 %v1999
        %v2098 = vunpack.c.h.b16 %v1999
        %v2099 = vunpack.c.l.b16 %v2000
        %v2100 = vunpack.c.h.b16 %v2000
        %v2101 = vunpack.c.l.b16 %v2001
        %v2102 = vunpack.c.h.b16 %v2001
        %v2103 = vunpack.c.l.b16 %v2002
        %v2104 = vunpack.c.h.b16 %v2002
        %v2105 = vunpack.c.l.b16 %v2003
        %v2106 = vunpack.c.h.b16 %v2003
        %v2107 = vunpack.c.l.b16 %v2004
        %v2108 = vunpack.c.h.b16 %v2004
        %v2109 = vunpack.c.l.b16 %v2005
        %v2110 = vunpack.c.h.b16 %v2005
        %v2111 = vunpack.c.l.b16 %v2006
        %v2112 = vunpack.c.h.b16 %v2006
        %v2113 = vunpack.c.l.b16 %v2007
        %v2114 = vunpack.c.h.b16 %v2007
        %v2115 = vunpack.c.l.b16 %v2008
        %v2116 = vunpack.c.h.b16 %v2008
        %v2117 = vunpack.c.l.b16 %v2009
        %v2118 = vunpack.c.h.b16 %v2009
        %v2119 = vunpack.c.l.b16 %v2010
        %v2120 = vunpack.c.h.b16 %v2010
        %v2121 = vunpack.c.l.b16 %v2011
        %v2122 = vunpack.c.h.b16 %v2011
        %v2123 = vunpack.c.l.b16 %v2012
        %v2124 = vunpack.c.h.b16 %v2012
        %v2125 = vunpack.c.l.b16 %v2013
        %v2126 = vunpack.c.h.b16 %v2013
        %v2127 = vunpack.c.l.b16 %v2014
        %v2128 = vunpack.c.h.b16 %v2014
        %v2129 = vunpack.c.l.b16 %v2015
        %v2130 = vunpack.c.h.b16 %v2015
        %v2131 = vunpack.c.l.b16 %v2016
        %v2132 = vunpack.c.h.b16 %v2016
        %v2133 = vunpack.c.l.b16 %v2017
        %v2134 = vunpack.c.h.b16 %v2017
        %v2135 = vunpack.c.l.b16 %v2018
        %v2136 = vunpack.c.h.b16 %v2018
        %v2137 = vpack.c.b16 %v2077, %v2073
        %v2138 = vpack.c.b16 %v2078, %v2074
        %v2139 = vpack.c.b16 %v2079, %v2075
        %v2140 = vpack.c.b16 %v2080, %v2076
        %v2141 = vpack.c.b16 %v2085, %v2081
        %v2142 = vpack.c.b16 %v2086, %v2082
        %v2143 = vpack.c.b16 %v2087, %v2083
        %v2144 = vpack.c.b16 %v2088, %v2084
        %v2145 = vpack.c.b16 %v2093, %v2089
        %v2146 = vpack.c.b16 %v2094, %v2090
        %v2147 = vpack.c.b16 %v2095, %v2091
        %v2148 = vpack.c.b16 %v2096, %v2092
        %v2149 = vpack.c.b16 %v2101, %v2097
        %v2150 = vpack.c.b16 %v2102, %v2098
        %v2151 = vpack.c.b16 %v2103, %v2099
        %v2152 = vpack.c.b16 %v2104, %v2100
        %v2153 = vpack.c.b16 %v2109, %v2105
        %v2154 = vpack.c.b16 %v2110, %v2106
        %v2155 = vpack.c.b16 %v2111, %v2107
        %v2156 = vpack.c.b16 %v2112, %v2108
        %v2157 = vpack.c.b16 %v2117, %v2113
        %v2158 = vpack.c.b16 %v2118, %v2114
        %v2159 = vpack.c.b16 %v2119, %v2115
        %v2160 = vpack.c.b16 %v2120, %v2116
        %v2161 = vpack.c.b16 %v2125, %v2121
        %v2162 = vpack.c.b16 %v2126, %v2122
        %v2163 = vpack.c.b16 %v2127, %v2123
        %v2164 = vpack.c.b16 %v2128, %v2124
        %v2165 = vpack.c.b16 %v2133, %v2129
        %v2166 = vpack.c.b16 %v2134, %v2130
        %v2167 = vpack.c.b16 %v2135, %v2131
        %v2168 = vpack.c.b16 %v2136, %v2132
        %2201 = vmatprep.subr.bf16.mxu0 %v2138
        %2202 = vmatpush1.bf16.msra.mxu0 %v2137
        %2203 = vmatprep.subr.bf16.mxu0 %v2142
        %2204 = vmatpush1.bf16.msra.mxu0 %v2141
        %2205 = vmatprep.subr.bf16.mxu0 %v2146
        %2206 = vmatpush1.bf16.msra.mxu0 %v2145
        %2207 = vmatprep.subr.bf16.mxu0 %v2150
        %2208 = vmatpush1.bf16.msra.mxu0 %v2149
        %2209 = vmatprep.subr.bf16.mxu0 %v2154
        %2210 = vmatpush1.bf16.msra.mxu0 %v2153
        %2211 = vmatprep.subr.bf16.mxu0 %v2158
        %2212 = vmatpush1.bf16.msra.mxu0 %v2157
        %2213 = vmatprep.subr.bf16.mxu0 %v2162
        %2214 = vmatpush1.bf16.msra.mxu0 %v2161
        %2215 = vmatprep.subr.bf16.mxu0 %v2166
        %2216 = vmatpush1.bf16.msra.mxu0 %v2165
        %2217 = vmatprep.subr.bf16.mxu0 0
        %2218 = vmatpush1.bf16.msra.mxu0 0
        %2219 = vmatprep.subr.bf16.mxu0 0
        %2220 = vmatpush1.bf16.msra.mxu0 0
        %2221 = vmatprep.subr.bf16.mxu0 0
        %2222 = vmatpush1.bf16.msra.mxu0 0
        %2223 = vmatprep.subr.bf16.mxu0 0
        %2224 = vmatpush1.bf16.msra.mxu0 0
        %2225 = vmatprep.subr.bf16.mxu0 0
        %2226 = vmatpush1.bf16.msra.mxu0 0
        %2227 = vmatprep.subr.bf16.mxu0 0
        %2228 = vmatpush1.bf16.msra.mxu0 0
        %2229 = vmatprep.subr.bf16.mxu0 0
        %2230 = vmatpush1.bf16.msra.mxu0 0
        %2231 = vmatprep.subr.bf16.mxu0 0
        %2232 = vmatpush1.bf16.msra.mxu0 0
        %2233 = vmatprep.mubr.bf16.mxu0 0
        %2234 = vmatmul.mubr.bf16.gmra.mrb[0].mxu0 %v1985
        %v2235 = vpop.f32.mrb[0].mxu0
        %v2236 = vadd.f32 %v2024, %v2235
        %v2237 = vpop.f32.mrb[0].mxu0
        %v2238 = vadd.f32 %v2028, %v2237
        %v2239 = vpop.f32.mrb[0].mxu0
        %v2240 = vadd.f32 %v2024, %v2239
        %v2241 = vpop.f32.mrb[0].mxu0
        %v2242 = vadd.f32 %v2028, %v2241
        %2243 = vmatprep.mubr.bf16.mxu0 0
        %2244 = vmatmul.mubr.bf16.gmra.mrb[0].mxu0 %v1986
        %v2245 = vpop.f32.mrb[0].mxu0
        %v2246 = vadd.f32 %v2024, %v2245
        %v2247 = vpop.f32.mrb[0].mxu0
        %v2248 = vadd.f32 %v2028, %v2247
        %v2249 = vpop.f32.mrb[0].mxu0
        %v2250 = vadd.f32 %v2024, %v2249
        %v2251 = vpop.f32.mrb[0].mxu0
        %v2252 = vadd.f32 %v2028, %v2251
        %2253 = vdwg.mxu0
        %2254 = vmatprep.subr.bf16.mxu0 %v2140
        %2255 = vmatpush1.bf16.msra.mxu0 %v2139
        %2256 = vmatprep.subr.bf16.mxu0 %v2144
        %2257 = vmatpush1.bf16.msra.mxu0 %v2143
        %2258 = vmatprep.subr.bf16.mxu0 %v2148
        %2259 = vmatpush1.bf16.msra.mxu0 %v2147
        %2260 = vmatprep.subr.bf16.mxu0 %v2152
        %2261 = vmatpush1.bf16.msra.mxu0 %v2151
        %2262 = vmatprep.subr.bf16.mxu0 %v2156
        %2263 = vmatpush1.bf16.msra.mxu0 %v2155
        %2264 = vmatprep.subr.bf16.mxu0 %v2160
        %2265 = vmatpush1.bf16.msra.mxu0 %v2159
        %2266 = vmatprep.subr.bf16.mxu0 %v2164
        %2267 = vmatpush1.bf16.msra.mxu0 %v2163
        %2268 = vmatprep.subr.bf16.mxu0 %v2168
        %2269 = vmatpush1.bf16.msra.mxu0 %v2167
        %2270 = vmatprep.subr.bf16.mxu0 0
        %2271 = vmatpush1.bf16.msra.mxu0 0
        %2272 = vmatprep.subr.bf16.mxu0 0
        %2273 = vmatpush1.bf16.msra.mxu0 0
        %2274 = vmatprep.subr.bf16.mxu0 0
        %2275 = vmatpush1.bf16.msra.mxu0 0
        %2276 = vmatprep.subr.bf16.mxu0 0
        %2277 = vmatpush1.bf16.msra.mxu0 0
        %2278 = vmatprep.subr.bf16.mxu0 0
        %2279 = vmatpush1.bf16.msra.mxu0 0
        %2280 = vmatprep.subr.bf16.mxu0 0
        %2281 = vmatpush1.bf16.msra.mxu0 0
        %2282 = vmatprep.subr.bf16.mxu0 0
        %2283 = vmatpush1.bf16.msra.mxu0 0
        %2284 = vmatprep.subr.bf16.mxu0 0
        %2285 = vmatpush1.bf16.msra.mxu0 0
        %2286 = vmatprep.mubr.bf16.mxu0 0
        %2287 = vmatmul.mubr.bf16.gmra.mrb[0].mxu0 %v1985
        %v2288 = vpop.f32.mrb[0].mxu0
        %v2289 = vadd.f32 %v2032, %v2288
        %v2290 = vpop.f32.mrb[0].mxu0
        %v2291 = vadd.f32 %v2036, %v2290
        %v2292 = vpop.f32.mrb[0].mxu0
        %v2293 = vadd.f32 %v2032, %v2292
        %v2294 = vpop.f32.mrb[0].mxu0
        %v2295 = vadd.f32 %v2036, %v2294
        %2296 = vmatprep.mubr.bf16.mxu0 0
        %2297 = vmatmul.mubr.bf16.gmra.mrb[0].mxu0 %v1986
        %v2298 = vpop.f32.mrb[0].mxu0
        %v2299 = vadd.f32 %v2032, %v2298
        %v2300 = vpop.f32.mrb[0].mxu0
        %v2301 = vadd.f32 %v2036, %v2300
        %v2302 = vpop.f32.mrb[0].mxu0
        %v2303 = vadd.f32 %v2032, %v2302
        %v2304 = vpop.f32.mrb[0].mxu0
        %v2305 = vadd.f32 %v2036, %v2304
        %2306 = vdwg.mxu0
        %v2307 = vmul.f32 %v2236, 0.5
        %v2308 = vmul.f32 %v2238, 0.5
        %v2309 = vmul.f32 %v2289, 0.5
        %v2310 = vmul.f32 %v2291, 0.5
        %v2311 = vmul.f32 %v2240, 0.5
        %v2312 = vmul.f32 %v2242, 0.5
        %v2313 = vmul.f32 %v2293, 0.5
        %v2314 = vmul.f32 %v2295, 0.5
        %v2315 = vmul.f32 %v2246, 0.5
        %v2316 = vmul.f32 %v2248, 0.5
        %v2317 = vmul.f32 %v2299, 0.5
        %v2318 = vmul.f32 %v2301, 0.5
        %v2319 = vmul.f32 %v2250, 0.5
        %v2320 = vmul.f32 %v2252, 0.5
        %v2321 = vmul.f32 %v2303, 0.5
        %v2322 = vmul.f32 %v2305, 0.5
        %v2323 = vmul.f32 %v2236, 0.70710677
        %v2324 = vmul.f32 %v2238, 0.70710677
        %v2325 = vmul.f32 %v2289, 0.70710677
        %v2326 = vmul.f32 %v2291, 0.70710677
        %v2327 = vmul.f32 %v2240, 0.70710677
        %v2328 = vmul.f32 %v2242, 0.70710677
        %v2329 = vmul.f32 %v2293, 0.70710677
        %v2330 = vmul.f32 %v2295, 0.70710677
        %v2331 = vmul.f32 %v2246, 0.70710677
        %v2332 = vmul.f32 %v2248, 0.70710677
        %v2333 = vmul.f32 %v2299, 0.70710677
        %v2334 = vmul.f32 %v2301, 0.70710677
        %v2335 = vmul.f32 %v2250, 0.70710677
        %v2336 = vmul.f32 %v2252, 0.70710677
        %v2337 = vmul.f32 %v2303, 0.70710677
        %v2338 = vmul.f32 %v2305, 0.70710677
        %v2339 = verf.f32.pop %v2323
        %v2340 = verf.f32.pop %v2324
        %v2341 = verf.f32.pop %v2325
        %v2342 = verf.f32.pop %v2326
        %v2343 = verf.f32.pop %v2327
        %v2344 = verf.f32.pop %v2328
        %v2345 = verf.f32.pop %v2329
        %v2346 = verf.f32.pop %v2330
        %v2347 = verf.f32.pop %v2331
        %v2348 = verf.f32.pop %v2332
        %v2349 = verf.f32.pop %v2333
        %v2350 = verf.f32.pop %v2334
        %v2351 = verf.f32.pop %v2335
        %v2352 = verf.f32.pop %v2336
        %v2353 = verf.f32.pop %v2337
        %v2354 = verf.f32.pop %v2338
        %v2355 = vadd.f32 %v2339, 1.0
        %v2356 = vadd.f32 %v2340, 1.0
        %v2357 = vadd.f32 %v2341, 1.0
        %v2358 = vadd.f32 %v2342, 1.0
        %v2359 = vadd.f32 %v2343, 1.0
        %v2360 = vadd.f32 %v2344, 1.0
        %v2361 = vadd.f32 %v2345, 1.0
        %v2362 = vadd.f32 %v2346, 1.0
        %v2363 = vadd.f32 %v2347, 1.0
        %v2364 = vadd.f32 %v2348, 1.0
        %v2365 = vadd.f32 %v2349, 1.0
        %v2366 = vadd.f32 %v2350, 1.0
        %v2367 = vadd.f32 %v2351, 1.0
        %v2368 = vadd.f32 %v2352, 1.0
        %v2369 = vadd.f32 %v2353, 1.0
        %v2370 = vadd.f32 %v2354, 1.0
        %v2371 = vmul.f32 %v2307, %v2355
        %v2372 = vmul.f32 %v2308, %v2356
        %v2373 = vmul.f32 %v2309, %v2357
        %v2374 = vmul.f32 %v2310, %v2358
        %v2375 = vmul.f32 %v2311, %v2359
        %v2376 = vmul.f32 %v2312, %v2360
        %v2377 = vmul.f32 %v2313, %v2361
        %v2378 = vmul.f32 %v2314, %v2362
        %v2379 = vmul.f32 %v2315, %v2363
        %v2380 = vmul.f32 %v2316, %v2364
        %v2381 = vmul.f32 %v2317, %v2365
        %v2382 = vmul.f32 %v2318, %v2366
        %v2383 = vmul.f32 %v2319, %v2367
        %v2384 = vmul.f32 %v2320, %v2368
        %v2385 = vmul.f32 %v2321, %v2369
        %v2386 = vmul.f32 %v2322, %v2370
        %v2387 = vpack.c.bf16 %v2375, %v2371
        %v2388 = vpack.c.bf16 %v2376, %v2372
        %v2389 = vpack.c.bf16 %v2377, %v2373
        %v2390 = vpack.c.bf16 %v2378, %v2374
        %v2391 = vpack.c.bf16 %v2383, %v2379
        %v2392 = vpack.c.bf16 %v2384, %v2380
        %v2393 = vpack.c.bf16 %v2385, %v2381
        %v2394 = vpack.c.bf16 %v2386, %v2382
        %v2395 = vld [vmem:[#allocation10] sm:$0xf]
        %v2396 = vld [vmem:[#allocation10 + $0x4] sm:$0xf]
        %v2397 = vld [vmem:[#allocation10 + $0x8] sm:$0xf]
        %v2398 = vld [vmem:[#allocation10 + $0xc] sm:$0xf]
        %v2399 = vld [vmem:[#allocation10 + $0x10] sm:$0xf]
        %v2400 = vld [vmem:[#allocation10 + $0x14] sm:$0xf]
        %v2401 = vld [vmem:[#allocation10 + $0x18] sm:$0xf]
        %v2402 = vld [vmem:[#allocation10 + $0x1c] sm:$0xf]
        %v2403 = vld [vmem:[#allocation10 + $0x20] sm:$0xf]
        %v2404 = vld [vmem:[#allocation10 + $0x24] sm:$0xf]
        %v2405 = vld [vmem:[#allocation10 + $0x28] sm:$0xf]
        %v2406 = vld [vmem:[#allocation10 + $0x2c] sm:$0xf]
        %v2407 = vld [vmem:[#allocation10 + $0x30] sm:$0xf]
        %v2408 = vld [vmem:[#allocation10 + $0x34] sm:$0xf]
        %v2409 = vld [vmem:[#allocation10 + $0x38] sm:$0xf]
        %v2410 = vld [vmem:[#allocation10 + $0x3c] sm:$0xf]
        %v2411 = vld [vmem:[#allocation10 + $0x40] sm:$0xf]
        %v2412 = vld [vmem:[#allocation10 + $0x44] sm:$0xf]
        %v2413 = vld [vmem:[#allocation10 + $0x48] sm:$0xf]
        %v2414 = vld [vmem:[#allocation10 + $0x4c] sm:$0xf]
        %v2415 = vld [vmem:[#allocation10 + $0x50] sm:$0xf]
        %v2416 = vld [vmem:[#allocation10 + $0x54] sm:$0xf]
        %v2417 = vld [vmem:[#allocation10 + $0x58] sm:$0xf]
        %v2418 = vld [vmem:[#allocation10 + $0x5c] sm:$0xf]
        %v2419 = vld [vmem:[#allocation10 + $0x60] sm:$0xf]
        %v2420 = vld [vmem:[#allocation10 + $0x64] sm:$0xf]
        %v2421 = vld [vmem:[#allocation10 + $0x68] sm:$0xf]
        %v2422 = vld [vmem:[#allocation10 + $0x6c] sm:$0xf]
        %v2423 = vld [vmem:[#allocation10 + $0x70] sm:$0xf]
        %v2424 = vld [vmem:[#allocation10 + $0x74] sm:$0xf]
        %v2425 = vld [vmem:[#allocation10 + $0x78] sm:$0xf]
        %v2426 = vld [vmem:[#allocation10 + $0x7c] sm:$0xf]
        %v2427 = vld [vmem:[#allocation10 + $0x80] sm:$0xf]
        %v2428 = vld [vmem:[#allocation10 + $0x84] sm:$0xf]
        %v2429 = vld [vmem:[#allocation10 + $0x88] sm:$0xf]
        %v2430 = vld [vmem:[#allocation10 + $0x8c] sm:$0xf]
        %v2431 = vld [vmem:[#allocation10 + $0x90] sm:$0xf]
        %v2432 = vld [vmem:[#allocation10 + $0x94] sm:$0xf]
        %v2433 = vld [vmem:[#allocation10 + $0x98] sm:$0xf]
        %v2434 = vld [vmem:[#allocation10 + $0x9c] sm:$0xf]
        %v2435 = vld [vmem:[#allocation10 + $0xa0] sm:$0xf]
        %v2436 = vld [vmem:[#allocation10 + $0xa4] sm:$0xf]
        %v2437 = vld [vmem:[#allocation10 + $0xa8] sm:$0xf]
        %v2438 = vld [vmem:[#allocation10 + $0xac] sm:$0xf]
        %v2439 = vld [vmem:[#allocation10 + $0xb0] sm:$0xf]
        %v2440 = vld [vmem:[#allocation10 + $0xb4] sm:$0xf]
        %v2441 = vld [vmem:[#allocation10 + $0xb8] sm:$0xf]
        %v2442 = vld [vmem:[#allocation10 + $0xbc] sm:$0xf]
        %v2443 = vld [vmem:[#allocation10 + $0xc0] sm:$0xf]
        %v2444 = vld [vmem:[#allocation10 + $0xc4] sm:$0xf]
        %v2445 = vld [vmem:[#allocation10 + $0xc8] sm:$0xf]
        %v2446 = vld [vmem:[#allocation10 + $0xcc] sm:$0xf]
        %v2447 = vld [vmem:[#allocation10 + $0xd0] sm:$0xf]
        %v2448 = vld [vmem:[#allocation10 + $0xd4] sm:$0xf]
        %v2449 = vld [vmem:[#allocation10 + $0xd8] sm:$0xf]
        %v2450 = vld [vmem:[#allocation10 + $0xdc] sm:$0xf]
        %v2451 = vld [vmem:[#allocation10 + $0xe0] sm:$0xf]
        %v2452 = vld [vmem:[#allocation10 + $0xe4] sm:$0xf]
        %v2453 = vld [vmem:[#allocation10 + $0xe8] sm:$0xf]
        %v2454 = vld [vmem:[#allocation10 + $0xec] sm:$0xf]
        %v2455 = vld [vmem:[#allocation10 + $0xf0] sm:$0xf]
        %v2456 = vld [vmem:[#allocation10 + $0xf4] sm:$0xf]
        %v2457 = vld [vmem:[#allocation10 + $0xf8] sm:$0xf]
        %v2458 = vld [vmem:[#allocation10 + $0xfc] sm:$0xf]
        %v2459 = vld [vmem:[%s9] sm:$0x1]
        %v2461 = vlaneseq
        %v2462 = vshrl.u32 %v2461, 7
        %v2463 = vsub.s32 0, %v2462
        %v2464 = vrot.slane %v2459, %v2463
        %v2530 = vunpack.c.l.b16 %v2395
        %v2531 = vunpack.c.l.b16 %v2396
        %v2532 = vunpack.c.l.b16 %v2397
        %v2533 = vunpack.c.l.b16 %v2398
        %v2534 = vunpack.c.l.b16 %v2399
        %v2535 = vunpack.c.l.b16 %v2400
        %v2536 = vunpack.c.l.b16 %v2401
        %v2537 = vunpack.c.l.b16 %v2402
        %v2538 = vunpack.c.l.b16 %v2403
        %v2539 = vunpack.c.l.b16 %v2404
        %v2540 = vunpack.c.l.b16 %v2405
        %v2541 = vunpack.c.l.b16 %v2406
        %v2542 = vunpack.c.l.b16 %v2407
        %v2543 = vunpack.c.l.b16 %v2408
        %v2544 = vunpack.c.l.b16 %v2409
        %v2545 = vunpack.c.l.b16 %v2410
        %v2546 = vunpack.c.l.b16 %v2411
        %v2547 = vunpack.c.l.b16 %v2412
        %v2548 = vunpack.c.l.b16 %v2413
        %v2549 = vunpack.c.l.b16 %v2414
        %v2550 = vunpack.c.l.b16 %v2415
        %v2551 = vunpack.c.l.b16 %v2416
        %v2552 = vunpack.c.l.b16 %v2417
        %v2553 = vunpack.c.l.b16 %v2418
        %v2554 = vunpack.c.l.b16 %v2419
        %v2555 = vunpack.c.l.b16 %v2420
        %v2556 = vunpack.c.l.b16 %v2421
        %v2557 = vunpack.c.l.b16 %v2422
        %v2558 = vunpack.c.l.b16 %v2423
        %v2559 = vunpack.c.l.b16 %v2424
        %v2560 = vunpack.c.l.b16 %v2425
        %v2561 = vunpack.c.l.b16 %v2426
        %v2562 = vunpack.c.l.b16 %v2427
        %v2563 = vunpack.c.l.b16 %v2428
        %v2564 = vunpack.c.l.b16 %v2429
        %v2565 = vunpack.c.l.b16 %v2430
        %v2566 = vunpack.c.l.b16 %v2431
        %v2567 = vunpack.c.l.b16 %v2432
        %v2568 = vunpack.c.l.b16 %v2433
        %v2569 = vunpack.c.l.b16 %v2434
        %v2570 = vunpack.c.l.b16 %v2435
        %v2571 = vunpack.c.l.b16 %v2436
        %v2572 = vunpack.c.l.b16 %v2437
        %v2573 = vunpack.c.l.b16 %v2438
        %v2574 = vunpack.c.l.b16 %v2439
        %v2575 = vunpack.c.l.b16 %v2440
        %v2576 = vunpack.c.l.b16 %v2441
        %v2577 = vunpack.c.l.b16 %v2442
        %v2578 = vunpack.c.l.b16 %v2443
        %v2579 = vunpack.c.l.b16 %v2444
        %v2580 = vunpack.c.l.b16 %v2445
        %v2581 = vunpack.c.l.b16 %v2446
        %v2582 = vunpack.c.l.b16 %v2447
        %v2583 = vunpack.c.l.b16 %v2448
        %v2584 = vunpack.c.l.b16 %v2449
        %v2585 = vunpack.c.l.b16 %v2450
        %v2586 = vunpack.c.l.b16 %v2451
        %v2587 = vunpack.c.l.b16 %v2452
        %v2588 = vunpack.c.l.b16 %v2453
        %v2589 = vunpack.c.l.b16 %v2454
        %v2590 = vunpack.c.l.b16 %v2455
        %v2591 = vunpack.c.l.b16 %v2456
        %v2592 = vunpack.c.l.b16 %v2457
        %v2593 = vunpack.c.l.b16 %v2458
        %v2594 = vpack.c.b16 %v2531, %v2530
        %v2595 = vpack.c.b16 %v2533, %v2532
        %v2596 = vpack.c.b16 %v2535, %v2534
        %v2597 = vpack.c.b16 %v2537, %v2536
        %v2598 = vpack.c.b16 %v2539, %v2538
        %v2599 = vpack.c.b16 %v2541, %v2540
        %v2600 = vpack.c.b16 %v2543, %v2542
        %v2601 = vpack.c.b16 %v2545, %v2544
        %v2602 = vpack.c.b16 %v2547, %v2546
        %v2603 = vpack.c.b16 %v2549, %v2548
        %v2604 = vpack.c.b16 %v2551, %v2550
        %v2605 = vpack.c.b16 %v2553, %v2552
        %v2606 = vpack.c.b16 %v2555, %v2554
        %v2607 = vpack.c.b16 %v2557, %v2556
        %v2608 = vpack.c.b16 %v2559, %v2558
        %v2609 = vpack.c.b16 %v2561, %v2560
        %v2610 = vpack.c.b16 %v2563, %v2562
        %v2611 = vpack.c.b16 %v2565, %v2564
        %v2612 = vpack.c.b16 %v2567, %v2566
        %v2613 = vpack.c.b16 %v2569, %v2568
        %v2614 = vpack.c.b16 %v2571, %v2570
        %v2615 = vpack.c.b16 %v2573, %v2572
        %v2616 = vpack.c.b16 %v2575, %v2574
        %v2617 = vpack.c.b16 %v2577, %v2576
        %v2618 = vpack.c.b16 %v2579, %v2578
        %v2619 = vpack.c.b16 %v2581, %v2580
        %v2620 = vpack.c.b16 %v2583, %v2582
        %v2621 = vpack.c.b16 %v2585, %v2584
        %v2622 = vpack.c.b16 %v2587, %v2586
        %v2623 = vpack.c.b16 %v2589, %v2588
        %v2624 = vpack.c.b16 %v2591, %v2590
        %v2625 = vpack.c.b16 %v2593, %v2592
        %2658 = vmatprep.subr.bf16.mxu0 0
        %2659 = vmatpush1.bf16.msra.mxu0 %v2594
        %2660 = vmatprep.subr.bf16.mxu0 0
        %2661 = vmatpush1.bf16.msra.mxu0 %v2595
        %2662 = vmatprep.subr.bf16.mxu0 0
        %2663 = vmatpush1.bf16.msra.mxu0 %v2596
        %2664 = vmatprep.subr.bf16.mxu0 0
        %2665 = vmatpush1.bf16.msra.mxu0 %v2597
        %2666 = vmatprep.subr.bf16.mxu0 0
        %2667 = vmatpush1.bf16.msra.mxu0 %v2598
        %2668 = vmatprep.subr.bf16.mxu0 0
        %2669 = vmatpush1.bf16.msra.mxu0 %v2599
        %2670 = vmatprep.subr.bf16.mxu0 0
        %2671 = vmatpush1.bf16.msra.mxu0 %v2600
        %2672 = vmatprep.subr.bf16.mxu0 0
        %2673 = vmatpush1.bf16.msra.mxu0 %v2601
        %2674 = vmatprep.subr.bf16.mxu0 0
        %2675 = vmatpush1.bf16.msra.mxu0 %v2602
        %2676 = vmatprep.subr.bf16.mxu0 0
        %2677 = vmatpush1.bf16.msra.mxu0 %v2603
        %2678 = vmatprep.subr.bf16.mxu0 0
        %2679 = vmatpush1.bf16.msra.mxu0 %v2604
        %2680 = vmatprep.subr.bf16.mxu0 0
        %2681 = vmatpush1.bf16.msra.mxu0 %v2605
        %2682 = vmatprep.subr.bf16.mxu0 0
        %2683 = vmatpush1.bf16.msra.mxu0 %v2606
        %2684 = vmatprep.subr.bf16.mxu0 0
        %2685 = vmatpush1.bf16.msra.mxu0 %v2607
        %2686 = vmatprep.subr.bf16.mxu0 0
        %2687 = vmatpush1.bf16.msra.mxu0 %v2608
        %2688 = vmatprep.subr.bf16.mxu0 0
        %2689 = vmatpush1.bf16.msra.mxu0 %v2609
        %2690 = vmatprep.mubr.bf16.mxu0 %v2388
        %2691 = vmatmul.mubr.bf16.gmra.mrb[0].mxu0 %v2387
        %v2692 = vpop.f32.mrb[0].mxu0
        %v2693 = vadd.f32 %v2464, %v2692
        %v2694 = vpop.f32.mrb[0].mxu0
        %v2695 = vpop.f32.mrb[0].mxu0
        %v2696 = vadd.f32 %v2464, %v2695
        %v2697 = vpop.f32.mrb[0].mxu0
        %2698 = vmatprep.mubr.bf16.mxu0 %v2392
        %2699 = vmatmul.mubr.bf16.gmra.mrb[0].mxu0 %v2391
        %v2700 = vpop.f32.mrb[0].mxu0
        %v2701 = vadd.f32 %v2464, %v2700
        %v2702 = vpop.f32.mrb[0].mxu0
        %v2703 = vpop.f32.mrb[0].mxu0
        %v2704 = vadd.f32 %v2464, %v2703
        %v2705 = vpop.f32.mrb[0].mxu0
        %2706 = vdwg.mxu0
        %2707 = vmatprep.subr.bf16.mxu0 0
        %2708 = vmatpush1.bf16.msra.mxu0 %v2610
        %2709 = vmatprep.subr.bf16.mxu0 0
        %2710 = vmatpush1.bf16.msra.mxu0 %v2611
        %2711 = vmatprep.subr.bf16.mxu0 0
        %2712 = vmatpush1.bf16.msra.mxu0 %v2612
        %2713 = vmatprep.subr.bf16.mxu0 0
        %2714 = vmatpush1.bf16.msra.mxu0 %v2613
        %2715 = vmatprep.subr.bf16.mxu0 0
        %2716 = vmatpush1.bf16.msra.mxu0 %v2614
        %2717 = vmatprep.subr.bf16.mxu0 0
        %2718 = vmatpush1.bf16.msra.mxu0 %v2615
        %2719 = vmatprep.subr.bf16.mxu0 0
        %2720 = vmatpush1.bf16.msra.mxu0 %v2616
        %2721 = vmatprep.subr.bf16.mxu0 0
        %2722 = vmatpush1.bf16.msra.mxu0 %v2617
        %2723 = vmatprep.subr.bf16.mxu0 0
        %2724 = vmatpush1.bf16.msra.mxu0 %v2618
        %2725 = vmatprep.subr.bf16.mxu0 0
        %2726 = vmatpush1.bf16.msra.mxu0 %v2619
        %2727 = vmatprep.subr.bf16.mxu0 0
        %2728 = vmatpush1.bf16.msra.mxu0 %v2620
        %2729 = vmatprep.subr.bf16.mxu0 0
        %2730 = vmatpush1.bf16.msra.mxu0 %v2621
        %2731 = vmatprep.subr.bf16.mxu0 0
        %2732 = vmatpush1.bf16.msra.mxu0 %v2622
        %2733 = vmatprep.subr.bf16.mxu0 0
        %2734 = vmatpush1.bf16.msra.mxu0 %v2623
        %2735 = vmatprep.subr.bf16.mxu0 0
        %2736 = vmatpush1.bf16.msra.mxu0 %v2624
        %2737 = vmatprep.subr.bf16.mxu0 0
        %2738 = vmatpush1.bf16.msra.mxu0 %v2625
        %2739 = vmatprep.mubr.bf16.mxu0 %v2390
        %2740 = vmatmul.mubr.bf16.gmra.mrb[0].mxu0 %v2389
        %v2741 = vpop.f32.mrb[0].mxu0
        %v2742 = vadd.f32 %v2693, %v2741
        %v2743 = vpop.f32.mrb[0].mxu0
        %v2744 = vpop.f32.mrb[0].mxu0
        %v2745 = vadd.f32 %v2696, %v2744
        %v2746 = vpop.f32.mrb[0].mxu0
        %2747 = vmatprep.mubr.bf16.mxu0 %v2394
        %2748 = vmatmul.mubr.bf16.gmra.mrb[0].mxu0 %v2393
        %v2749 = vpop.f32.mrb[0].mxu0
        %v2750 = vadd.f32 %v2701, %v2749
        %v2751 = vpop.f32.mrb[0].mxu0
        %v2752 = vpop.f32.mrb[0].mxu0
        %v2753 = vadd.f32 %v2704, %v2752
        %v2754 = vpop.f32.mrb[0].mxu0
        %2755 = vdwg.mxu0
        %v2756 = vadd.f32 %v1981, %v2742
        %v2757 = vadd.f32 %v1982, %v2745
        %v2758 = vadd.f32 %v1983, %v2750
        %v2759 = vadd.f32 %v1984, %v2753
        %v2760 = vld [vmem:[%s10] sm:$0x1]
        %v2761 = vld [vmem:[%s11] sm:$0x1]
        %2762 = vadd.xlane.f32.xlu0 %v2756
        %v2763 = vpop.xlane.xlu0 %2762
        %2764 = vadd.xlane.f32.xlu0 %v2757
        %v2765 = vpop.xlane.xlu0 %2764
        %2766 = vadd.xlane.f32.xlu0 %v2758
        %v2767 = vpop.xlane.xlu0 %2766
        %2768 = vadd.xlane.f32.xlu0 %v2759
        %v2769 = vpop.xlane.xlu0 %2768
        %v2770 = vmul.f32 %v2763, %v1928
        %v2771 = vmul.f32 %v2765, %v1928
        %v2772 = vmul.f32 %v2767, %v1928
        %v2773 = vmul.f32 %v2769, %v1928
        %v2774 = vsub.f32 %v2756, %v2770
        %v2775 = vsub.f32 %v2757, %v2771
        %v2776 = vsub.f32 %v2758, %v2772
        %v2777 = vsub.f32 %v2759, %v2773
        %v2778 = vmul.f32 %v2774, %v2774
        %v2779 = vmul.f32 %v2775, %v2775
        %v2780 = vmul.f32 %v2776, %v2776
        %v2781 = vmul.f32 %v2777, %v2777
        %2782 = vadd.xlane.f32.xlu0 %v2778
        %v2783 = vpop.xlane.xlu0 %2782
        %2784 = vadd.xlane.f32.xlu0 %v2779
        %v2785 = vpop.xlane.xlu0 %2784
        %2786 = vadd.xlane.f32.xlu0 %v2780
        %v2787 = vpop.xlane.xlu0 %2786
        %2788 = vadd.xlane.f32.xlu0 %v2781
        %v2789 = vpop.xlane.xlu0 %2788
        %v2790 = vmul.f32 %v2783, %v1928
        %v2791 = vmul.f32 %v2785, %v1928
        %v2792 = vmul.f32 %v2787, %v1928
        %v2793 = vmul.f32 %v2789, %v1928
        %v2794 = vadd.f32 %v2790, 1e-05
        %v2795 = vadd.f32 %v2791, 1e-05
        %v2796 = vadd.f32 %v2792, 1e-05
        %v2797 = vadd.f32 %v2793, 1e-05
        %v2798 = vrsqrt.pop %v2794
        %v2799 = vrsqrt.pop %v2795
        %v2800 = vrsqrt.pop %v2796
        %v2801 = vrsqrt.pop %v2797
        %v2802 = vmul.f32 %v2774, %v2798
        %v2803 = vmul.f32 %v2775, %v2799
        %v2804 = vmul.f32 %v2776, %v2800
        %v2805 = vmul.f32 %v2777, %v2801
        %v2807 = vlaneseq
        %v2808 = vshrl.u32 %v2807, 7
        %v2809 = vsub.s32 0, %v2808
        %v2810 = vrot.slane %v2760, %v2809
        %v2812 = vmul.f32 %v2802, %v2810
        %v2813 = vmul.f32 %v2803, %v2810
        %v2814 = vmul.f32 %v2804, %v2810
        %v2815 = vmul.f32 %v2805, %v2810
        %v2817 = vlaneseq
        %v2818 = vshrl.u32 %v2817, 7
        %v2819 = vsub.s32 0, %v2818
        %v2820 = vrot.slane %v2761, %v2819
        %v2822 = vadd.f32 %v2812, %v2820
        %v2823 = vadd.f32 %v2813, %v2820
        %v2824 = vadd.f32 %v2814, %v2820
        %v2825 = vadd.f32 %v2815, %v2820
        %2826 = vst [vmem:[%s490] sm:$0xff] %v2822
        %2827 = vst [vmem:[%s490 + $0x8] sm:$0xff] %v2823
        %2828 = vst [vmem:[%s490 + $0x10] sm:$0xff] %v2824
        %2829 = vst [vmem:[%s490 + $0x18] sm:$0xff] %v2825
        %s2830 = sand.u32 %s296, 1
        %s2831 = scalar_lea.sflag [#allocation4], %s2830
        %s2832 = sand.u32 %s296, 1
        %s2833 = smul.addr %s2832, 32
        %s2834 = scalar_lea.vmem [#allocation11], %s2833
        // Predicated region
        $region89: #{tpu_custom_call.1} parent=67 // pred_check
          %p2835 = pneg %p306
        $region90: #{tpu_custom_call.1} parent=67 // pred_check_branch
          %2837 = sbr.rel (%p2835) target = $region92
        $region91: #{tpu_custom_call.1} parent=67 // pred_region
          %s2838 = smul.u32 2, %s31
          %s2840 = ssub.s32 512, 512
          %2841 = vsyncadd %s2831, %s2840
          %s2842 = smul.addr %s2838, 2
          %s2843 = smul.addr %s2842, 128
          %s2844 = scalar_lea.hbm %s12, %s2843
          %s2845 = sshll.u32 %s2834, 4
          %s2846 = int_to_ptr.vmem [resolvable:$true] %s2845
          %2851 = dma.vmem_to_hbm [thread:$0]  %s2846, 512, %s2844, %s2831, 128, 128, 8
        $region92: #{tpu_custom_call.1} parent=67 // pred_fallthru
          _
      $region68: #{tpu_custom_call.1} parent=5 // pred_fallthru
        _
      %p2852 = scmp.le.s32.totalorder 2, %s26
      // Predicated region
      $region93: #{tpu_custom_call.1} parent=5 // pred_check
        %p2853 = pneg %p2852
      $region94: #{tpu_custom_call.1} parent=5 // pred_check_branch
        %2855 = sbr.rel (%p2853) target = $region96
      $region95: #{tpu_custom_call.1} parent=5 // pred_region
        %s2856 = ssub.s32 %s26, 2
        // Predicated region
        $region97: #{tpu_custom_call.1} parent=95 // pred_check
          %p2857 = pneg %p312
        $region98: #{tpu_custom_call.1} parent=95 // pred_check_branch
          %2859 = sbr.rel (%p2857) target = $region100
        $region99: #{tpu_custom_call.1} parent=95 // pred_region
          %s2860 = sand.u32 %s297, 1
          %s2861 = scalar_lea.sflag [#allocation4], %s2860
          %s2862 = sand.u32 %s297, 1
          %s2863 = smul.addr %s2862, 32
          %s2864 = scalar_lea.vmem [#allocation11], %s2863
          %2865 = dma.done %s2861, 512
        $region100: #{tpu_custom_call.1} parent=95 // pred_fallthru
          _
      $region96: #{tpu_custom_call.1} parent=5 // pred_fallthru
        _
    $region6: #{tpu_custom_call.1} parent=1 // loop_footer
      %s30 = sadd.s32 1, %s26
    $region7: #{tpu_custom_call.1} parent=1 // loop_footer_branch
      %25 = sbr.rel target = $region3
    $region8: #{tpu_custom_call.1} parent=1 // loop_exit
      _
    %2866 = vsyncpa [#allocation3], 1
    %s2867 = scalar_lea.sflag [#allocation3], 1
    %2868 = vsyncpa %s2867, 1
    %2869 = vsyncpa [#allocation6], 1
    %2870 = vsyncpa [#allocation9], 1
    %2871 = vsyncpa [#allocation4], 1
    %s2872 = scalar_lea.sflag [#allocation4], 1
    %2873 = vsyncpa %s2872, 1

// kernel: tpu_custom_call.1
$region0: #{tpu_custom_call.1}
  #allocation0 [shape = 'u32[]', space=smem, size = 0x4, offset = 0x4, fixed_abs, tag = 'smem constant byte address 0x4 - core index']
  #allocation1 [shape = 'u32[144,128]{1,0:T(1,128)}', space=vmem, size = 0x12000, scoped, tag = 'internal scratch']
  %s0 = inlined_call_operand.hbm [shape: f32[4,16,128], index: 0, kind: input, shape index: {}]
  %s1 = inlined_call_operand.hbm [shape: bf16[128,384], index: 1, kind: input, shape index: {}]
  %s2 = inlined_call_operand.hbm [shape: bf16[128,128], index: 2, kind: input, shape index: {}]
  %s3 = inlined_call_operand.vmem [shape: f32[1,128], index: 3, kind: input, shape index: {}]
  %s4 = inlined_call_operand.vmem [shape: f32[1,128], index: 4, kind: input, shape index: {}]
  %s5 = inlined_call_operand.vmem [shape: f32[1,128], index: 5, kind: input, shape index: {}]
  %s6 = inlined_call_operand.hbm [shape: bf16[128,512], index: 6, kind: input, shape index: {}]
  %s7 = inlined_call_operand.vmem [shape: f32[1,512], index: 7, kind: input, shape index: {}]
  %s8 = inlined_call_operand.hbm [shape: bf16[512,128], index: 8, kind: input, shape index: {}]
  %s9 = inlined_call_operand.vmem [shape: f32[1,128], index: 9, kind: input, shape index: {}]
  %s10 = inlined_call_operand.vmem [shape: f32[1,128], index: 10, kind: input, shape index: {}]
  %s11 = inlined_call_operand.vmem [shape: f32[1,128], index: 11, kind: input, shape index: {}]
  %s12 = inlined_call_operand.hbm [shape: f32[4,16,128], index: 12, kind: output, shape index: {}]
  %s13 = sld [smem:[#allocation0]]
  $region101: #{tpu_custom_call.1} parent=0
    _
  %s15 = ssub.s32 1, %s13
  %s16 = scalar_select 0, %s15, %s13
  $region1: #{tpu_custom_call.1} parent=0
    #allocation2 [shape = 'u8[32768]{0}', space=vmem, size = 0x8000, scoped, tag = 'input window, operand 0']
    #allocation3 [shape = 's32[2]{0}', space=sflag, size = 0x8, scoped, tag = 'scoped memory for tpu_custom_call.1']
    #allocation4 [shape = 's32[2]{0}', space=sflag, size = 0x8, scoped, tag = 'scoped memory for tpu_custom_call.1']
    #allocation5 [shape = 'u8[98304]{0}', space=vmem, size = 0x18000, scoped, tag = 'input window, operand 1, single buffered']
    #allocation6 [shape = 's32[1]{0}', space=sflag, size = 0x4, scoped, tag = 'scoped memory for tpu_custom_call.1']
    #allocation7 [shape = 'u8[32768]{0}', space=vmem, size = 0x8000, scoped, tag = 'input window, operand 2, single buffered']
    #allocation8 [shape = 'u8[131072]{0}', space=vmem, size = 0x20000, scoped, tag = 'input window, operand 6, single buffered']
    #allocation9 [shape = 's32[1]{0}', space=sflag, size = 0x4, scoped, tag = 'scoped memory for tpu_custom_call.1']
    #allocation10 [shape = 'u8[131072]{0}', space=vmem, size = 0x20000, scoped, tag = 'input window, operand 8, single buffered']
    #allocation11 [shape = 'u8[32768]{0}', space=vmem, size = 0x8000, scoped, tag = 'output window, operand 0']
    %17 = vsyncpa [#allocation3], 0
    %s18 = scalar_lea.sflag [#allocation3], 1
    %19 = vsyncpa %s18, 0
    %20 = vsyncpa [#allocation6], 0
    %21 = vsyncpa [#allocation9], 0
    %22 = vsyncpa [#allocation4], 0
    %s23 = scalar_lea.sflag [#allocation4], 1
    %24 = vsyncpa %s23, 0
    loop: start=0, step=1, limit=4
    $region2: #{tpu_custom_call.1} parent=1 // loop_pre_header
      _
    $region3: #{tpu_custom_call.1} parent=1 // loop_header
      %s26 = sphi 0, %s30
      %p27 = scmp.ge.s32.totalorder %s26, 4
      %s36 = sphi 0, %s38
      %s39 = sphi 0, %s36
      %s40 = sphi 0, %s39
      %s56 = sphi 0, %s40
      %s60 = sphi 0, %s60
      %s62 = sphi 0, %s60
      %s63 = sphi 0, %s62
      %s77 = sphi 0, %s63
      %s81 = sphi 0, %s81
      %s83 = sphi 0, %s81
      %s84 = sphi 0, %s83
      %s98 = sphi 0, %s84
      %s102 = sphi 0, %s102
      %s104 = sphi 0, %s102
      %s105 = sphi 0, %s104
      %s119 = sphi 0, %s105
      %s123 = sphi 0, %s123
      %s125 = sphi 0, %s123
      %s126 = sphi 0, %s125
      %s140 = sphi 0, %s126
      %s144 = sphi 0, %s144
      %s146 = sphi 0, %s144
      %s147 = sphi 0, %s146
      %s161 = sphi 0, %s147
      %s165 = sphi 0, %s165
      %s167 = sphi 0, %s165
      %s168 = sphi 0, %s167
      %s182 = sphi 0, %s168
      %s186 = sphi 0, %s186
      %s188 = sphi 0, %s186
      %s189 = sphi 0, %s188
      %s203 = sphi 0, %s189
      %s207 = sphi 0, %s207
      %s209 = sphi 0, %s207
      %s210 = sphi 0, %s209
      %s224 = sphi 0, %s210
      %s228 = sphi 0, %s228
      %s230 = sphi 0, %s228
      %s231 = sphi 0, %s230
      %s245 = sphi 0, %s231
      %s249 = sphi 0, %s249
      %s251 = sphi 0, %s249
      %s252 = sphi 0, %s251
      %s266 = sphi 0, %s252
      %s270 = sphi 0, %s270
      %s272 = sphi 0, %s270
      %s273 = sphi 0, %s272
      %s287 = sphi 0, %s273
      %s293 = sphi 0, %s295
      %s296 = sphi 0, %s293
      %s297 = sphi 0, %s296
      %s313 = sphi 0, %s297
    $region4: #{tpu_custom_call.1} parent=1 // loop_header_branch
      %29 = sbr.rel (%p27) target = $region8
    $region5: #{tpu_custom_call.1} parent=1 // loop_body
      %s31 = ssub.s32 %s26, 1
      %s32 = ssub.s32 %s26, 2
      %s33 = sadd.s32 %s26, 1
      %s34 = ssub.s32 %s26, %s33
      %p35 = scmp.eq.s32.totalorder %s34, 0
      %s37 = sadd.s32 %s36, 1
      %s38 = scalar_select %p35, %s36, %s37
      %p41 = pneg %p35
      %p42 = scmp.eq.s32.totalorder %s26, 1
      %p43 = por %p41, %p42
      %p44 = scmp.ne.s32.totalorder %s36, %s39
      %p45 = scmp.eq.s32.totalorder %s26, 0
      %p46 = por %p44, %p45
      %p47 = scmp.ne.s32.totalorder %s36, %s39
      %p48 = scmp.eq.s32.totalorder %s31, 1
      %p49 = por %p47, %p48
      %p50 = scmp.ne.s32.totalorder %s39, %s40
      %p51 = scmp.eq.s32.totalorder %s31, 0
      %p52 = por %p50, %p51
      %p53 = scmp.ne.s32.totalorder %s39, %s40
      %p54 = scmp.eq.s32.totalorder %s32, 1
      %p55 = por %p53, %p54
      %p57 = scmp.ne.s32.totalorder %s40, %s56
      %p58 = scmp.eq.s32.totalorder %s32, 0
      %p59 = por %p57, %p58
      %s61 = sadd.s32 %s60, 1
      %p64 = scmp.eq.s32.totalorder %s26, 1
      %p65 = scmp.ne.s32.totalorder %s60, %s62
      %p66 = scmp.eq.s32.totalorder %s26, 0
      %p67 = por %p65, %p66
      %p68 = scmp.ne.s32.totalorder %s60, %s62
      %p69 = scmp.eq.s32.totalorder %s31, 1
      %p70 = por %p68, %p69
      %p71 = scmp.ne.s32.totalorder %s62, %s63
      %p72 = scmp.eq.s32.totalorder %s31, 0
      %p73 = por %p71, %p72
      %p74 = scmp.ne.s32.totalorder %s62, %s63
      %p75 = scmp.eq.s32.totalorder %s32, 1
      %p76 = por %p74, %p75
      %p78 = scmp.ne.s32.totalorder %s63, %s77
      %p79 = scmp.eq.s32.totalorder %s32, 0
      %p80 = por %p78, %p79
      %s82 = sadd.s32 %s81, 1
      %p85 = scmp.eq.s32.totalorder %s26, 1
      %p86 = scmp.ne.s32.totalorder %s81, %s83
      %p87 = scmp.eq.s32.totalorder %s26, 0
      %p88 = por %p86, %p87
      %p89 = scmp.ne.s32.totalorder %s81, %s83
      %p90 = scmp.eq.s32.totalorder %s31, 1
      %p91 = por %p89, %p90
      %p92 = scmp.ne.s32.totalorder %s83, %s84
      %p93 = scmp.eq.s32.totalorder %s31, 0
      %p94 = por %p92, %p93
      %p95 = scmp.ne.s32.totalorder %s83, %s84
      %p96 = scmp.eq.s32.totalorder %s32, 1
      %p97 = por %p95, %p96
      %p99 = scmp.ne.s32.totalorder %s84, %s98
      %p100 = scmp.eq.s32.totalorder %s32, 0
      %p101 = por %p99, %p100
      %s103 = sadd.s32 %s102, 1
      %p106 = scmp.eq.s32.totalorder %s26, 1
      %p107 = scmp.ne.s32.totalorder %s102, %s104
      %p108 = scmp.eq.s32.totalorder %s26, 0
      %p109 = por %p107, %p108
      %p110 = scmp.ne.s32.totalorder %s102, %s104
      %p111 = scmp.eq.s32.totalorder %s31, 1
      %p112 = por %p110, %p111
      %p113 = scmp.ne.s32.totalorder %s104, %s105
      %p114 = scmp.eq.s32.totalorder %s31, 0
      %p115 = por %p113, %p114
      %p116 = scmp.ne.s32.totalorder %s104, %s105
      %p117 = scmp.eq.s32.totalorder %s32, 1
      %p118 = por %p116, %p117
      %p120 = scmp.ne.s32.totalorder %s105, %s119
      %p121 = scmp.eq.s32.totalorder %s32, 0
      %p122 = por %p120, %p121
      %s124 = sadd.s32 %s123, 1
      %p127 = scmp.eq.s32.totalorder %s26, 1
      %p128 = scmp.ne.s32.totalorder %s123, %s125
      %p129 = scmp.eq.s32.totalorder %s26, 0
      %p130 = por %p128, %p129
      %p131 = scmp.ne.s32.totalorder %s123, %s125
      %p132 = scmp.eq.s32.totalorder %s31, 1
      %p133 = por %p131, %p132
      %p134 = scmp.ne.s32.totalorder %s125, %s126
      %p135 = scmp.eq.s32.totalorder %s31, 0
      %p136 = por %p134, %p135
      %p137 = scmp.ne.s32.totalorder %s125, %s126
      %p138 = scmp.eq.s32.totalorder %s32, 1
      %p139 = por %p137, %p138
      %p141 = scmp.ne.s32.totalorder %s126, %s140
      %p142 = scmp.eq.s32.totalorder %s32, 0
      %p143 = por %p141, %p142
      %s145 = sadd.s32 %s144, 1
      %p148 = scmp.eq.s32.totalorder %s26, 1
      %p149 = scmp.ne.s32.totalorder %s144, %s146
      %p150 = scmp.eq.s32.totalorder %s26, 0
      %p151 = por %p149, %p150
      %p152 = scmp.ne.s32.totalorder %s144, %s146
      %p153 = scmp.eq.s32.totalorder %s31, 1
      %p154 = por %p152, %p153
      %p155 = scmp.ne.s32.totalorder %s146, %s147
      %p156 = scmp.eq.s32.totalorder %s31, 0
      %p157 = por %p155, %p156
      %p158 = scmp.ne.s32.totalorder %s146, %s147
      %p159 = scmp.eq.s32.totalorder %s32, 1
      %p160 = por %p158, %p159
      %p162 = scmp.ne.s32.totalorder %s147, %s161
      %p163 = scmp.eq.s32.totalorder %s32, 0
      %p164 = por %p162, %p163
      %s166 = sadd.s32 %s165, 1
      %p169 = scmp.eq.s32.totalorder %s26, 1
      %p170 = scmp.ne.s32.totalorder %s165, %s167
      %p171 = scmp.eq.s32.totalorder %s26, 0
      %p172 = por %p170, %p171
      %p173 = scmp.ne.s32.totalorder %s165, %s167
      %p174 = scmp.eq.s32.totalorder %s31, 1
      %p175 = por %p173, %p174
      %p176 = scmp.ne.s32.totalorder %s167, %s168
      %p177 = scmp.eq.s32.totalorder %s31, 0
      %p178 = por %p176, %p177
      %p179 = scmp.ne.s32.totalorder %s167, %s168
      %p180 = scmp.eq.s32.totalorder %s32, 1
      %p181 = por %p179, %p180
      %p183 = scmp.ne.s32.totalorder %s168, %s182
      %p184 = scmp.eq.s32.totalorder %s32, 0
      %p185 = por %p183, %p184
      %s187 = sadd.s32 %s186, 1
      %p190 = scmp.eq.s32.totalorder %s26, 1
      %p191 = scmp.ne.s32.totalorder %s186, %s188
      %p192 = scmp.eq.s32.totalorder %s26, 0
      %p193 = por %p191, %p192
      %p194 = scmp.ne.s32.totalorder %s186, %s188
      %p195 = scmp.eq.s32.totalorder %s31, 1
      %p196 = por %p194, %p195
      %p197 = scmp.ne.s32.totalorder %s188, %s189
      %p198 = scmp.eq.s32.totalorder %s31, 0
      %p199 = por %p197, %p198
      %p200 = scmp.ne.s32.totalorder %s188, %s189
      %p201 = scmp.eq.s32.totalorder %s32, 1
      %p202 = por %p200, %p201
      %p204 = scmp.ne.s32.totalorder %s189, %s203
      %p205 = scmp.eq.s32.totalorder %s32, 0
      %p206 = por %p204, %p205
      %s208 = sadd.s32 %s207, 1
      %p211 = scmp.eq.s32.totalorder %s26, 1
      %p212 = scmp.ne.s32.totalorder %s207, %s209
      %p213 = scmp.eq.s32.totalorder %s26, 0
      %p214 = por %p212, %p213
      %p215 = scmp.ne.s32.totalorder %s207, %s209
      %p216 = scmp.eq.s32.totalorder %s31, 1
      %p217 = por %p215, %p216
      %p218 = scmp.ne.s32.totalorder %s209, %s210
      %p219 = scmp.eq.s32.totalorder %s31, 0
      %p220 = por %p218, %p219
      %p221 = scmp.ne.s32.totalorder %s209, %s210
      %p222 = scmp.eq.s32.totalorder %s32, 1
      %p223 = por %p221, %p222
      %p225 = scmp.ne.s32.totalorder %s210, %s224
      %p226 = scmp.eq.s32.totalorder %s32, 0
      %p227 = por %p225, %p226
      %s229 = sadd.s32 %s228, 1
      %p232 = scmp.eq.s32.totalorder %s26, 1
      %p233 = scmp.ne.s32.totalorder %s228, %s230
      %p234 = scmp.eq.s32.totalorder %s26, 0
      %p235 = por %p233, %p234
      %p236 = scmp.ne.s32.totalorder %s228, %s230
      %p237 = scmp.eq.s32.totalorder %s31, 1
      %p238 = por %p236, %p237
      %p239 = scmp.ne.s32.totalorder %s230, %s231
      %p240 = scmp.eq.s32.totalorder %s31, 0
      %p241 = por %p239, %p240
      %p242 = scmp.ne.s32.totalorder %s230, %s231
      %p243 = scmp.eq.s32.totalorder %s32, 1
      %p244 = por %p242, %p243
      %p246 = scmp.ne.s32.totalorder %s231, %s245
      %p247 = scmp.eq.s32.totalorder %s32, 0
      %p248 = por %p246, %p247
      %s250 = sadd.s32 %s249, 1
      %p253 = scmp.eq.s32.totalorder %s26, 1
      %p254 = scmp.ne.s32.totalorder %s249, %s251
      %p255 = scmp.eq.s32.totalorder %s26, 0
      %p256 = por %p254, %p255
      %p257 = scmp.ne.s32.totalorder %s249, %s251
      %p258 = scmp.eq.s32.totalorder %s31, 1
      %p259 = por %p257, %p258
      %p260 = scmp.ne.s32.totalorder %s251, %s252
      %p261 = scmp.eq.s32.totalorder %s31, 0
      %p262 = por %p260, %p261
      %p263 = scmp.ne.s32.totalorder %s251, %s252
      %p264 = scmp.eq.s32.totalorder %s32, 1
      %p265 = por %p263, %p264
      %p267 = scmp.ne.s32.totalorder %s252, %s266
      %p268 = scmp.eq.s32.totalorder %s32, 0
      %p269 = por %p267, %p268
      %s271 = sadd.s32 %s270, 1
      %p274 = scmp.eq.s32.totalorder %s26, 1
      %p275 = scmp.ne.s32.totalorder %s270, %s272
      %p276 = scmp.eq.s32.totalorder %s26, 0
      %p277 = por %p275, %p276
      %p278 = scmp.ne.s32.totalorder %s270, %s272
      %p279 = scmp.eq.s32.totalorder %s31, 1
      %p280 = por %p278, %p279
      %p281 = scmp.ne.s32.totalorder %s272, %s273
      %p282 = scmp.eq.s32.totalorder %s31, 0
      %p283 = por %p281, %p282
      %p284 = scmp.ne.s32.totalorder %s272, %s273
      %p285 = scmp.eq.s32.totalorder %s32, 1
      %p286 = por %p284, %p285
      %p288 = scmp.ne.s32.totalorder %s273, %s287
      %p289 = scmp.eq.s32.totalorder %s32, 0
      %p290 = por %p288, %p289
      %s291 = ssub.s32 %s26, %s33
      %p292 = scmp.eq.s32.totalorder %s291, 0
      %s294 = sadd.s32 %s293, 1
      %s295 = scalar_select %p292, %s293, %s294
      %p298 = pneg %p292
      %p299 = scmp.eq.s32.totalorder %s26, 1
      %p300 = por %p298, %p299
      %p301 = scmp.ne.s32.totalorder %s293, %s296
      %p302 = scmp.eq.s32.totalorder %s26, 0
      %p303 = por %p301, %p302
      %p304 = scmp.ne.s32.totalorder %s293, %s296
      %p305 = scmp.eq.s32.totalorder %s31, 1
      %p306 = por %p304, %p305
      %p307 = scmp.ne.s32.totalorder %s296, %s297
      %p308 = scmp.eq.s32.totalorder %s31, 0
      %p309 = por %p307, %p308
      %p310 = scmp.ne.s32.totalorder %s296, %s297
      %p311 = scmp.eq.s32.totalorder %s32, 1
      %p312 = por %p310, %p311
      %p314 = scmp.ne.s32.totalorder %s297, %s313
      %p315 = scmp.eq.s32.totalorder %s32, 0
      %p316 = por %p314, %p315
      %p317 = scmp.le.s32.totalorder 1, %s26
      %p318 = scmp.lt.s32.totalorder %s26, 3
      %p319 = pnand %p317, %p318
      %p320 = pneg %p319
      // Predicated region
      $region9: #{tpu_custom_call.1} parent=5 // pred_check
        _
      $region10: #{tpu_custom_call.1} parent=5 // pred_check_branch
        %322 = sbr.rel (%p319) target = $region12
      $region11: #{tpu_custom_call.1} parent=5 // pred_region
        %s323 = ssub.s32 %s26, 1
        // Predicated region
        $region13: #{tpu_custom_call.1} parent=11 // pred_check
          %p324 = pneg %p73
        $region14: #{tpu_custom_call.1} parent=11 // pred_check_branch
          %326 = sbr.rel (%p324) target = $region16
        $region15: #{tpu_custom_call.1} parent=11 // pred_region
          %s328 = ssub.s32 3072, 3072
          %329 = vsyncadd [#allocation6], %s328
          %s330 = sshll.u32 [#allocation5], 4
          %s331 = int_to_ptr.vmem [resolvable:$true] %s330
          %336 = dma.hbm_to_vmem [thread:$0]  %s1, 3072, %s331, [#allocation6], 192, 192, 12
        $region16: #{tpu_custom_call.1} parent=11 // pred_fallthru
          _
        // Predicated region
        $region17: #{tpu_custom_call.1} parent=11 // pred_check
          %p337 = pneg %p94
        $region18: #{tpu_custom_call.1} parent=11 // pred_check_branch
          %339 = sbr.rel (%p337) target = $region20
        $region19: #{tpu_custom_call.1} parent=11 // pred_region
          %s341 = ssub.s32 1024, 1024
          %342 = vsyncadd [#allocation6], %s341
          %s343 = sshll.u32 [#allocation7], 4
          %s344 = int_to_ptr.vmem [resolvable:$true] %s343
          %349 = dma.hbm_to_vmem [thread:$0]  %s2, 1024, %s344, [#allocation6], 64, 64, 4
        $region20: #{tpu_custom_call.1} parent=11 // pred_fallthru
          _
        // Predicated region
        $region21: #{tpu_custom_call.1} parent=11 // pred_check
          %p350 = pneg %p115
        $region22: #{tpu_custom_call.1} parent=11 // pred_check_branch
          %352 = sbr.rel (%p350) target = $region24
        $region23: #{tpu_custom_call.1} parent=11 // pred_region
          _
        $region24: #{tpu_custom_call.1} parent=11 // pred_fallthru
          _
        // Predicated region
        $region25: #{tpu_custom_call.1} parent=11 // pred_check
          %p353 = pneg %p136
        $region26: #{tpu_custom_call.1} parent=11 // pred_check_branch
          %355 = sbr.rel (%p353) target = $region28
        $region27: #{tpu_custom_call.1} parent=11 // pred_region
          _
        $region28: #{tpu_custom_call.1} parent=11 // pred_fallthru
          _
        // Predicated region
        $region29: #{tpu_custom_call.1} parent=11 // pred_check
          %p356 = pneg %p157
        $region30: #{tpu_custom_call.1} parent=11 // pred_check_branch
          %358 = sbr.rel (%p356) target = $region32
        $region31: #{tpu_custom_call.1} parent=11 // pred_region
          _
        $region32: #{tpu_custom_call.1} parent=11 // pred_fallthru
          _
        // Predicated region
        $region33: #{tpu_custom_call.1} parent=11 // pred_check
          %p359 = pneg %p178
        $region34: #{tpu_custom_call.1} parent=11 // pred_check_branch
          %361 = sbr.rel (%p359) target = $region36
        $region35: #{tpu_custom_call.1} parent=11 // pred_region
          %s363 = ssub.s32 4096, 4096
          %364 = vsyncadd [#allocation9], %s363
          %s365 = sshll.u32 [#allocation8], 4
          %s366 = int_to_ptr.vmem [resolvable:$true] %s365
          %371 = dma.hbm_to_vmem [thread:$0]  %s6, 4096, %s366, [#allocation9], 256, 256, 16
        $region36: #{tpu_custom_call.1} parent=11 // pred_fallthru
          _
        // Predicated region
        $region37: #{tpu_custom_call.1} parent=11 // pred_check
          %p372 = pneg %p199
        $region38: #{tpu_custom_call.1} parent=11 // pred_check_branch
          %374 = sbr.rel (%p372) target = $region40
        $region39: #{tpu_custom_call.1} parent=11 // pred_region
          _
        $region40: #{tpu_custom_call.1} parent=11 // pred_fallthru
          _
        // Predicated region
        $region41: #{tpu_custom_call.1} parent=11 // pred_check
          %p375 = pneg %p220
        $region42: #{tpu_custom_call.1} parent=11 // pred_check_branch
          %377 = sbr.rel (%p375) target = $region44
        $region43: #{tpu_custom_call.1} parent=11 // pred_region
          %s379 = ssub.s32 4096, 4096
          %380 = vsyncadd [#allocation9], %s379
          %s381 = sshll.u32 [#allocation10], 4
          %s382 = int_to_ptr.vmem [resolvable:$true] %s381
          %387 = dma.hbm_to_vmem [thread:$0]  %s8, 4096, %s382, [#allocation9], 64, 64, 4
        $region44: #{tpu_custom_call.1} parent=11 // pred_fallthru
          _
        // Predicated region
        $region45: #{tpu_custom_call.1} parent=11 // pred_check
          %p388 = pneg %p241
        $region46: #{tpu_custom_call.1} parent=11 // pred_check_branch
          %390 = sbr.rel (%p388) target = $region48
        $region47: #{tpu_custom_call.1} parent=11 // pred_region
          _
        $region48: #{tpu_custom_call.1} parent=11 // pred_fallthru
          _
        // Predicated region
        $region49: #{tpu_custom_call.1} parent=11 // pred_check
          %p391 = pneg %p262
        $region50: #{tpu_custom_call.1} parent=11 // pred_check_branch
          %393 = sbr.rel (%p391) target = $region52
        $region51: #{tpu_custom_call.1} parent=11 // pred_region
          _
        $region52: #{tpu_custom_call.1} parent=11 // pred_fallthru
          _
        // Predicated region
        $region53: #{tpu_custom_call.1} parent=11 // pred_check
          %p394 = pneg %p283
        $region54: #{tpu_custom_call.1} parent=11 // pred_check_branch
          %396 = sbr.rel (%p394) target = $region56
        $region55: #{tpu_custom_call.1} parent=11 // pred_region
          _
        $region56: #{tpu_custom_call.1} parent=11 // pred_fallthru
          _
      $region12: #{tpu_custom_call.1} parent=5 // pred_fallthru
        _
      %p397 = scmp.lt.s32.totalorder %s26, 2
      // Predicated region
      $region57: #{tpu_custom_call.1} parent=5 // pred_check
        %p398 = pneg %p397
      $region58: #{tpu_custom_call.1} parent=5 // pred_check_branch
        %400 = sbr.rel (%p398) target = $region60
      $region59: #{tpu_custom_call.1} parent=5 // pred_region
        // Predicated region
        $region61: #{tpu_custom_call.1} parent=59 // pred_check
          %p401 = pneg %p46
        $region62: #{tpu_custom_call.1} parent=59 // pred_check_branch
          %403 = sbr.rel (%p401) target = $region64
        $region63: #{tpu_custom_call.1} parent=59 // pred_region
          %s404 = sand.u32 %s36, 1
          %s405 = scalar_lea.sflag [#allocation3], %s404
          %s406 = sand.u32 %s36, 1
          %s407 = smul.addr %s406, 32
          %s408 = scalar_lea.vmem [#allocation2], %s407
          %s409 = smul.u32 2, %s26
          %s411 = ssub.s32 512, 512
          %412 = vsyncadd %s405, %s411
          %s413 = smul.addr %s409, 2
          %s414 = smul.addr %s413, 128
          %s415 = scalar_lea.hbm %s0, %s414
          %s416 = sshll.u32 %s408, 4
          %s417 = int_to_ptr.vmem [resolvable:$true] %s416
          %422 = dma.hbm_to_vmem [thread:$0]  %s415, 512, %s417, %s405, 128, 128, 8
        $region64: #{tpu_custom_call.1} parent=59 // pred_fallthru
          _
      $region60: #{tpu_custom_call.1} parent=5 // pred_fallthru
        _
      %p423 = scmp.le.s32.totalorder 1, %s26
      %p424 = scmp.lt.s32.totalorder %s26, 3
      %p425 = pnand %p423, %p424
      %p426 = pneg %p425
      // Predicated region
      $region65: #{tpu_custom_call.1} parent=5 // pred_check
        _
      $region66: #{tpu_custom_call.1} parent=5 // pred_check_branch
        %428 = sbr.rel (%p425) target = $region68
      $region67: #{tpu_custom_call.1} parent=5 // pred_region
        %s429 = ssub.s32 %s26, 1
        %s430 = sand.u32 %s39, 1
        %s431 = scalar_lea.sflag [#allocation3], %s430
        %s432 = sand.u32 %s39, 1
        %s433 = smul.addr %s432, 32
        %s434 = scalar_lea.vmem [#allocation2], %s433
        // Predicated region
        $region69: #{tpu_custom_call.1} parent=67 // pred_check
          %p435 = pneg %p52
        $region70: #{tpu_custom_call.1} parent=67 // pred_check_branch
          %437 = sbr.rel (%p435) target = $region72
        $region71: #{tpu_custom_call.1} parent=67 // pred_region
          %438 = dma.done %s431, 512
        $region72: #{tpu_custom_call.1} parent=67 // pred_fallthru
          _
        // Predicated region
        $region73: #{tpu_custom_call.1} parent=67 // pred_check
          %p439 = pneg %p73
        $region74: #{tpu_custom_call.1} parent=67 // pred_check_branch
          %441 = sbr.rel (%p439) target = $region76
        $region75: #{tpu_custom_call.1} parent=67 // pred_region
          %442 = dma.done [#allocation6], 3072
        $region76: #{tpu_custom_call.1} parent=67 // pred_fallthru
          _
        // Predicated region
        $region77: #{tpu_custom_call.1} parent=67 // pred_check
          %p443 = pneg %p94
        $region78: #{tpu_custom_call.1} parent=67 // pred_check_branch
          %445 = sbr.rel (%p443) target = $region80
        $region79: #{tpu_custom_call.1} parent=67 // pred_region
          %446 = dma.done [#allocation6], 1024
        $region80: #{tpu_custom_call.1} parent=67 // pred_fallthru
          _
        // Predicated region
        $region81: #{tpu_custom_call.1} parent=67 // pred_check
          %p447 = pneg %p178
        $region82: #{tpu_custom_call.1} parent=67 // pred_check_branch
          %449 = sbr.rel (%p447) target = $region84
        $region83: #{tpu_custom_call.1} parent=67 // pred_region
          %450 = dma.done [#allocation9], 4096
        $region84: #{tpu_custom_call.1} parent=67 // pred_fallthru
          _
        // Predicated region
        $region85: #{tpu_custom_call.1} parent=67 // pred_check
          %p451 = pneg %p220
        $region86: #{tpu_custom_call.1} parent=67 // pred_check_branch
          %453 = sbr.rel (%p451) target = $region88
        $region87: #{tpu_custom_call.1} parent=67 // pred_region
          %454 = dma.done [#allocation9], 4096
        $region88: #{tpu_custom_call.1} parent=67 // pred_fallthru
          _
        %s455 = sand.u32 %s39, 1
        %s456 = scalar_lea.sflag [#allocation3], %s455
        %s457 = sand.u32 %s39, 1
        %s458 = smul.addr %s457, 32
        %s459 = scalar_lea.vmem [#allocation2], %s458
        %p460 = pneg %p52
        %p461 = pneg %p49
        %p462 = pneg %p73
        %p463 = pneg %p70
        %p464 = pneg %p94
        %p465 = pneg %p91
        %p466 = pneg %p115
        %p467 = pneg %p112
        %p468 = pneg %p136
        %p469 = pneg %p133
        %p470 = pneg %p157
        %p471 = pneg %p154
        %p472 = pneg %p178
        %p473 = pneg %p175
        %p474 = pneg %p199
        %p475 = pneg %p196
        %p476 = pneg %p220
        %p477 = pneg %p217
        %p478 = pneg %p241
        %p479 = pneg %p238
        %p480 = pneg %p262
        %p481 = pneg %p259
        %p482 = pneg %p283
        %p483 = pneg %p280
        %p484 = pneg %p309
        %p485 = pneg %p306
        %s486 = sand.u32 %s296, 1
        %s487 = scalar_lea.sflag [#allocation4], %s486
        %s488 = sand.u32 %s296, 1
        %s489 = smul.addr %s488, 32
        %s490 = scalar_lea.vmem [#allocation11], %s489
        %s491 = smul.u32 2, %s31
        %s492 = smul.u32 2, %s31
        %v494 = vld [vmem:[%s434] sm:$0xff]
        %v495 = vld [vmem:[%s434 + $0x8] sm:$0xff]
        %v496 = vld [vmem:[%s434 + $0x10] sm:$0xff]
        %v497 = vld [vmem:[%s434 + $0x18] sm:$0xff]
        %v498 = vpack.c.bf16 %v495, %v494
        %v499 = vpack.c.bf16 %v497, %v496
        %v500 = vld [vmem:[#allocation5] sm:$0xff]
        %v501 = vld [vmem:[#allocation5 + $0x8] sm:$0xf]
        %v502 = vld [vmem:[#allocation5 + $0xc] sm:$0xff]
        %v503 = vld [vmem:[#allocation5 + $0x14] sm:$0xf]
        %v504 = vld [vmem:[#allocation5 + $0x18] sm:$0xff]
        %v505 = vld [vmem:[#allocation5 + $0x20] sm:$0xf]
        %v506 = vld [vmem:[#allocation5 + $0x24] sm:$0xff]
        %v507 = vld [vmem:[#allocation5 + $0x2c] sm:$0xf]
        %v508 = vld [vmem:[#allocation5 + $0x30] sm:$0xff]
        %v509 = vld [vmem:[#allocation5 + $0x38] sm:$0xf]
        %v510 = vld [vmem:[#allocation5 + $0x3c] sm:$0xff]
        %v511 = vld [vmem:[#allocation5 + $0x44] sm:$0xf]
        %v512 = vld [vmem:[#allocation5 + $0x48] sm:$0xff]
        %v513 = vld [vmem:[#allocation5 + $0x50] sm:$0xf]
        %v514 = vld [vmem:[#allocation5 + $0x54] sm:$0xff]
        %v515 = vld [vmem:[#allocation5 + $0x5c] sm:$0xf]
        %v516 = vld [vmem:[#allocation5 + $0x60] sm:$0xff]
        %v517 = vld [vmem:[#allocation5 + $0x68] sm:$0xf]
        %v518 = vld [vmem:[#allocation5 + $0x6c] sm:$0xff]
        %v519 = vld [vmem:[#allocation5 + $0x74] sm:$0xf]
        %v520 = vld [vmem:[#allocation5 + $0x78] sm:$0xff]
        %v521 = vld [vmem:[#allocation5 + $0x80] sm:$0xf]
        %v522 = vld [vmem:[#allocation5 + $0x84] sm:$0xff]
        %v523 = vld [vmem:[#allocation5 + $0x8c] sm:$0xf]
        %v524 = vld [vmem:[#allocation5 + $0x90] sm:$0xff]
        %v525 = vld [vmem:[#allocation5 + $0x98] sm:$0xf]
        %v526 = vld [vmem:[#allocation5 + $0x9c] sm:$0xff]
        %v527 = vld [vmem:[#allocation5 + $0xa4] sm:$0xf]
        %v528 = vld [vmem:[#allocation5 + $0xa8] sm:$0xff]
        %v529 = vld [vmem:[#allocation5 + $0xb0] sm:$0xf]
        %v530 = vld [vmem:[#allocation5 + $0xb4] sm:$0xff]
        %v531 = vld [vmem:[#allocation5 + $0xbc] sm:$0xf]
        %v564 = vunpack.c.l.b16 %v500
        %v565 = vunpack.c.h.b16 %v500
        %v566 = vunpack.c.l.b16 %v501
        %v567 = vunpack.c.l.b16 %v502
        %v568 = vunpack.c.h.b16 %v502
        %v569 = vunpack.c.l.b16 %v503
        %v570 = vunpack.c.l.b16 %v504
        %v571 = vunpack.c.h.b16 %v504
        %v572 = vunpack.c.l.b16 %v505
        %v573 = vunpack.c.l.b16 %v506
        %v574 = vunpack.c.h.b16 %v506
        %v575 = vunpack.c.l.b16 %v507
        %v576 = vunpack.c.l.b16 %v508
        %v577 = vunpack.c.h.b16 %v508
        %v578 = vunpack.c.l.b16 %v509
        %v579 = vunpack.c.l.b16 %v510
        %v580 = vunpack.c.h.b16 %v510
        %v581 = vunpack.c.l.b16 %v511
        %v582 = vunpack.c.l.b16 %v512
        %v583 = vunpack.c.h.b16 %v512
        %v584 = vunpack.c.l.b16 %v513
        %v585 = vunpack.c.l.b16 %v514
        %v586 = vunpack.c.h.b16 %v514
        %v587 = vunpack.c.l.b16 %v515
        %v588 = vunpack.c.l.b16 %v516
        %v589 = vunpack.c.h.b16 %v516
        %v590 = vunpack.c.l.b16 %v517
        %v591 = vunpack.c.l.b16 %v518
        %v592 = vunpack.c.h.b16 %v518
        %v593 = vunpack.c.l.b16 %v519
        %v594 = vunpack.c.l.b16 %v520
        %v595 = vunpack.c.h.b16 %v520
        %v596 = vunpack.c.l.b16 %v521
        %v597 = vunpack.c.l.b16 %v522
        %v598 = vunpack.c.h.b16 %v522
        %v599 = vunpack.c.l.b16 %v523
        %v600 = vunpack.c.l.b16 %v524
        %v601 = vunpack.c.h.b16 %v524
        %v602 = vunpack.c.l.b16 %v525
        %v603 = vunpack.c.l.b16 %v526
        %v604 = vunpack.c.h.b16 %v526
        %v605 = vunpack.c.l.b16 %v527
        %v606 = vunpack.c.l.b16 %v528
        %v607 = vunpack.c.h.b16 %v528
        %v608 = vunpack.c.l.b16 %v529
        %v609 = vunpack.c.l.b16 %v530
        %v610 = vunpack.c.h.b16 %v530
        %v611 = vunpack.c.l.b16 %v531
        %v612 = vpack.c.b16 %v567, %v564
        %v613 = vpack.c.b16 %v568, %v565
        %v614 = vpack.c.b16 %v569, %v566
        %v615 = vpack.c.b16 %v573, %v570
        %v616 = vpack.c.b16 %v574, %v571
        %v617 = vpack.c.b16 %v575, %v572
        %v618 = vpack.c.b16 %v579, %v576
        %v619 = vpack.c.b16 %v580, %v577
        %v620 = vpack.c.b16 %v581, %v578
        %v621 = vpack.c.b16 %v585, %v582
        %v622 = vpack.c.b16 %v586, %v583
        %v623 = vpack.c.b16 %v587, %v584
        %v624 = vpack.c.b16 %v591, %v588
        %v625 = vpack.c.b16 %v592, %v589
        %v626 = vpack.c.b16 %v593, %v590
        %v627 = vpack.c.b16 %v597, %v594
        %v628 = vpack.c.b16 %v598, %v595
        %v629 = vpack.c.b16 %v599, %v596
        %v630 = vpack.c.b16 %v603, %v600
        %v631 = vpack.c.b16 %v604, %v601
        %v632 = vpack.c.b16 %v605, %v602
        %v633 = vpack.c.b16 %v609, %v606
        %v634 = vpack.c.b16 %v610, %v607
        %v635 = vpack.c.b16 %v611, %v608
        %660 = vmatprep.subr.bf16.mxu0 %v613
        %661 = vmatpush1.bf16.msra.mxu0 %v612
        %662 = vmatprep.subr.bf16.mxu0 %v616
        %663 = vmatpush1.bf16.msra.mxu0 %v615
        %664 = vmatprep.subr.bf16.mxu0 %v619
        %665 = vmatpush1.bf16.msra.mxu0 %v618
        %666 = vmatprep.subr.bf16.mxu0 %v622
        %667 = vmatpush1.bf16.msra.mxu0 %v621
        %668 = vmatprep.subr.bf16.mxu0 %v625
        %669 = vmatpush1.bf16.msra.mxu0 %v624
        %670 = vmatprep.subr.bf16.mxu0 %v628
        %671 = vmatpush1.bf16.msra.mxu0 %v627
        %672 = vmatprep.subr.bf16.mxu0 %v631
        %673 = vmatpush1.bf16.msra.mxu0 %v630
        %674 = vmatprep.subr.bf16.mxu0 %v634
        %675 = vmatpush1.bf16.msra.mxu0 %v633
        %676 = vmatprep.subr.bf16.mxu0 0
        %677 = vmatpush1.bf16.msra.mxu0 0
        %678 = vmatprep.subr.bf16.mxu0 0
        %679 = vmatpush1.bf16.msra.mxu0 0
        %680 = vmatprep.subr.bf16.mxu0 0
        %681 = vmatpush1.bf16.msra.mxu0 0
        %682 = vmatprep.subr.bf16.mxu0 0
        %683 = vmatpush1.bf16.msra.mxu0 0
        %684 = vmatprep.subr.bf16.mxu0 0
        %685 = vmatpush1.bf16.msra.mxu0 0
        %686 = vmatprep.subr.bf16.mxu0 0
        %687 = vmatpush1.bf16.msra.mxu0 0
        %688 = vmatprep.subr.bf16.mxu0 0
        %689 = vmatpush1.bf16.msra.mxu0 0
        %690 = vmatprep.subr.bf16.mxu0 0
        %691 = vmatpush1.bf16.msra.mxu0 0
        %692 = vmatprep.mubr.bf16.mxu0 0
        %693 = vmatmul.mubr.bf16.gmra.mrb[0].mxu0 %v498
        %v694 = vpop.f32.mrb[0].mxu0
        %v695 = vadd.f32 0.0, %v694
        %v696 = vpop.f32.mrb[0].mxu0
        %v697 = vadd.f32 0.0, %v696
        %v698 = vpop.f32.mrb[0].mxu0
        %v699 = vadd.f32 0.0, %v698
        %v700 = vpop.f32.mrb[0].mxu0
        %v701 = vadd.f32 0.0, %v700
        %702 = vmatprep.mubr.bf16.mxu0 0
        %703 = vmatmul.mubr.bf16.gmra.mrb[0].mxu0 %v499
        %v704 = vpop.f32.mrb[0].mxu0
        %v705 = vadd.f32 0.0, %v704
        %v706 = vpop.f32.mrb[0].mxu0
        %v707 = vadd.f32 0.0, %v706
        %v708 = vpop.f32.mrb[0].mxu0
        %v709 = vadd.f32 0.0, %v708
        %v710 = vpop.f32.mrb[0].mxu0
        %v711 = vadd.f32 0.0, %v710
        %712 = vdwg.mxu0
        %713 = vmatprep.subr.bf16.mxu0 0
        %714 = vmatpush1.bf16.msra.mxu0 %v614
        %715 = vmatprep.subr.bf16.mxu0 0
        %716 = vmatpush1.bf16.msra.mxu0 %v617
        %717 = vmatprep.subr.bf16.mxu0 0
        %718 = vmatpush1.bf16.msra.mxu0 %v620
        %719 = vmatprep.subr.bf16.mxu0 0
        %720 = vmatpush1.bf16.msra.mxu0 %v623
        %721 = vmatprep.subr.bf16.mxu0 0
        %722 = vmatpush1.bf16.msra.mxu0 %v626
        %723 = vmatprep.subr.bf16.mxu0 0
        %724 = vmatpush1.bf16.msra.mxu0 %v629
        %725 = vmatprep.subr.bf16.mxu0 0
        %726 = vmatpush1.bf16.msra.mxu0 %v632
        %727 = vmatprep.subr.bf16.mxu0 0
        %728 = vmatpush1.bf16.msra.mxu0 %v635
        %729 = vmatprep.subr.bf16.mxu0 0
        %730 = vmatpush1.bf16.msra.mxu0 0
        %731 = vmatprep.subr.bf16.mxu0 0
        %732 = vmatpush1.bf16.msra.mxu0 0
        %733 = vmatprep.subr.bf16.mxu0 0
        %734 = vmatpush1.bf16.msra.mxu0 0
        %735 = vmatprep.subr.bf16.mxu0 0
        %736 = vmatpush1.bf16.msra.mxu0 0
        %737 = vmatprep.subr.bf16.mxu0 0
        %738 = vmatpush1.bf16.msra.mxu0 0
        %739 = vmatprep.subr.bf16.mxu0 0
        %740 = vmatpush1.bf16.msra.mxu0 0
        %741 = vmatprep.subr.bf16.mxu0 0
        %742 = vmatpush1.bf16.msra.mxu0 0
        %743 = vmatprep.subr.bf16.mxu0 0
        %744 = vmatpush1.bf16.msra.mxu0 0
        %745 = vmatprep.mubr.bf16.mxu0 0
        %746 = vmatmul.mubr.bf16.gmra.mrb[0].mxu0 %v498
        %v747 = vpop.f32.mrb[0].mxu0
        %v748 = vadd.f32 0.0, %v747
        %v749 = vpop.f32.mrb[0].mxu0
        %v750 = vpop.f32.mrb[0].mxu0
        %v751 = vadd.f32 0.0, %v750
        %v752 = vpop.f32.mrb[0].mxu0
        %753 = vmatprep.mubr.bf16.mxu0 0
        %754 = vmatmul.mubr.bf16.gmra.mrb[0].mxu0 %v499
        %v755 = vpop.f32.mrb[0].mxu0
        %v756 = vadd.f32 0.0, %v755
        %v757 = vpop.f32.mrb[0].mxu0
        %v758 = vpop.f32.mrb[0].mxu0
        %v759 = vadd.f32 0.0, %v758
        %v760 = vpop.f32.mrb[0].mxu0
        %761 = vdwg.mxu0
        %v762 = vpack.c.bf16 %v699, %v695
        %v763 = vpack.c.bf16 %v701, %v697
        %v764 = vpack.c.bf16 %v751, %v748
        %v765 = vpack.c.bf16 %v709, %v705
        %v766 = vpack.c.bf16 %v711, %v707
        %v767 = vpack.c.bf16 %v759, %v756
        %vm768 = vcmask 261120
        %v770 = vsel %vm768, %v762, 0
        %v773 = vsel %vm768, %v763, 0
        %775 = vmatprep.subr.bf16.mxu0 0
        %776 = vmatpush1.bf16.xpose.msra.mxu0 %v773
        %777 = vmatprep.subr.bf16.mxu0 0
        %778 = vmatpush1.bf16.xpose.msra.mxu0 0
        %779 = vmatprep.subr.bf16.mxu0 0
        %780 = vmatpush1.bf16.xpose.msra.mxu0 0
        %781 = vmatprep.subr.bf16.mxu0 0
        %782 = vmatpush1.bf16.xpose.msra.mxu0 0
        %783 = vmatprep.subr.bf16.mxu0 0
        %784 = vmatpush1.bf16.xpose.msra.mxu0 0
        %785 = vmatprep.subr.bf16.mxu0 0
        %786 = vmatpush1.bf16.xpose.msra.mxu0 0
        %787 = vmatprep.subr.bf16.mxu0 0
        %788 = vmatpush1.bf16.xpose.msra.mxu0 0
        %789 = vmatprep.subr.bf16.mxu0 0
        %790 = vmatpush1.bf16.xpose.msra.mxu0 0
        %791 = vmatprep.subr.bf16.mxu0 0
        %792 = vmatpush1.bf16.xpose.msra.mxu0 0
        %793 = vmatprep.subr.bf16.mxu0 0
        %794 = vmatpush1.bf16.xpose.msra.mxu0 0
        %795 = vmatprep.subr.bf16.mxu0 0
        %796 = vmatpush1.bf16.xpose.msra.mxu0 0
        %797 = vmatprep.subr.bf16.mxu0 0
        %798 = vmatpush1.bf16.xpose.msra.mxu0 0
        %799 = vmatprep.subr.bf16.mxu0 0
        %800 = vmatpush1.bf16.xpose.msra.mxu0 0
        %801 = vmatprep.subr.bf16.mxu0 0
        %802 = vmatpush1.bf16.xpose.msra.mxu0 0
        %803 = vmatprep.subr.bf16.mxu0 0
        %804 = vmatpush1.bf16.xpose.msra.mxu0 0
        %805 = vmatprep.subr.bf16.mxu0 0
        %806 = vmatpush1.bf16.xpose.msra.mxu0 0
        %807 = vmatprep.mubr.bf16.mxu0 0
        %808 = vmatmul.mubr.bf16.gmra.mrb[0].mxu0 %v770
        %v809 = vpop.f32.mrb[0].mxu0
        %v810 = vadd.f32 0.0, %v809
        %v811 = vpop.f32.mrb[0].mxu0
        %v812 = vpop.f32.mrb[0].mxu0
        %v813 = vadd.f32 0.0, %v812
        %v814 = vpop.f32.mrb[0].mxu0
        %815 = vdwg.mxu0
        %v817 = vsel %vm768, %v765, 0
        %v820 = vsel %vm768, %v766, 0
        %822 = vmatprep.subr.bf16.mxu0 0
        %823 = vmatpush1.bf16.xpose.msra.mxu0 %v820
        %824 = vmatprep.subr.bf16.mxu0 0
        %825 = vmatpush1.bf16.xpose.msra.mxu0 0
        %826 = vmatprep.subr.bf16.mxu0 0
        %827 = vmatpush1.bf16.xpose.msra.mxu0 0
        %828 = vmatprep.subr.bf16.mxu0 0
        %829 = vmatpush1.bf16.xpose.msra.mxu0 0
        %830 = vmatprep.subr.bf16.mxu0 0
        %831 = vmatpush1.bf16.xpose.msra.mxu0 0
        %832 = vmatprep.subr.bf16.mxu0 0
        %833 = vmatpush1.bf16.xpose.msra.mxu0 0
        %834 = vmatprep.subr.bf16.mxu0 0
        %835 = vmatpush1.bf16.xpose.msra.mxu0 0
        %836 = vmatprep.subr.bf16.mxu0 0
        %837 = vmatpush1.bf16.xpose.msra.mxu0 0
        %838 = vmatprep.subr.bf16.mxu0 0
        %839 = vmatpush1.bf16.xpose.msra.mxu0 0
        %840 = vmatprep.subr.bf16.mxu0 0
        %841 = vmatpush1.bf16.xpose.msra.mxu0 0
        %842 = vmatprep.subr.bf16.mxu0 0
        %843 = vmatpush1.bf16.xpose.msra.mxu0 0
        %844 = vmatprep.subr.bf16.mxu0 0
        %845 = vmatpush1.bf16.xpose.msra.mxu0 0
        %846 = vmatprep.subr.bf16.mxu0 0
        %847 = vmatpush1.bf16.xpose.msra.mxu0 0
        %848 = vmatprep.subr.bf16.mxu0 0
        %849 = vmatpush1.bf16.xpose.msra.mxu0 0
        %850 = vmatprep.subr.bf16.mxu0 0
        %851 = vmatpush1.bf16.xpose.msra.mxu0 0
        %852 = vmatprep.subr.bf16.mxu0 0
        %853 = vmatpush1.bf16.xpose.msra.mxu0 0
        %854 = vmatprep.mubr.bf16.mxu0 0
        %855 = vmatmul.mubr.bf16.gmra.mrb[0].mxu0 %v817
        %v856 = vpop.f32.mrb[0].mxu0
        %v857 = vadd.f32 0.0, %v856
        %v858 = vpop.f32.mrb[0].mxu0
        %v859 = vpop.f32.mrb[0].mxu0
        %v860 = vadd.f32 0.0, %v859
        %v861 = vpop.f32.mrb[0].mxu0
        %862 = vdwg.mxu0
        %vm863 = vcmask 130048
        %v864 = vsel %vm863, %v810, -inf
        %865 = vmax.xlane.f32.xlu0 %v864
        %v866 = vpop.xlane.xlu0 %865
        %v867 = vsel %vm863, %v813, -inf
        %868 = vmax.xlane.f32.xlu0 %v867
        %v869 = vpop.xlane.xlu0 %868
        %v870 = vsel %vm863, %v857, -inf
        %871 = vmax.xlane.f32.xlu0 %v870
        %v872 = vpop.xlane.xlu0 %871
        %v873 = vsel %vm863, %v860, -inf
        %874 = vmax.xlane.f32.xlu0 %v873
        %v875 = vpop.xlane.xlu0 %874
        %v876 = vsub.f32 %v810, %v866
        %v877 = vsub.f32 %v813, %v869
        %v878 = vsub.f32 %v857, %v872
        %v879 = vsub.f32 %v860, %v875
        %v880 = vmul.f32 %v876, 1.442695
        %v881 = vpow.pop %v880
        %v882 = vmul.f32 %v877, 1.442695
        %v883 = vpow.pop %v882
        %v884 = vmul.f32 %v878, 1.442695
        %v885 = vpow.pop %v884
        %v886 = vmul.f32 %v879, 1.442695
        %v887 = vpow.pop %v886
        %v888 = vsel %vm863, %v881, 0.0
        %889 = vadd.xlane.f32.xlu0 %v888
        %v890 = vpop.xlane.xlu0 %889
        %v891 = vsel %vm863, %v883, 0.0
        %892 = vadd.xlane.f32.xlu0 %v891
        %v893 = vpop.xlane.xlu0 %892
        %v894 = vsel %vm863, %v885, 0.0
        %895 = vadd.xlane.f32.xlu0 %v894
        %v896 = vpop.xlane.xlu0 %895
        %v897 = vsel %vm863, %v887, 0.0
        %898 = vadd.xlane.f32.xlu0 %v897
        %v899 = vpop.xlane.xlu0 %898
        %v900 = vrcp.pop %v890
        %v901 = vrcp.pop %v893
        %v902 = vrcp.pop %v896
        %v903 = vrcp.pop %v899
        %v904 = vmul.f32 %v881, %v900
        %v905 = vmul.f32 %v883, %v901
        %v906 = vmul.f32 %v885, %v902
        %v907 = vmul.f32 %v887, %v903
        %v908 = vpack.c.bf16 %v905, %v904
        %v909 = vpack.c.bf16 %v907, %v906
        %v911 = vsel %vm863, %v908, 0
        %913 = vmatprep.subr.bf16.mxu0 0
        %914 = vmatpush1.bf16.msra.mxu0 %v764
        %915 = vmatprep.subr.bf16.mxu0 0
        %916 = vmatpush1.bf16.msra.mxu0 0
        %917 = vmatprep.subr.bf16.mxu0 0
        %918 = vmatpush1.bf16.msra.mxu0 0
        %919 = vmatprep.subr.bf16.mxu0 0
        %920 = vmatpush1.bf16.msra.mxu0 0
        %921 = vmatprep.subr.bf16.mxu0 0
        %922 = vmatpush1.bf16.msra.mxu0 0
        %923 = vmatprep.subr.bf16.mxu0 0
        %924 = vmatpush1.bf16.msra.mxu0 0
        %925 = vmatprep.subr.bf16.mxu0 0
        %926 = vmatpush1.bf16.msra.mxu0 0
        %927 = vmatprep.subr.bf16.mxu0 0
        %928 = vmatpush1.bf16.msra.mxu0 0
        %929 = vmatprep.subr.bf16.mxu0 0
        %930 = vmatpush1.bf16.msra.mxu0 0
        %931 = vmatprep.subr.bf16.mxu0 0
        %932 = vmatpush1.bf16.msra.mxu0 0
        %933 = vmatprep.subr.bf16.mxu0 0
        %934 = vmatpush1.bf16.msra.mxu0 0
        %935 = vmatprep.subr.bf16.mxu0 0
        %936 = vmatpush1.bf16.msra.mxu0 0
        %937 = vmatprep.subr.bf16.mxu0 0
        %938 = vmatpush1.bf16.msra.mxu0 0
        %939 = vmatprep.subr.bf16.mxu0 0
        %940 = vmatpush1.bf16.msra.mxu0 0
        %941 = vmatprep.subr.bf16.mxu0 0
        %942 = vmatpush1.bf16.msra.mxu0 0
        %943 = vmatprep.subr.bf16.mxu0 0
        %944 = vmatpush1.bf16.msra.mxu0 0
        %945 = vmatprep.mubr.bf16.mxu0 0
        %946 = vmatmul.mubr.bf16.gmra.mrb[0].mxu0 %v911
        %v947 = vpop.f32.mrb[0].mxu0
        %v948 = vadd.f32 0.0, %v947
        %v949 = vpop.f32.mrb[0].mxu0
        %v950 = vpop.f32.mrb[0].mxu0
        %v951 = vadd.f32 0.0, %v950
        %v952 = vpop.f32.mrb[0].mxu0
        %953 = vdwg.mxu0
        %v955 = vsel %vm863, %v909, 0
        %957 = vmatprep.subr.bf16.mxu0 0
        %958 = vmatpush1.bf16.msra.mxu0 %v767
        %959 = vmatprep.subr.bf16.mxu0 0
        %960 = vmatpush1.bf16.msra.mxu0 0
        %961 = vmatprep.subr.bf16.mxu0 0
        %962 = vmatpush1.bf16.msra.mxu0 0
        %963 = vmatprep.subr.bf16.mxu0 0
        %964 = vmatpush1.bf16.msra.mxu0 0
        %965 = vmatprep.subr.bf16.mxu0 0
        %966 = vmatpush1.bf16.msra.mxu0 0
        %967 = vmatprep.subr.bf16.mxu0 0
        %968 = vmatpush1.bf16.msra.mxu0 0
        %969 = vmatprep.subr.bf16.mxu0 0
        %970 = vmatpush1.bf16.msra.mxu0 0
        %971 = vmatprep.subr.bf16.mxu0 0
        %972 = vmatpush1.bf16.msra.mxu0 0
        %973 = vmatprep.subr.bf16.mxu0 0
        %974 = vmatpush1.bf16.msra.mxu0 0
        %975 = vmatprep.subr.bf16.mxu0 0
        %976 = vmatpush1.bf16.msra.mxu0 0
        %977 = vmatprep.subr.bf16.mxu0 0
        %978 = vmatpush1.bf16.msra.mxu0 0
        %979 = vmatprep.subr.bf16.mxu0 0
        %980 = vmatpush1.bf16.msra.mxu0 0
        %981 = vmatprep.subr.bf16.mxu0 0
        %982 = vmatpush1.bf16.msra.mxu0 0
        %983 = vmatprep.subr.bf16.mxu0 0
        %984 = vmatpush1.bf16.msra.mxu0 0
        %985 = vmatprep.subr.bf16.mxu0 0
        %986 = vmatpush1.bf16.msra.mxu0 0
        %987 = vmatprep.subr.bf16.mxu0 0
        %988 = vmatpush1.bf16.msra.mxu0 0
        %989 = vmatprep.mubr.bf16.mxu0 0
        %990 = vmatmul.mubr.bf16.gmra.mrb[0].mxu0 %v955
        %v991 = vpop.f32.mrb[0].mxu0
        %v992 = vadd.f32 0.0, %v991
        %v993 = vpop.f32.mrb[0].mxu0
        %v994 = vpop.f32.mrb[0].mxu0
        %v995 = vadd.f32 0.0, %v994
        %v996 = vpop.f32.mrb[0].mxu0
        %997 = vdwg.mxu0
        %999 = vrot.lane.b32.xlu0 %v762, 96
        %v1000 = vpop.permute.xlu0 %999
        %1002 = vrot.lane.b32.xlu0 %v763, 96
        %v1003 = vpop.permute.xlu0 %1002
        %v1005 = vsel %vm768, %v1000, 0
        %v1008 = vsel %vm768, %v1003, 0
        %1010 = vmatprep.subr.bf16.mxu0 0
        %1011 = vmatpush1.bf16.xpose.msra.mxu0 %v1008
        %1012 = vmatprep.subr.bf16.mxu0 0
        %1013 = vmatpush1.bf16.xpose.msra.mxu0 0
        %1014 = vmatprep.subr.bf16.mxu0 0
        %1015 = vmatpush1.bf16.xpose.msra.mxu0 0
        %1016 = vmatprep.subr.bf16.mxu0 0
        %1017 = vmatpush1.bf16.xpose.msra.mxu0 0
        %1018 = vmatprep.subr.bf16.mxu0 0
        %1019 = vmatpush1.bf16.xpose.msra.mxu0 0
        %1020 = vmatprep.subr.bf16.mxu0 0
        %1021 = vmatpush1.bf16.xpose.msra.mxu0 0
        %1022 = vmatprep.subr.bf16.mxu0 0
        %1023 = vmatpush1.bf16.xpose.msra.mxu0 0
        %1024 = vmatprep.subr.bf16.mxu0 0
        %1025 = vmatpush1.bf16.xpose.msra.mxu0 0
        %1026 = vmatprep.subr.bf16.mxu0 0
        %1027 = vmatpush1.bf16.xpose.msra.mxu0 0
        %1028 = vmatprep.subr.bf16.mxu0 0
        %1029 = vmatpush1.bf16.xpose.msra.mxu0 0
        %1030 = vmatprep.subr.bf16.mxu0 0
        %1031 = vmatpush1.bf16.xpose.msra.mxu0 0
        %1032 = vmatprep.subr.bf16.mxu0 0
        %1033 = vmatpush1.bf16.xpose.msra.mxu0 0
        %1034 = vmatprep.subr.bf16.mxu0 0
        %1035 = vmatpush1.bf16.xpose.msra.mxu0 0
        %1036 = vmatprep.subr.bf16.mxu0 0
        %1037 = vmatpush1.bf16.xpose.msra.mxu0 0
        %1038 = vmatprep.subr.bf16.mxu0 0
        %1039 = vmatpush1.bf16.xpose.msra.mxu0 0
        %1040 = vmatprep.subr.bf16.mxu0 0
        %1041 = vmatpush1.bf16.xpose.msra.mxu0 0
        %1042 = vmatprep.mubr.bf16.mxu0 0
        %1043 = vmatmul.mubr.bf16.gmra.mrb[0].mxu0 %v1005
        %v1044 = vpop.f32.mrb[0].mxu0
        %v1045 = vadd.f32 0.0, %v1044
        %v1046 = vpop.f32.mrb[0].mxu0
        %v1047 = vpop.f32.mrb[0].mxu0
        %v1048 = vadd.f32 0.0, %v1047
        %v1049 = vpop.f32.mrb[0].mxu0
        %1050 = vdwg.mxu0
        %1052 = vrot.lane.b32.xlu0 %v765, 96
        %v1053 = vpop.permute.xlu0 %1052
        %1055 = vrot.lane.b32.xlu0 %v766, 96
        %v1056 = vpop.permute.xlu0 %1055
        %v1058 = vsel %vm768, %v1053, 0
        %v1061 = vsel %vm768, %v1056, 0
        %1063 = vmatprep.subr.bf16.mxu0 0
        %1064 = vmatpush1.bf16.xpose.msra.mxu0 %v1061
        %1065 = vmatprep.subr.bf16.mxu0 0
        %1066 = vmatpush1.bf16.xpose.msra.mxu0 0
        %1067 = vmatprep.subr.bf16.mxu0 0
        %1068 = vmatpush1.bf16.xpose.msra.mxu0 0
        %1069 = vmatprep.subr.bf16.mxu0 0
        %1070 = vmatpush1.bf16.xpose.msra.mxu0 0
        %1071 = vmatprep.subr.bf16.mxu0 0
        %1072 = vmatpush1.bf16.xpose.msra.mxu0 0
        %1073 = vmatprep.subr.bf16.mxu0 0
        %1074 = vmatpush1.bf16.xpose.msra.mxu0 0
        %1075 = vmatprep.subr.bf16.mxu0 0
        %1076 = vmatpush1.bf16.xpose.msra.mxu0 0
        %1077 = vmatprep.subr.bf16.mxu0 0
        %1078 = vmatpush1.bf16.xpose.msra.mxu0 0
        %1079 = vmatprep.subr.bf16.mxu0 0
        %1080 = vmatpush1.bf16.xpose.msra.mxu0 0
        %1081 = vmatprep.subr.bf16.mxu0 0
        %1082 = vmatpush1.bf16.xpose.msra.mxu0 0
        %1083 = vmatprep.subr.bf16.mxu0 0
        %1084 = vmatpush1.bf16.xpose.msra.mxu0 0
        %1085 = vmatprep.subr.bf16.mxu0 0
        %1086 = vmatpush1.bf16.xpose.msra.mxu0 0
        %1087 = vmatprep.subr.bf16.mxu0 0
        %1088 = vmatpush1.bf16.xpose.msra.mxu0 0
        %1089 = vmatprep.subr.bf16.mxu0 0
        %1090 = vmatpush1.bf16.xpose.msra.mxu0 0
        %1091 = vmatprep.subr.bf16.mxu0 0
        %1092 = vmatpush1.bf16.xpose.msra.mxu0 0
        %1093 = vmatprep.subr.bf16.mxu0 0
        %1094 = vmatpush1.bf16.xpose.msra.mxu0 0
        %1095 = vmatprep.mubr.bf16.mxu0 0
        %1096 = vmatmul.mubr.bf16.gmra.mrb[0].mxu0 %v1058
        %v1097 = vpop.f32.mrb[0].mxu0
        %v1098 = vadd.f32 0.0, %v1097
        %v1099 = vpop.f32.mrb[0].mxu0
        %v1100 = vpop.f32.mrb[0].mxu0
        %v1101 = vadd.f32 0.0, %v1100
        %v1102 = vpop.f32.mrb[0].mxu0
        %1103 = vdwg.mxu0
        %v1104 = vsel %vm863, %v1045, -inf
        %1105 = vmax.xlane.f32.xlu0 %v1104
        %v1106 = vpop.xlane.xlu0 %1105
        %v1107 = vsel %vm863, %v1048, -inf
        %1108 = vmax.xlane.f32.xlu0 %v1107
        %v1109 = vpop.xlane.xlu0 %1108
        %v1110 = vsel %vm863, %v1098, -inf
        %1111 = vmax.xlane.f32.xlu0 %v1110
        %v1112 = vpop.xlane.xlu0 %1111
        %v1113 = vsel %vm863, %v1101, -inf
        %1114 = vmax.xlane.f32.xlu0 %v1113
        %v1115 = vpop.xlane.xlu0 %1114
        %v1116 = vsub.f32 %v1045, %v1106
        %v1117 = vsub.f32 %v1048, %v1109
        %v1118 = vsub.f32 %v1098, %v1112
        %v1119 = vsub.f32 %v1101, %v1115
        %v1120 = vmul.f32 %v1116, 1.442695
        %v1121 = vpow.pop %v1120
        %v1122 = vmul.f32 %v1117, 1.442695
        %v1123 = vpow.pop %v1122
        %v1124 = vmul.f32 %v1118, 1.442695
        %v1125 = vpow.pop %v1124
        %v1126 = vmul.f32 %v1119, 1.442695
        %v1127 = vpow.pop %v1126
        %v1128 = vsel %vm863, %v1121, 0.0
        %1129 = vadd.xlane.f32.xlu0 %v1128
        %v1130 = vpop.xlane.xlu0 %1129
        %v1131 = vsel %vm863, %v1123, 0.0
        %1132 = vadd.xlane.f32.xlu0 %v1131
        %v1133 = vpop.xlane.xlu0 %1132
        %v1134 = vsel %vm863, %v1125, 0.0
        %1135 = vadd.xlane.f32.xlu0 %v1134
        %v1136 = vpop.xlane.xlu0 %1135
        %v1137 = vsel %vm863, %v1127, 0.0
        %1138 = vadd.xlane.f32.xlu0 %v1137
        %v1139 = vpop.xlane.xlu0 %1138
        %v1140 = vrcp.pop %v1130
        %v1141 = vrcp.pop %v1133
        %v1142 = vrcp.pop %v1136
        %v1143 = vrcp.pop %v1139
        %v1144 = vmul.f32 %v1121, %v1140
        %v1145 = vmul.f32 %v1123, %v1141
        %v1146 = vmul.f32 %v1125, %v1142
        %v1147 = vmul.f32 %v1127, %v1143
        %v1148 = vpack.c.bf16 %v1145, %v1144
        %v1149 = vpack.c.bf16 %v1147, %v1146
        %1151 = vrot.lane.b32.xlu0 %v764, 96
        %v1152 = vpop.permute.xlu0 %1151
        %v1155 = vsel %vm863, %v1148, 0
        %1157 = vmatprep.subr.bf16.mxu0 0
        %1158 = vmatpush1.bf16.msra.mxu0 %v1152
        %1159 = vmatprep.subr.bf16.mxu0 0
        %1160 = vmatpush1.bf16.msra.mxu0 0
        %1161 = vmatprep.subr.bf16.mxu0 0
        %1162 = vmatpush1.bf16.msra.mxu0 0
        %1163 = vmatprep.subr.bf16.mxu0 0
        %1164 = vmatpush1.bf16.msra.mxu0 0
        %1165 = vmatprep.subr.bf16.mxu0 0
        %1166 = vmatpush1.bf16.msra.mxu0 0
        %1167 = vmatprep.subr.bf16.mxu0 0
        %1168 = vmatpush1.bf16.msra.mxu0 0
        %1169 = vmatprep.subr.bf16.mxu0 0
        %1170 = vmatpush1.bf16.msra.mxu0 0
        %1171 = vmatprep.subr.bf16.mxu0 0
        %1172 = vmatpush1.bf16.msra.mxu0 0
        %1173 = vmatprep.subr.bf16.mxu0 0
        %1174 = vmatpush1.bf16.msra.mxu0 0
        %1175 = vmatprep.subr.bf16.mxu0 0
        %1176 = vmatpush1.bf16.msra.mxu0 0
        %1177 = vmatprep.subr.bf16.mxu0 0
        %1178 = vmatpush1.bf16.msra.mxu0 0
        %1179 = vmatprep.subr.bf16.mxu0 0
        %1180 = vmatpush1.bf16.msra.mxu0 0
        %1181 = vmatprep.subr.bf16.mxu0 0
        %1182 = vmatpush1.bf16.msra.mxu0 0
        %1183 = vmatprep.subr.bf16.mxu0 0
        %1184 = vmatpush1.bf16.msra.mxu0 0
        %1185 = vmatprep.subr.bf16.mxu0 0
        %1186 = vmatpush1.bf16.msra.mxu0 0
        %1187 = vmatprep.subr.bf16.mxu0 0
        %1188 = vmatpush1.bf16.msra.mxu0 0
        %1189 = vmatprep.mubr.bf16.mxu0 0
        %1190 = vmatmul.mubr.bf16.gmra.mrb[0].mxu0 %v1155
        %v1191 = vpop.f32.mrb[0].mxu0
        %v1192 = vadd.f32 0.0, %v1191
        %v1193 = vpop.f32.mrb[0].mxu0
        %v1194 = vpop.f32.mrb[0].mxu0
        %v1195 = vadd.f32 0.0, %v1194
        %v1196 = vpop.f32.mrb[0].mxu0
        %1197 = vdwg.mxu0
        %1199 = vrot.lane.b32.xlu0 %v767, 96
        %v1200 = vpop.permute.xlu0 %1199
        %v1203 = vsel %vm863, %v1149, 0
        %1205 = vmatprep.subr.bf16.mxu0 0
        %1206 = vmatpush1.bf16.msra.mxu0 %v1200
        %1207 = vmatprep.subr.bf16.mxu0 0
        %1208 = vmatpush1.bf16.msra.mxu0 0
        %1209 = vmatprep.subr.bf16.mxu0 0
        %1210 = vmatpush1.bf16.msra.mxu0 0
        %1211 = vmatprep.subr.bf16.mxu0 0
        %1212 = vmatpush1.bf16.msra.mxu0 0
        %1213 = vmatprep.subr.bf16.mxu0 0
        %1214 = vmatpush1.bf16.msra.mxu0 0
        %1215 = vmatprep.subr.bf16.mxu0 0
        %1216 = vmatpush1.bf16.msra.mxu0 0
        %1217 = vmatprep.subr.bf16.mxu0 0
        %1218 = vmatpush1.bf16.msra.mxu0 0
        %1219 = vmatprep.subr.bf16.mxu0 0
        %1220 = vmatpush1.bf16.msra.mxu0 0
        %1221 = vmatprep.subr.bf16.mxu0 0
        %1222 = vmatpush1.bf16.msra.mxu0 0
        %1223 = vmatprep.subr.bf16.mxu0 0
        %1224 = vmatpush1.bf16.msra.mxu0 0
        %1225 = vmatprep.subr.bf16.mxu0 0
        %1226 = vmatpush1.bf16.msra.mxu0 0
        %1227 = vmatprep.subr.bf16.mxu0 0
        %1228 = vmatpush1.bf16.msra.mxu0 0
        %1229 = vmatprep.subr.bf16.mxu0 0
        %1230 = vmatpush1.bf16.msra.mxu0 0
        %1231 = vmatprep.subr.bf16.mxu0 0
        %1232 = vmatpush1.bf16.msra.mxu0 0
        %1233 = vmatprep.subr.bf16.mxu0 0
        %1234 = vmatpush1.bf16.msra.mxu0 0
        %1235 = vmatprep.subr.bf16.mxu0 0
        %1236 = vmatpush1.bf16.msra.mxu0 0
        %1237 = vmatprep.mubr.bf16.mxu0 0
        %1238 = vmatmul.mubr.bf16.gmra.mrb[0].mxu0 %v1203
        %v1239 = vpop.f32.mrb[0].mxu0
        %v1240 = vadd.f32 0.0, %v1239
        %v1241 = vpop.f32.mrb[0].mxu0
        %v1242 = vpop.f32.mrb[0].mxu0
        %v1243 = vadd.f32 0.0, %v1242
        %v1244 = vpop.f32.mrb[0].mxu0
        %1245 = vdwg.mxu0
        %1246 = vrot.lane.b32.xlu0 %v762, 64
        %v1247 = vpop.permute.xlu0 %1246
        %1248 = vrot.lane.b32.xlu0 %v763, 64
        %v1249 = vpop.permute.xlu0 %1248
        %v1251 = vsel %vm768, %v1247, 0
        %v1254 = vsel %vm768, %v1249, 0
        %1256 = vmatprep.subr.bf16.mxu0 0
        %1257 = vmatpush1.bf16.xpose.msra.mxu0 %v1254
        %1258 = vmatprep.subr.bf16.mxu0 0
        %1259 = vmatpush1.bf16.xpose.msra.mxu0 0
        %1260 = vmatprep.subr.bf16.mxu0 0
        %1261 = vmatpush1.bf16.xpose.msra.mxu0 0
        %1262 = vmatprep.subr.bf16.mxu0 0
        %1263 = vmatpush1.bf16.xpose.msra.mxu0 0
        %1264 = vmatprep.subr.bf16.mxu0 0
        %1265 = vmatpush1.bf16.xpose.msra.mxu0 0
        %1266 = vmatprep.subr.bf16.mxu0 0
        %1267 = vmatpush1.bf16.xpose.msra.mxu0 0
        %1268 = vmatprep.subr.bf16.mxu0 0
        %1269 = vmatpush1.bf16.xpose.msra.mxu0 0
        %1270 = vmatprep.subr.bf16.mxu0 0
        %1271 = vmatpush1.bf16.xpose.msra.mxu0 0
        %1272 = vmatprep.subr.bf16.mxu0 0
        %1273 = vmatpush1.bf16.xpose.msra.mxu0 0
        %1274 = vmatprep.subr.bf16.mxu0 0
        %1275 = vmatpush1.bf16.xpose.msra.mxu0 0
        %1276 = vmatprep.subr.bf16.mxu0 0
        %1277 = vmatpush1.bf16.xpose.msra.mxu0 0
        %1278 = vmatprep.subr.bf16.mxu0 0
        %1279 = vmatpush1.bf16.xpose.msra.mxu0 0
        %1280 = vmatprep.subr.bf16.mxu0 0
        %1281 = vmatpush1.bf16.xpose.msra.mxu0 0
        %1282 = vmatprep.subr.bf16.mxu0 0
        %1283 = vmatpush1.bf16.xpose.msra.mxu0 0
        %1284 = vmatprep.subr.bf16.mxu0 0
        %1285 = vmatpush1.bf16.xpose.msra.mxu0 0
        %1286 = vmatprep.subr.bf16.mxu0 0
        %1287 = vmatpush1.bf16.xpose.msra.mxu0 0
        %1288 = vmatprep.mubr.bf16.mxu0 0
        %1289 = vmatmul.mubr.bf16.gmra.mrb[0].mxu0 %v1251
        %v1290 = vpop.f32.mrb[0].mxu0
        %v1291 = vadd.f32 0.0, %v1290
        %v1292 = vpop.f32.mrb[0].mxu0
        %v1293 = vpop.f32.mrb[0].mxu0
        %v1294 = vadd.f32 0.0, %v1293
        %v1295 = vpop.f32.mrb[0].mxu0
        %1296 = vdwg.mxu0
        %1297 = vrot.lane.b32.xlu0 %v765, 64
        %v1298 = vpop.permute.xlu0 %1297
        %1299 = vrot.lane.b32.xlu0 %v766, 64
        %v1300 = vpop.permute.xlu0 %1299
        %v1302 = vsel %vm768, %v1298, 0
        %v1305 = vsel %vm768, %v1300, 0
        %1307 = vmatprep.subr.bf16.mxu0 0
        %1308 = vmatpush1.bf16.xpose.msra.mxu0 %v1305
        %1309 = vmatprep.subr.bf16.mxu0 0
        %1310 = vmatpush1.bf16.xpose.msra.mxu0 0
        %1311 = vmatprep.subr.bf16.mxu0 0
        %1312 = vmatpush1.bf16.xpose.msra.mxu0 0
        %1313 = vmatprep.subr.bf16.mxu0 0
        %1314 = vmatpush1.bf16.xpose.msra.mxu0 0
        %1315 = vmatprep.subr.bf16.mxu0 0
        %1316 = vmatpush1.bf16.xpose.msra.mxu0 0
        %1317 = vmatprep.subr.bf16.mxu0 0
        %1318 = vmatpush1.bf16.xpose.msra.mxu0 0
        %1319 = vmatprep.subr.bf16.mxu0 0
        %1320 = vmatpush1.bf16.xpose.msra.mxu0 0
        %1321 = vmatprep.subr.bf16.mxu0 0
        %1322 = vmatpush1.bf16.xpose.msra.mxu0 0
        %1323 = vmatprep.subr.bf16.mxu0 0
        %1324 = vmatpush1.bf16.xpose.msra.mxu0 0
        %1325 = vmatprep.subr.bf16.mxu0 0
        %1326 = vmatpush1.bf16.xpose.msra.mxu0 0
        %1327 = vmatprep.subr.bf16.mxu0 0
        %1328 = vmatpush1.bf16.xpose.msra.mxu0 0
        %1329 = vmatprep.subr.bf16.mxu0 0
        %1330 = vmatpush1.bf16.xpose.msra.mxu0 0
        %1331 = vmatprep.subr.bf16.mxu0 0
        %1332 = vmatpush1.bf16.xpose.msra.mxu0 0
        %1333 = vmatprep.subr.bf16.mxu0 0
        %1334 = vmatpush1.bf16.xpose.msra.mxu0 0
        %1335 = vmatprep.subr.bf16.mxu0 0
        %1336 = vmatpush1.bf16.xpose.msra.mxu0 0
        %1337 = vmatprep.subr.bf16.mxu0 0
        %1338 = vmatpush1.bf16.xpose.msra.mxu0 0
        %1339 = vmatprep.mubr.bf16.mxu0 0
        %1340 = vmatmul.mubr.bf16.gmra.mrb[0].mxu0 %v1302
        %v1341 = vpop.f32.mrb[0].mxu0
        %v1342 = vadd.f32 0.0, %v1341
        %v1343 = vpop.f32.mrb[0].mxu0
        %v1344 = vpop.f32.mrb[0].mxu0
        %v1345 = vadd.f32 0.0, %v1344
        %v1346 = vpop.f32.mrb[0].mxu0
        %1347 = vdwg.mxu0
        %v1348 = vsel %vm863, %v1291, -inf
        %1349 = vmax.xlane.f32.xlu0 %v1348
        %v1350 = vpop.xlane.xlu0 %1349
        %v1351 = vsel %vm863, %v1294, -inf
        %1352 = vmax.xlane.f32.xlu0 %v1351
        %v1353 = vpop.xlane.xlu0 %1352
        %v1354 = vsel %vm863, %v1342, -inf
        %1355 = vmax.xlane.f32.xlu0 %v1354
        %v1356 = vpop.xlane.xlu0 %1355
        %v1357 = vsel %vm863, %v1345, -inf
        %1358 = vmax.xlane.f32.xlu0 %v1357
        %v1359 = vpop.xlane.xlu0 %1358
        %v1360 = vsub.f32 %v1291, %v1350
        %v1361 = vsub.f32 %v1294, %v1353
        %v1362 = vsub.f32 %v1342, %v1356
        %v1363 = vsub.f32 %v1345, %v1359
        %v1364 = vmul.f32 %v1360, 1.442695
        %v1365 = vpow.pop %v1364
        %v1366 = vmul.f32 %v1361, 1.442695
        %v1367 = vpow.pop %v1366
        %v1368 = vmul.f32 %v1362, 1.442695
        %v1369 = vpow.pop %v1368
        %v1370 = vmul.f32 %v1363, 1.442695
        %v1371 = vpow.pop %v1370
        %v1372 = vsel %vm863, %v1365, 0.0
        %1373 = vadd.xlane.f32.xlu0 %v1372
        %v1374 = vpop.xlane.xlu0 %1373
        %v1375 = vsel %vm863, %v1367, 0.0
        %1376 = vadd.xlane.f32.xlu0 %v1375
        %v1377 = vpop.xlane.xlu0 %1376
        %v1378 = vsel %vm863, %v1369, 0.0
        %1379 = vadd.xlane.f32.xlu0 %v1378
        %v1380 = vpop.xlane.xlu0 %1379
        %v1381 = vsel %vm863, %v1371, 0.0
        %1382 = vadd.xlane.f32.xlu0 %v1381
        %v1383 = vpop.xlane.xlu0 %1382
        %v1384 = vrcp.pop %v1374
        %v1385 = vrcp.pop %v1377
        %v1386 = vrcp.pop %v1380
        %v1387 = vrcp.pop %v1383
        %v1388 = vmul.f32 %v1365, %v1384
        %v1389 = vmul.f32 %v1367, %v1385
        %v1390 = vmul.f32 %v1369, %v1386
        %v1391 = vmul.f32 %v1371, %v1387
        %v1392 = vpack.c.bf16 %v1389, %v1388
        %v1393 = vpack.c.bf16 %v1391, %v1390
        %1394 = vrot.lane.b32.xlu0 %v764, 64
        %v1395 = vpop.permute.xlu0 %1394
        %v1398 = vsel %vm863, %v1392, 0
        %1400 = vmatprep.subr.bf16.mxu0 0
        %1401 = vmatpush1.bf16.msra.mxu0 %v1395
        %1402 = vmatprep.subr.bf16.mxu0 0
        %1403 = vmatpush1.bf16.msra.mxu0 0
        %1404 = vmatprep.subr.bf16.mxu0 0
        %1405 = vmatpush1.bf16.msra.mxu0 0
        %1406 = vmatprep.subr.bf16.mxu0 0
        %1407 = vmatpush1.bf16.msra.mxu0 0
        %1408 = vmatprep.subr.bf16.mxu0 0
        %1409 = vmatpush1.bf16.msra.mxu0 0
        %1410 = vmatprep.subr.bf16.mxu0 0
        %1411 = vmatpush1.bf16.msra.mxu0 0
        %1412 = vmatprep.subr.bf16.mxu0 0
        %1413 = vmatpush1.bf16.msra.mxu0 0
        %1414 = vmatprep.subr.bf16.mxu0 0
        %1415 = vmatpush1.bf16.msra.mxu0 0
        %1416 = vmatprep.subr.bf16.mxu0 0
        %1417 = vmatpush1.bf16.msra.mxu0 0
        %1418 = vmatprep.subr.bf16.mxu0 0
        %1419 = vmatpush1.bf16.msra.mxu0 0
        %1420 = vmatprep.subr.bf16.mxu0 0
        %1421 = vmatpush1.bf16.msra.mxu0 0
        %1422 = vmatprep.subr.bf16.mxu0 0
        %1423 = vmatpush1.bf16.msra.mxu0 0
        %1424 = vmatprep.subr.bf16.mxu0 0
        %1425 = vmatpush1.bf16.msra.mxu0 0
        %1426 = vmatprep.subr.bf16.mxu0 0
        %1427 = vmatpush1.bf16.msra.mxu0 0
        %1428 = vmatprep.subr.bf16.mxu0 0
        %1429 = vmatpush1.bf16.msra.mxu0 0
        %1430 = vmatprep.subr.bf16.mxu0 0
        %1431 = vmatpush1.bf16.msra.mxu0 0
        %1432 = vmatprep.mubr.bf16.mxu0 0
        %1433 = vmatmul.mubr.bf16.gmra.mrb[0].mxu0 %v1398
        %v1434 = vpop.f32.mrb[0].mxu0
        %v1435 = vadd.f32 0.0, %v1434
        %v1436 = vpop.f32.mrb[0].mxu0
        %v1437 = vpop.f32.mrb[0].mxu0
        %v1438 = vadd.f32 0.0, %v1437
        %v1439 = vpop.f32.mrb[0].mxu0
        %1440 = vdwg.mxu0
        %1441 = vrot.lane.b32.xlu0 %v767, 64
        %v1442 = vpop.permute.xlu0 %1441
        %v1445 = vsel %vm863, %v1393, 0
        %1447 = vmatprep.subr.bf16.mxu0 0
        %1448 = vmatpush1.bf16.msra.mxu0 %v1442
        %1449 = vmatprep.subr.bf16.mxu0 0
        %1450 = vmatpush1.bf16.msra.mxu0 0
        %1451 = vmatprep.subr.bf16.mxu0 0
        %1452 = vmatpush1.bf16.msra.mxu0 0
        %1453 = vmatprep.subr.bf16.mxu0 0
        %1454 = vmatpush1.bf16.msra.mxu0 0
        %1455 = vmatprep.subr.bf16.mxu0 0
        %1456 = vmatpush1.bf16.msra.mxu0 0
        %1457 = vmatprep.subr.bf16.mxu0 0
        %1458 = vmatpush1.bf16.msra.mxu0 0
        %1459 = vmatprep.subr.bf16.mxu0 0
        %1460 = vmatpush1.bf16.msra.mxu0 0
        %1461 = vmatprep.subr.bf16.mxu0 0
        %1462 = vmatpush1.bf16.msra.mxu0 0
        %1463 = vmatprep.subr.bf16.mxu0 0
        %1464 = vmatpush1.bf16.msra.mxu0 0
        %1465 = vmatprep.subr.bf16.mxu0 0
        %1466 = vmatpush1.bf16.msra.mxu0 0
        %1467 = vmatprep.subr.bf16.mxu0 0
        %1468 = vmatpush1.bf16.msra.mxu0 0
        %1469 = vmatprep.subr.bf16.mxu0 0
        %1470 = vmatpush1.bf16.msra.mxu0 0
        %1471 = vmatprep.subr.bf16.mxu0 0
        %1472 = vmatpush1.bf16.msra.mxu0 0
        %1473 = vmatprep.subr.bf16.mxu0 0
        %1474 = vmatpush1.bf16.msra.mxu0 0
        %1475 = vmatprep.subr.bf16.mxu0 0
        %1476 = vmatpush1.bf16.msra.mxu0 0
        %1477 = vmatprep.subr.bf16.mxu0 0
        %1478 = vmatpush1.bf16.msra.mxu0 0
        %1479 = vmatprep.mubr.bf16.mxu0 0
        %1480 = vmatmul.mubr.bf16.gmra.mrb[0].mxu0 %v1445
        %v1481 = vpop.f32.mrb[0].mxu0
        %v1482 = vadd.f32 0.0, %v1481
        %v1483 = vpop.f32.mrb[0].mxu0
        %v1484 = vpop.f32.mrb[0].mxu0
        %v1485 = vadd.f32 0.0, %v1484
        %v1486 = vpop.f32.mrb[0].mxu0
        %1487 = vdwg.mxu0
        %1488 = vrot.lane.b32.xlu0 %v762, 32
        %v1489 = vpop.permute.xlu0 %1488
        %1490 = vrot.lane.b32.xlu0 %v763, 32
        %v1491 = vpop.permute.xlu0 %1490
        %v1493 = vsel %vm768, %v1489, 0
        %v1496 = vsel %vm768, %v1491, 0
        %1498 = vmatprep.subr.bf16.mxu0 0
        %1499 = vmatpush1.bf16.xpose.msra.mxu0 %v1496
        %1500 = vmatprep.subr.bf16.mxu0 0
        %1501 = vmatpush1.bf16.xpose.msra.mxu0 0
        %1502 = vmatprep.subr.bf16.mxu0 0
        %1503 = vmatpush1.bf16.xpose.msra.mxu0 0
        %1504 = vmatprep.subr.bf16.mxu0 0
        %1505 = vmatpush1.bf16.xpose.msra.mxu0 0
        %1506 = vmatprep.subr.bf16.mxu0 0
        %1507 = vmatpush1.bf16.xpose.msra.mxu0 0
        %1508 = vmatprep.subr.bf16.mxu0 0
        %1509 = vmatpush1.bf16.xpose.msra.mxu0 0
        %1510 = vmatprep.subr.bf16.mxu0 0
        %1511 = vmatpush1.bf16.xpose.msra.mxu0 0
        %1512 = vmatprep.subr.bf16.mxu0 0
        %1513 = vmatpush1.bf16.xpose.msra.mxu0 0
        %1514 = vmatprep.subr.bf16.mxu0 0
        %1515 = vmatpush1.bf16.xpose.msra.mxu0 0
        %1516 = vmatprep.subr.bf16.mxu0 0
        %1517 = vmatpush1.bf16.xpose.msra.mxu0 0
        %1518 = vmatprep.subr.bf16.mxu0 0
        %1519 = vmatpush1.bf16.xpose.msra.mxu0 0
        %1520 = vmatprep.subr.bf16.mxu0 0
        %1521 = vmatpush1.bf16.xpose.msra.mxu0 0
        %1522 = vmatprep.subr.bf16.mxu0 0
        %1523 = vmatpush1.bf16.xpose.msra.mxu0 0
        %1524 = vmatprep.subr.bf16.mxu0 0
        %1525 = vmatpush1.bf16.xpose.msra.mxu0 0
        %1526 = vmatprep.subr.bf16.mxu0 0
        %1527 = vmatpush1.bf16.xpose.msra.mxu0 0
        %1528 = vmatprep.subr.bf16.mxu0 0
        %1529 = vmatpush1.bf16.xpose.msra.mxu0 0
        %1530 = vmatprep.mubr.bf16.mxu0 0
        %1531 = vmatmul.mubr.bf16.gmra.mrb[0].mxu0 %v1493
        %v1532 = vpop.f32.mrb[0].mxu0
        %v1533 = vadd.f32 0.0, %v1532
        %v1534 = vpop.f32.mrb[0].mxu0
        %v1535 = vpop.f32.mrb[0].mxu0
        %v1536 = vadd.f32 0.0, %v1535
        %v1537 = vpop.f32.mrb[0].mxu0
        %1538 = vdwg.mxu0
        %1539 = vrot.lane.b32.xlu0 %v765, 32
        %v1540 = vpop.permute.xlu0 %1539
        %1541 = vrot.lane.b32.xlu0 %v766, 32
        %v1542 = vpop.permute.xlu0 %1541
        %v1544 = vsel %vm768, %v1540, 0
        %v1547 = vsel %vm768, %v1542, 0
        %1549 = vmatprep.subr.bf16.mxu0 0
        %1550 = vmatpush1.bf16.xpose.msra.mxu0 %v1547
        %1551 = vmatprep.subr.bf16.mxu0 0
        %1552 = vmatpush1.bf16.xpose.msra.mxu0 0
        %1553 = vmatprep.subr.bf16.mxu0 0
        %1554 = vmatpush1.bf16.xpose.msra.mxu0 0
        %1555 = vmatprep.subr.bf16.mxu0 0
        %1556 = vmatpush1.bf16.xpose.msra.mxu0 0
        %1557 = vmatprep.subr.bf16.mxu0 0
        %1558 = vmatpush1.bf16.xpose.msra.mxu0 0
        %1559 = vmatprep.subr.bf16.mxu0 0
        %1560 = vmatpush1.bf16.xpose.msra.mxu0 0
        %1561 = vmatprep.subr.bf16.mxu0 0
        %1562 = vmatpush1.bf16.xpose.msra.mxu0 0
        %1563 = vmatprep.subr.bf16.mxu0 0
        %1564 = vmatpush1.bf16.xpose.msra.mxu0 0
        %1565 = vmatprep.subr.bf16.mxu0 0
        %1566 = vmatpush1.bf16.xpose.msra.mxu0 0
        %1567 = vmatprep.subr.bf16.mxu0 0
        %1568 = vmatpush1.bf16.xpose.msra.mxu0 0
        %1569 = vmatprep.subr.bf16.mxu0 0
        %1570 = vmatpush1.bf16.xpose.msra.mxu0 0
        %1571 = vmatprep.subr.bf16.mxu0 0
        %1572 = vmatpush1.bf16.xpose.msra.mxu0 0
        %1573 = vmatprep.subr.bf16.mxu0 0
        %1574 = vmatpush1.bf16.xpose.msra.mxu0 0
        %1575 = vmatprep.subr.bf16.mxu0 0
        %1576 = vmatpush1.bf16.xpose.msra.mxu0 0
        %1577 = vmatprep.subr.bf16.mxu0 0
        %1578 = vmatpush1.bf16.xpose.msra.mxu0 0
        %1579 = vmatprep.subr.bf16.mxu0 0
        %1580 = vmatpush1.bf16.xpose.msra.mxu0 0
        %1581 = vmatprep.mubr.bf16.mxu0 0
        %1582 = vmatmul.mubr.bf16.gmra.mrb[0].mxu0 %v1544
        %v1583 = vpop.f32.mrb[0].mxu0
        %v1584 = vadd.f32 0.0, %v1583
        %v1585 = vpop.f32.mrb[0].mxu0
        %v1586 = vpop.f32.mrb[0].mxu0
        %v1587 = vadd.f32 0.0, %v1586
        %v1588 = vpop.f32.mrb[0].mxu0
        %1589 = vdwg.mxu0
        %v1590 = vsel %vm863, %v1533, -inf
        %1591 = vmax.xlane.f32.xlu0 %v1590
        %v1592 = vpop.xlane.xlu0 %1591
        %v1593 = vsel %vm863, %v1536, -inf
        %1594 = vmax.xlane.f32.xlu0 %v1593
        %v1595 = vpop.xlane.xlu0 %1594
        %v1596 = vsel %vm863, %v1584, -inf
        %1597 = vmax.xlane.f32.xlu0 %v1596
        %v1598 = vpop.xlane.xlu0 %1597
        %v1599 = vsel %vm863, %v1587, -inf
        %1600 = vmax.xlane.f32.xlu0 %v1599
        %v1601 = vpop.xlane.xlu0 %1600
        %v1602 = vsub.f32 %v1533, %v1592
        %v1603 = vsub.f32 %v1536, %v1595
        %v1604 = vsub.f32 %v1584, %v1598
        %v1605 = vsub.f32 %v1587, %v1601
        %v1606 = vmul.f32 %v1602, 1.442695
        %v1607 = vpow.pop %v1606
        %v1608 = vmul.f32 %v1603, 1.442695
        %v1609 = vpow.pop %v1608
        %v1610 = vmul.f32 %v1604, 1.442695
        %v1611 = vpow.pop %v1610
        %v1612 = vmul.f32 %v1605, 1.442695
        %v1613 = vpow.pop %v1612
        %v1614 = vsel %vm863, %v1607, 0.0
        %1615 = vadd.xlane.f32.xlu0 %v1614
        %v1616 = vpop.xlane.xlu0 %1615
        %v1617 = vsel %vm863, %v1609, 0.0
        %1618 = vadd.xlane.f32.xlu0 %v1617
        %v1619 = vpop.xlane.xlu0 %1618
        %v1620 = vsel %vm863, %v1611, 0.0
        %1621 = vadd.xlane.f32.xlu0 %v1620
        %v1622 = vpop.xlane.xlu0 %1621
        %v1623 = vsel %vm863, %v1613, 0.0
        %1624 = vadd.xlane.f32.xlu0 %v1623
        %v1625 = vpop.xlane.xlu0 %1624
        %v1626 = vrcp.pop %v1616
        %v1627 = vrcp.pop %v1619
        %v1628 = vrcp.pop %v1622
        %v1629 = vrcp.pop %v1625
        %v1630 = vmul.f32 %v1607, %v1626
        %v1631 = vmul.f32 %v1609, %v1627
        %v1632 = vmul.f32 %v1611, %v1628
        %v1633 = vmul.f32 %v1613, %v1629
        %v1634 = vpack.c.bf16 %v1631, %v1630
        %v1635 = vpack.c.bf16 %v1633, %v1632
        %1636 = vrot.lane.b32.xlu0 %v764, 32
        %v1637 = vpop.permute.xlu0 %1636
        %v1640 = vsel %vm863, %v1634, 0
        %1642 = vmatprep.subr.bf16.mxu0 0
        %1643 = vmatpush1.bf16.msra.mxu0 %v1637
        %1644 = vmatprep.subr.bf16.mxu0 0
        %1645 = vmatpush1.bf16.msra.mxu0 0
        %1646 = vmatprep.subr.bf16.mxu0 0
        %1647 = vmatpush1.bf16.msra.mxu0 0
        %1648 = vmatprep.subr.bf16.mxu0 0
        %1649 = vmatpush1.bf16.msra.mxu0 0
        %1650 = vmatprep.subr.bf16.mxu0 0
        %1651 = vmatpush1.bf16.msra.mxu0 0
        %1652 = vmatprep.subr.bf16.mxu0 0
        %1653 = vmatpush1.bf16.msra.mxu0 0
        %1654 = vmatprep.subr.bf16.mxu0 0
        %1655 = vmatpush1.bf16.msra.mxu0 0
        %1656 = vmatprep.subr.bf16.mxu0 0
        %1657 = vmatpush1.bf16.msra.mxu0 0
        %1658 = vmatprep.subr.bf16.mxu0 0
        %1659 = vmatpush1.bf16.msra.mxu0 0
        %1660 = vmatprep.subr.bf16.mxu0 0
        %1661 = vmatpush1.bf16.msra.mxu0 0
        %1662 = vmatprep.subr.bf16.mxu0 0
        %1663 = vmatpush1.bf16.msra.mxu0 0
        %1664 = vmatprep.subr.bf16.mxu0 0
        %1665 = vmatpush1.bf16.msra.mxu0 0
        %1666 = vmatprep.subr.bf16.mxu0 0
        %1667 = vmatpush1.bf16.msra.mxu0 0
        %1668 = vmatprep.subr.bf16.mxu0 0
        %1669 = vmatpush1.bf16.msra.mxu0 0
        %1670 = vmatprep.subr.bf16.mxu0 0
        %1671 = vmatpush1.bf16.msra.mxu0 0
        %1672 = vmatprep.subr.bf16.mxu0 0
        %1673 = vmatpush1.bf16.msra.mxu0 0
        %1674 = vmatprep.mubr.bf16.mxu0 0
        %1675 = vmatmul.mubr.bf16.gmra.mrb[0].mxu0 %v1640
        %v1676 = vpop.f32.mrb[0].mxu0
        %v1677 = vadd.f32 0.0, %v1676
        %v1678 = vpop.f32.mrb[0].mxu0
        %v1679 = vpop.f32.mrb[0].mxu0
        %v1680 = vadd.f32 0.0, %v1679
        %v1681 = vpop.f32.mrb[0].mxu0
        %1682 = vdwg.mxu0
        %1683 = vrot.lane.b32.xlu0 %v767, 32
        %v1684 = vpop.permute.xlu0 %1683
        %v1687 = vsel %vm863, %v1635, 0
        %1689 = vmatprep.subr.bf16.mxu0 0
        %1690 = vmatpush1.bf16.msra.mxu0 %v1684
        %1691 = vmatprep.subr.bf16.mxu0 0
        %1692 = vmatpush1.bf16.msra.mxu0 0
        %1693 = vmatprep.subr.bf16.mxu0 0
        %1694 = vmatpush1.bf16.msra.mxu0 0
        %1695 = vmatprep.subr.bf16.mxu0 0
        %1696 = vmatpush1.bf16.msra.mxu0 0
        %1697 = vmatprep.subr.bf16.mxu0 0
        %1698 = vmatpush1.bf16.msra.mxu0 0
        %1699 = vmatprep.subr.bf16.mxu0 0
        %1700 = vmatpush1.bf16.msra.mxu0 0
        %1701 = vmatprep.subr.bf16.mxu0 0
        %1702 = vmatpush1.bf16.msra.mxu0 0
        %1703 = vmatprep.subr.bf16.mxu0 0
        %1704 = vmatpush1.bf16.msra.mxu0 0
        %1705 = vmatprep.subr.bf16.mxu0 0
        %1706 = vmatpush1.bf16.msra.mxu0 0
        %1707 = vmatprep.subr.bf16.mxu0 0
        %1708 = vmatpush1.bf16.msra.mxu0 0
        %1709 = vmatprep.subr.bf16.mxu0 0
        %1710 = vmatpush1.bf16.msra.mxu0 0
        %1711 = vmatprep.subr.bf16.mxu0 0
        %1712 = vmatpush1.bf16.msra.mxu0 0
        %1713 = vmatprep.subr.bf16.mxu0 0
        %1714 = vmatpush1.bf16.msra.mxu0 0
        %1715 = vmatprep.subr.bf16.mxu0 0
        %1716 = vmatpush1.bf16.msra.mxu0 0
        %1717 = vmatprep.subr.bf16.mxu0 0
        %1718 = vmatpush1.bf16.msra.mxu0 0
        %1719 = vmatprep.subr.bf16.mxu0 0
        %1720 = vmatpush1.bf16.msra.mxu0 0
        %1721 = vmatprep.mubr.bf16.mxu0 0
        %1722 = vmatmul.mubr.bf16.gmra.mrb[0].mxu0 %v1687
        %v1723 = vpop.f32.mrb[0].mxu0
        %v1724 = vadd.f32 0.0, %v1723
        %v1725 = vpop.f32.mrb[0].mxu0
        %v1726 = vpop.f32.mrb[0].mxu0
        %v1727 = vadd.f32 0.0, %v1726
        %v1728 = vpop.f32.mrb[0].mxu0
        %1729 = vdwg.mxu0
        %1734 = vrot.lane.b32.xlu0 %v1192, 32
        %v1735 = vpop.permute.xlu0 %1734
        %1736 = vrot.lane.b32.xlu0 %v1195, 32
        %v1737 = vpop.permute.xlu0 %1736
        %1738 = vrot.lane.b32.xlu0 %v1240, 32
        %v1739 = vpop.permute.xlu0 %1738
        %1740 = vrot.lane.b32.xlu0 %v1243, 32
        %v1741 = vpop.permute.xlu0 %1740
        %1750 = vrot.lane.b32.xlu0 %v1435, 64
        %v1751 = vpop.permute.xlu0 %1750
        %1752 = vrot.lane.b32.xlu0 %v1438, 64
        %v1753 = vpop.permute.xlu0 %1752
        %1754 = vrot.lane.b32.xlu0 %v1482, 64
        %v1755 = vpop.permute.xlu0 %1754
        %1756 = vrot.lane.b32.xlu0 %v1485, 64
        %v1757 = vpop.permute.xlu0 %1756
        %1766 = vrot.lane.b32.xlu0 %v1677, 96
        %v1767 = vpop.permute.xlu0 %1766
        %1768 = vrot.lane.b32.xlu0 %v1680, 96
        %v1769 = vpop.permute.xlu0 %1768
        %1770 = vrot.lane.b32.xlu0 %v1724, 96
        %v1771 = vpop.permute.xlu0 %1770
        %1772 = vrot.lane.b32.xlu0 %v1727, 96
        %v1773 = vpop.permute.xlu0 %1772
        %v1778 = vsel %vm768, %v948, %v1735
        %v1779 = vsel %vm768, %v951, %v1737
        %v1780 = vsel %vm768, %v992, %v1739
        %v1781 = vsel %vm768, %v995, %v1741
        %vm1782 = vcmask 523264
        %v1783 = vsel %vm1782, %v1778, %v1751
        %v1784 = vsel %vm1782, %v1779, %v1753
        %v1785 = vsel %vm1782, %v1780, %v1755
        %v1786 = vsel %vm1782, %v1781, %v1757
        %vm1787 = vcmask 785408
        %v1788 = vsel %vm1787, %v1783, %v1767
        %v1789 = vsel %vm1787, %v1784, %v1769
        %v1790 = vsel %vm1787, %v1785, %v1771
        %v1791 = vsel %vm1787, %v1786, %v1773
        %v1792 = vpack.c.bf16 %v1789, %v1788
        %v1793 = vpack.c.bf16 %v1791, %v1790
        %v1794 = vld [vmem:[#allocation7] sm:$0xf]
        %v1795 = vld [vmem:[#allocation7 + $0x4] sm:$0xf]
        %v1796 = vld [vmem:[#allocation7 + $0x8] sm:$0xf]
        %v1797 = vld [vmem:[#allocation7 + $0xc] sm:$0xf]
        %v1798 = vld [vmem:[#allocation7 + $0x10] sm:$0xf]
        %v1799 = vld [vmem:[#allocation7 + $0x14] sm:$0xf]
        %v1800 = vld [vmem:[#allocation7 + $0x18] sm:$0xf]
        %v1801 = vld [vmem:[#allocation7 + $0x1c] sm:$0xf]
        %v1802 = vld [vmem:[#allocation7 + $0x20] sm:$0xf]
        %v1803 = vld [vmem:[#allocation7 + $0x24] sm:$0xf]
        %v1804 = vld [vmem:[#allocation7 + $0x28] sm:$0xf]
        %v1805 = vld [vmem:[#allocation7 + $0x2c] sm:$0xf]
        %v1806 = vld [vmem:[#allocation7 + $0x30] sm:$0xf]
        %v1807 = vld [vmem:[#allocation7 + $0x34] sm:$0xf]
        %v1808 = vld [vmem:[#allocation7 + $0x38] sm:$0xf]
        %v1809 = vld [vmem:[#allocation7 + $0x3c] sm:$0xf]
        %v1810 = vld [vmem:[%s3] sm:$0x1]
        %v1812 = vlaneseq
        %v1813 = vshrl.u32 %v1812, 7
        %v1814 = vsub.s32 0, %v1813
        %v1815 = vrot.slane %v1810, %v1814
        %v1833 = vunpack.c.l.b16 %v1794
        %v1834 = vunpack.c.l.b16 %v1795
        %v1835 = vunpack.c.l.b16 %v1796
        %v1836 = vunpack.c.l.b16 %v1797
        %v1837 = vunpack.c.l.b16 %v1798
        %v1838 = vunpack.c.l.b16 %v1799
        %v1839 = vunpack.c.l.b16 %v1800
        %v1840 = vunpack.c.l.b16 %v1801
        %v1841 = vunpack.c.l.b16 %v1802
        %v1842 = vunpack.c.l.b16 %v1803
        %v1843 = vunpack.c.l.b16 %v1804
        %v1844 = vunpack.c.l.b16 %v1805
        %v1845 = vunpack.c.l.b16 %v1806
        %v1846 = vunpack.c.l.b16 %v1807
        %v1847 = vunpack.c.l.b16 %v1808
        %v1848 = vunpack.c.l.b16 %v1809
        %v1849 = vpack.c.b16 %v1834, %v1833
        %v1850 = vpack.c.b16 %v1836, %v1835
        %v1851 = vpack.c.b16 %v1838, %v1837
        %v1852 = vpack.c.b16 %v1840, %v1839
        %v1853 = vpack.c.b16 %v1842, %v1841
        %v1854 = vpack.c.b16 %v1844, %v1843
        %v1855 = vpack.c.b16 %v1846, %v1845
        %v1856 = vpack.c.b16 %v1848, %v1847
        %1865 = vmatprep.subr.bf16.mxu0 0
        %1866 = vmatpush1.bf16.msra.mxu0 %v1849
        %1867 = vmatprep.subr.bf16.mxu0 0
        %1868 = vmatpush1.bf16.msra.mxu0 %v1850
        %1869 = vmatprep.subr.bf16.mxu0 0
        %1870 = vmatpush1.bf16.msra.mxu0 %v1851
        %1871 = vmatprep.subr.bf16.mxu0 0
        %1872 = vmatpush1.bf16.msra.mxu0 %v1852
        %1873 = vmatprep.subr.bf16.mxu0 0
        %1874 = vmatpush1.bf16.msra.mxu0 %v1853
        %1875 = vmatprep.subr.bf16.mxu0 0
        %1876 = vmatpush1.bf16.msra.mxu0 %v1854
        %1877 = vmatprep.subr.bf16.mxu0 0
        %1878 = vmatpush1.bf16.msra.mxu0 %v1855
        %1879 = vmatprep.subr.bf16.mxu0 0
        %1880 = vmatpush1.bf16.msra.mxu0 %v1856
        %1881 = vmatprep.subr.bf16.mxu0 0
        %1882 = vmatpush1.bf16.msra.mxu0 0
        %1883 = vmatprep.subr.bf16.mxu0 0
        %1884 = vmatpush1.bf16.msra.mxu0 0
        %1885 = vmatprep.subr.bf16.mxu0 0
        %1886 = vmatpush1.bf16.msra.mxu0 0
        %1887 = vmatprep.subr.bf16.mxu0 0
        %1888 = vmatpush1.bf16.msra.mxu0 0
        %1889 = vmatprep.subr.bf16.mxu0 0
        %1890 = vmatpush1.bf16.msra.mxu0 0
        %1891 = vmatprep.subr.bf16.mxu0 0
        %1892 = vmatpush1.bf16.msra.mxu0 0
        %1893 = vmatprep.subr.bf16.mxu0 0
        %1894 = vmatpush1.bf16.msra.mxu0 0
        %1895 = vmatprep.subr.bf16.mxu0 0
        %1896 = vmatpush1.bf16.msra.mxu0 0
        %1897 = vmatprep.mubr.bf16.mxu0 0
        %1898 = vmatmul.mubr.bf16.gmra.mrb[0].mxu0 %v1792
        %v1899 = vpop.f32.mrb[0].mxu0
        %v1900 = vadd.f32 %v1815, %v1899
        %v1901 = vpop.f32.mrb[0].mxu0
        %v1902 = vpop.f32.mrb[0].mxu0
        %v1903 = vadd.f32 %v1815, %v1902
        %v1904 = vpop.f32.mrb[0].mxu0
        %1905 = vmatprep.mubr.bf16.mxu0 0
        %1906 = vmatmul.mubr.bf16.gmra.mrb[0].mxu0 %v1793
        %v1907 = vpop.f32.mrb[0].mxu0
        %v1908 = vadd.f32 %v1815, %v1907
        %v1909 = vpop.f32.mrb[0].mxu0
        %v1910 = vpop.f32.mrb[0].mxu0
        %v1911 = vadd.f32 %v1815, %v1910
        %v1912 = vpop.f32.mrb[0].mxu0
        %1913 = vdwg.mxu0
        %v1914 = vadd.f32 %v494, %v1900
        %v1915 = vadd.f32 %v495, %v1903
        %v1916 = vadd.f32 %v496, %v1908
        %v1917 = vadd.f32 %v497, %v1911
        %v1918 = vld [vmem:[%s4] sm:$0x1]
        %v1919 = vld [vmem:[%s5] sm:$0x1]
        %1920 = vadd.xlane.f32.xlu0 %v1914
        %v1921 = vpop.xlane.xlu0 %1920
        %1922 = vadd.xlane.f32.xlu0 %v1915
        %v1923 = vpop.xlane.xlu0 %1922
        %1924 = vadd.xlane.f32.xlu0 %v1916
        %v1925 = vpop.xlane.xlu0 %1924
        %1926 = vadd.xlane.f32.xlu0 %v1917
        %v1927 = vpop.xlane.xlu0 %1926
        %v1928 = vrcp.pop 128.0
        %v1929 = vmul.f32 %v1921, %v1928
        %v1930 = vmul.f32 %v1923, %v1928
        %v1931 = vmul.f32 %v1925, %v1928
        %v1932 = vmul.f32 %v1927, %v1928
        %v1933 = vsub.f32 %v1914, %v1929
        %v1934 = vsub.f32 %v1915, %v1930
        %v1935 = vsub.f32 %v1916, %v1931
        %v1936 = vsub.f32 %v1917, %v1932
        %v1937 = vmul.f32 %v1933, %v1933
        %v1938 = vmul.f32 %v1934, %v1934
        %v1939 = vmul.f32 %v1935, %v1935
        %v1940 = vmul.f32 %v1936, %v1936
        %1941 = vadd.xlane.f32.xlu0 %v1937
        %v1942 = vpop.xlane.xlu0 %1941
        %1943 = vadd.xlane.f32.xlu0 %v1938
        %v1944 = vpop.xlane.xlu0 %1943
        %1945 = vadd.xlane.f32.xlu0 %v1939
        %v1946 = vpop.xlane.xlu0 %1945
        %1947 = vadd.xlane.f32.xlu0 %v1940
        %v1948 = vpop.xlane.xlu0 %1947
        %v1949 = vmul.f32 %v1942, %v1928
        %v1950 = vmul.f32 %v1944, %v1928
        %v1951 = vmul.f32 %v1946, %v1928
        %v1952 = vmul.f32 %v1948, %v1928
        %v1953 = vadd.f32 %v1949, 1e-05
        %v1954 = vadd.f32 %v1950, 1e-05
        %v1955 = vadd.f32 %v1951, 1e-05
        %v1956 = vadd.f32 %v1952, 1e-05
        %v1957 = vrsqrt.pop %v1953
        %v1958 = vrsqrt.pop %v1954
        %v1959 = vrsqrt.pop %v1955
        %v1960 = vrsqrt.pop %v1956
        %v1961 = vmul.f32 %v1933, %v1957
        %v1962 = vmul.f32 %v1934, %v1958
        %v1963 = vmul.f32 %v1935, %v1959
        %v1964 = vmul.f32 %v1936, %v1960
        %v1966 = vlaneseq
        %v1967 = vshrl.u32 %v1966, 7
        %v1968 = vsub.s32 0, %v1967
        %v1969 = vrot.slane %v1918, %v1968
        %v1971 = vmul.f32 %v1961, %v1969
        %v1972 = vmul.f32 %v1962, %v1969
        %v1973 = vmul.f32 %v1963, %v1969
        %v1974 = vmul.f32 %v1964, %v1969
        %v1976 = vlaneseq
        %v1977 = vshrl.u32 %v1976, 7
        %v1978 = vsub.s32 0, %v1977
        %v1979 = vrot.slane %v1919, %v1978
        %v1981 = vadd.f32 %v1971, %v1979
        %v1982 = vadd.f32 %v1972, %v1979
        %v1983 = vadd.f32 %v1973, %v1979
        %v1984 = vadd.f32 %v1974, %v1979
        %v1985 = vpack.c.bf16 %v1982, %v1981
        %v1986 = vpack.c.bf16 %v1984, %v1983
        %v1987 = vld [vmem:[#allocation8] sm:$0xff]
        %v1988 = vld [vmem:[#allocation8 + $0x8] sm:$0xff]
        %v1989 = vld [vmem:[#allocation8 + $0x10] sm:$0xff]
        %v1990 = vld [vmem:[#allocation8 + $0x18] sm:$0xff]
        %v1991 = vld [vmem:[#allocation8 + $0x20] sm:$0xff]
        %v1992 = vld [vmem:[#allocation8 + $0x28] sm:$0xff]
        %v1993 = vld [vmem:[#allocation8 + $0x30] sm:$0xff]
        %v1994 = vld [vmem:[#allocation8 + $0x38] sm:$0xff]
        %v1995 = vld [vmem:[#allocation8 + $0x40] sm:$0xff]
        %v1996 = vld [vmem:[#allocation8 + $0x48] sm:$0xff]
        %v1997 = vld [vmem:[#allocation8 + $0x50] sm:$0xff]
        %v1998 = vld [vmem:[#allocation8 + $0x58] sm:$0xff]
        %v1999 = vld [vmem:[#allocation8 + $0x60] sm:$0xff]
        %v2000 = vld [vmem:[#allocation8 + $0x68] sm:$0xff]
        %v2001 = vld [vmem:[#allocation8 + $0x70] sm:$0xff]
        %v2002 = vld [vmem:[#allocation8 + $0x78] sm:$0xff]
        %v2003 = vld [vmem:[#allocation8 + $0x80] sm:$0xff]
        %v2004 = vld [vmem:[#allocation8 + $0x88] sm:$0xff]
        %v2005 = vld [vmem:[#allocation8 + $0x90] sm:$0xff]
        %v2006 = vld [vmem:[#allocation8 + $0x98] sm:$0xff]
        %v2007 = vld [vmem:[#allocation8 + $0xa0] sm:$0xff]
        %v2008 = vld [vmem:[#allocation8 + $0xa8] sm:$0xff]
        %v2009 = vld [vmem:[#allocation8 + $0xb0] sm:$0xff]
        %v2010 = vld [vmem:[#allocation8 + $0xb8] sm:$0xff]
        %v2011 = vld [vmem:[#allocation8 + $0xc0] sm:$0xff]
        %v2012 = vld [vmem:[#allocation8 + $0xc8] sm:$0xff]
        %v2013 = vld [vmem:[#allocation8 + $0xd0] sm:$0xff]
        %v2014 = vld [vmem:[#allocation8 + $0xd8] sm:$0xff]
        %v2015 = vld [vmem:[#allocation8 + $0xe0] sm:$0xff]
        %v2016 = vld [vmem:[#allocation8 + $0xe8] sm:$0xff]
        %v2017 = vld [vmem:[#allocation8 + $0xf0] sm:$0xff]
        %v2018 = vld [vmem:[#allocation8 + $0xf8] sm:$0xff]
        %v2019 = vld [vmem:[%s7] sm:$0xf]
        %v2021 = vlaneseq
        %v2022 = vshrl.u32 %v2021, 7
        %v2023 = vsub.s32 0, %v2022
        %v2024 = vrot.slane %v2019, %v2023
        %v2025 = vlaneseq
        %v2026 = vshrl.u32 %v2025, 7
        %v2027 = vsub.s32 1, %v2026
        %v2028 = vrot.slane %v2019, %v2027
        %v2029 = vlaneseq
        %v2030 = vshrl.u32 %v2029, 7
        %v2031 = vsub.s32 2, %v2030
        %v2032 = vrot.slane %v2019, %v2031
        %v2033 = vlaneseq
        %v2034 = vshrl.u32 %v2033, 7
        %v2035 = vsub.s32 3, %v2034
        %v2036 = vrot.slane %v2019, %v2035
        %v2073 = vunpack.c.l.b16 %v1987
        %v2074 = vunpack.c.h.b16 %v1987
        %v2075 = vunpack.c.l.b16 %v1988
        %v2076 = vunpack.c.h.b16 %v1988
        %v2077 = vunpack.c.l.b16 %v1989
        %v2078 = vunpack.c.h.b16 %v1989
        %v2079 = vunpack.c.l.b16 %v1990
        %v2080 = vunpack.c.h.b16 %v1990
        %v2081 = vunpack.c.l.b16 %v1991
        %v2082 = vunpack.c.h.b16 %v1991
        %v2083 = vunpack.c.l.b16 %v1992
        %v2084 = vunpack.c.h.b16 %v1992
        %v2085 = vunpack.c.l.b16 %v1993
        %v2086 = vunpack.c.h.b16 %v1993
        %v2087 = vunpack.c.l.b16 %v1994
        %v2088 = vunpack.c.h.b16 %v1994
        %v2089 = vunpack.c.l.b16 %v1995
        %v2090 = vunpack.c.h.b16 %v1995
        %v2091 = vunpack.c.l.b16 %v1996
        %v2092 = vunpack.c.h.b16 %v1996
        %v2093 = vunpack.c.l.b16 %v1997
        %v2094 = vunpack.c.h.b16 %v1997
        %v2095 = vunpack.c.l.b16 %v1998
        %v2096 = vunpack.c.h.b16 %v1998
        %v2097 = vunpack.c.l.b16 %v1999
        %v2098 = vunpack.c.h.b16 %v1999
        %v2099 = vunpack.c.l.b16 %v2000
        %v2100 = vunpack.c.h.b16 %v2000
        %v2101 = vunpack.c.l.b16 %v2001
        %v2102 = vunpack.c.h.b16 %v2001
        %v2103 = vunpack.c.l.b16 %v2002
        %v2104 = vunpack.c.h.b16 %v2002
        %v2105 = vunpack.c.l.b16 %v2003
        %v2106 = vunpack.c.h.b16 %v2003
        %v2107 = vunpack.c.l.b16 %v2004
        %v2108 = vunpack.c.h.b16 %v2004
        %v2109 = vunpack.c.l.b16 %v2005
        %v2110 = vunpack.c.h.b16 %v2005
        %v2111 = vunpack.c.l.b16 %v2006
        %v2112 = vunpack.c.h.b16 %v2006
        %v2113 = vunpack.c.l.b16 %v2007
        %v2114 = vunpack.c.h.b16 %v2007
        %v2115 = vunpack.c.l.b16 %v2008
        %v2116 = vunpack.c.h.b16 %v2008
        %v2117 = vunpack.c.l.b16 %v2009
        %v2118 = vunpack.c.h.b16 %v2009
        %v2119 = vunpack.c.l.b16 %v2010
        %v2120 = vunpack.c.h.b16 %v2010
        %v2121 = vunpack.c.l.b16 %v2011
        %v2122 = vunpack.c.h.b16 %v2011
        %v2123 = vunpack.c.l.b16 %v2012
        %v2124 = vunpack.c.h.b16 %v2012
        %v2125 = vunpack.c.l.b16 %v2013
        %v2126 = vunpack.c.h.b16 %v2013
        %v2127 = vunpack.c.l.b16 %v2014
        %v2128 = vunpack.c.h.b16 %v2014
        %v2129 = vunpack.c.l.b16 %v2015
        %v2130 = vunpack.c.h.b16 %v2015
        %v2131 = vunpack.c.l.b16 %v2016
        %v2132 = vunpack.c.h.b16 %v2016
        %v2133 = vunpack.c.l.b16 %v2017
        %v2134 = vunpack.c.h.b16 %v2017
        %v2135 = vunpack.c.l.b16 %v2018
        %v2136 = vunpack.c.h.b16 %v2018
        %v2137 = vpack.c.b16 %v2077, %v2073
        %v2138 = vpack.c.b16 %v2078, %v2074
        %v2139 = vpack.c.b16 %v2079, %v2075
        %v2140 = vpack.c.b16 %v2080, %v2076
        %v2141 = vpack.c.b16 %v2085, %v2081
        %v2142 = vpack.c.b16 %v2086, %v2082
        %v2143 = vpack.c.b16 %v2087, %v2083
        %v2144 = vpack.c.b16 %v2088, %v2084
        %v2145 = vpack.c.b16 %v2093, %v2089
        %v2146 = vpack.c.b16 %v2094, %v2090
        %v2147 = vpack.c.b16 %v2095, %v2091
        %v2148 = vpack.c.b16 %v2096, %v2092
        %v2149 = vpack.c.b16 %v2101, %v2097
        %v2150 = vpack.c.b16 %v2102, %v2098
        %v2151 = vpack.c.b16 %v2103, %v2099
        %v2152 = vpack.c.b16 %v2104, %v2100
        %v2153 = vpack.c.b16 %v2109, %v2105
        %v2154 = vpack.c.b16 %v2110, %v2106
        %v2155 = vpack.c.b16 %v2111, %v2107
        %v2156 = vpack.c.b16 %v2112, %v2108
        %v2157 = vpack.c.b16 %v2117, %v2113
        %v2158 = vpack.c.b16 %v2118, %v2114
        %v2159 = vpack.c.b16 %v2119, %v2115
        %v2160 = vpack.c.b16 %v2120, %v2116
        %v2161 = vpack.c.b16 %v2125, %v2121
        %v2162 = vpack.c.b16 %v2126, %v2122
        %v2163 = vpack.c.b16 %v2127, %v2123
        %v2164 = vpack.c.b16 %v2128, %v2124
        %v2165 = vpack.c.b16 %v2133, %v2129
        %v2166 = vpack.c.b16 %v2134, %v2130
        %v2167 = vpack.c.b16 %v2135, %v2131
        %v2168 = vpack.c.b16 %v2136, %v2132
        %2201 = vmatprep.subr.bf16.mxu0 %v2138
        %2202 = vmatpush1.bf16.msra.mxu0 %v2137
        %2203 = vmatprep.subr.bf16.mxu0 %v2142
        %2204 = vmatpush1.bf16.msra.mxu0 %v2141
        %2205 = vmatprep.subr.bf16.mxu0 %v2146
        %2206 = vmatpush1.bf16.msra.mxu0 %v2145
        %2207 = vmatprep.subr.bf16.mxu0 %v2150
        %2208 = vmatpush1.bf16.msra.mxu0 %v2149
        %2209 = vmatprep.subr.bf16.mxu0 %v2154
        %2210 = vmatpush1.bf16.msra.mxu0 %v2153
        %2211 = vmatprep.subr.bf16.mxu0 %v2158
        %2212 = vmatpush1.bf16.msra.mxu0 %v2157
        %2213 = vmatprep.subr.bf16.mxu0 %v2162
        %2214 = vmatpush1.bf16.msra.mxu0 %v2161
        %2215 = vmatprep.subr.bf16.mxu0 %v2166
        %2216 = vmatpush1.bf16.msra.mxu0 %v2165
        %2217 = vmatprep.subr.bf16.mxu0 0
        %2218 = vmatpush1.bf16.msra.mxu0 0
        %2219 = vmatprep.subr.bf16.mxu0 0
        %2220 = vmatpush1.bf16.msra.mxu0 0
        %2221 = vmatprep.subr.bf16.mxu0 0
        %2222 = vmatpush1.bf16.msra.mxu0 0
        %2223 = vmatprep.subr.bf16.mxu0 0
        %2224 = vmatpush1.bf16.msra.mxu0 0
        %2225 = vmatprep.subr.bf16.mxu0 0
        %2226 = vmatpush1.bf16.msra.mxu0 0
        %2227 = vmatprep.subr.bf16.mxu0 0
        %2228 = vmatpush1.bf16.msra.mxu0 0
        %2229 = vmatprep.subr.bf16.mxu0 0
        %2230 = vmatpush1.bf16.msra.mxu0 0
        %2231 = vmatprep.subr.bf16.mxu0 0
        %2232 = vmatpush1.bf16.msra.mxu0 0
        %2233 = vmatprep.mubr.bf16.mxu0 0
        %2234 = vmatmul.mubr.bf16.gmra.mrb[0].mxu0 %v1985
        %v2235 = vpop.f32.mrb[0].mxu0
        %v2236 = vadd.f32 %v2024, %v2235
        %v2237 = vpop.f32.mrb[0].mxu0
        %v2238 = vadd.f32 %v2028, %v2237
        %v2239 = vpop.f32.mrb[0].mxu0
        %v2240 = vadd.f32 %v2024, %v2239
        %v2241 = vpop.f32.mrb[0].mxu0
        %v2242 = vadd.f32 %v2028, %v2241
        %2243 = vmatprep.mubr.bf16.mxu0 0
        %2244 = vmatmul.mubr.bf16.gmra.mrb[0].mxu0 %v1986
        %v2245 = vpop.f32.mrb[0].mxu0
        %v2246 = vadd.f32 %v2024, %v2245
        %v2247 = vpop.f32.mrb[0].mxu0
        %v2248 = vadd.f32 %v2028, %v2247
        %v2249 = vpop.f32.mrb[0].mxu0
        %v2250 = vadd.f32 %v2024, %v2249
        %v2251 = vpop.f32.mrb[0].mxu0
        %v2252 = vadd.f32 %v2028, %v2251
        %2253 = vdwg.mxu0
        %2254 = vmatprep.subr.bf16.mxu0 %v2140
        %2255 = vmatpush1.bf16.msra.mxu0 %v2139
        %2256 = vmatprep.subr.bf16.mxu0 %v2144
        %2257 = vmatpush1.bf16.msra.mxu0 %v2143
        %2258 = vmatprep.subr.bf16.mxu0 %v2148
        %2259 = vmatpush1.bf16.msra.mxu0 %v2147
        %2260 = vmatprep.subr.bf16.mxu0 %v2152
        %2261 = vmatpush1.bf16.msra.mxu0 %v2151
        %2262 = vmatprep.subr.bf16.mxu0 %v2156
        %2263 = vmatpush1.bf16.msra.mxu0 %v2155
        %2264 = vmatprep.subr.bf16.mxu0 %v2160
        %2265 = vmatpush1.bf16.msra.mxu0 %v2159
        %2266 = vmatprep.subr.bf16.mxu0 %v2164
        %2267 = vmatpush1.bf16.msra.mxu0 %v2163
        %2268 = vmatprep.subr.bf16.mxu0 %v2168
        %2269 = vmatpush1.bf16.msra.mxu0 %v2167
        %2270 = vmatprep.subr.bf16.mxu0 0
        %2271 = vmatpush1.bf16.msra.mxu0 0
        %2272 = vmatprep.subr.bf16.mxu0 0
        %2273 = vmatpush1.bf16.msra.mxu0 0
        %2274 = vmatprep.subr.bf16.mxu0 0
        %2275 = vmatpush1.bf16.msra.mxu0 0
        %2276 = vmatprep.subr.bf16.mxu0 0
        %2277 = vmatpush1.bf16.msra.mxu0 0
        %2278 = vmatprep.subr.bf16.mxu0 0
        %2279 = vmatpush1.bf16.msra.mxu0 0
        %2280 = vmatprep.subr.bf16.mxu0 0
        %2281 = vmatpush1.bf16.msra.mxu0 0
        %2282 = vmatprep.subr.bf16.mxu0 0
        %2283 = vmatpush1.bf16.msra.mxu0 0
        %2284 = vmatprep.subr.bf16.mxu0 0
        %2285 = vmatpush1.bf16.msra.mxu0 0
        %2286 = vmatprep.mubr.bf16.mxu0 0
        %2287 = vmatmul.mubr.bf16.gmra.mrb[0].mxu0 %v1985
        %v2288 = vpop.f32.mrb[0].mxu0
        %v2289 = vadd.f32 %v2032, %v2288
        %v2290 = vpop.f32.mrb[0].mxu0
        %v2291 = vadd.f32 %v2036, %v2290
        %v2292 = vpop.f32.mrb[0].mxu0
        %v2293 = vadd.f32 %v2032, %v2292
        %v2294 = vpop.f32.mrb[0].mxu0
        %v2295 = vadd.f32 %v2036, %v2294
        %2296 = vmatprep.mubr.bf16.mxu0 0
        %2297 = vmatmul.mubr.bf16.gmra.mrb[0].mxu0 %v1986
        %v2298 = vpop.f32.mrb[0].mxu0
        %v2299 = vadd.f32 %v2032, %v2298
        %v2300 = vpop.f32.mrb[0].mxu0
        %v2301 = vadd.f32 %v2036, %v2300
        %v2302 = vpop.f32.mrb[0].mxu0
        %v2303 = vadd.f32 %v2032, %v2302
        %v2304 = vpop.f32.mrb[0].mxu0
        %v2305 = vadd.f32 %v2036, %v2304
        %2306 = vdwg.mxu0
        %v2307 = vmul.f32 %v2236, 0.5
        %v2308 = vmul.f32 %v2238, 0.5
        %v2309 = vmul.f32 %v2289, 0.5
        %v2310 = vmul.f32 %v2291, 0.5
        %v2311 = vmul.f32 %v2240, 0.5
        %v2312 = vmul.f32 %v2242, 0.5
        %v2313 = vmul.f32 %v2293, 0.5
        %v2314 = vmul.f32 %v2295, 0.5
        %v2315 = vmul.f32 %v2246, 0.5
        %v2316 = vmul.f32 %v2248, 0.5
        %v2317 = vmul.f32 %v2299, 0.5
        %v2318 = vmul.f32 %v2301, 0.5
        %v2319 = vmul.f32 %v2250, 0.5
        %v2320 = vmul.f32 %v2252, 0.5
        %v2321 = vmul.f32 %v2303, 0.5
        %v2322 = vmul.f32 %v2305, 0.5
        %v2323 = vmul.f32 %v2236, 0.70710677
        %v2324 = vmul.f32 %v2238, 0.70710677
        %v2325 = vmul.f32 %v2289, 0.70710677
        %v2326 = vmul.f32 %v2291, 0.70710677
        %v2327 = vmul.f32 %v2240, 0.70710677
        %v2328 = vmul.f32 %v2242, 0.70710677
        %v2329 = vmul.f32 %v2293, 0.70710677
        %v2330 = vmul.f32 %v2295, 0.70710677
        %v2331 = vmul.f32 %v2246, 0.70710677
        %v2332 = vmul.f32 %v2248, 0.70710677
        %v2333 = vmul.f32 %v2299, 0.70710677
        %v2334 = vmul.f32 %v2301, 0.70710677
        %v2335 = vmul.f32 %v2250, 0.70710677
        %v2336 = vmul.f32 %v2252, 0.70710677
        %v2337 = vmul.f32 %v2303, 0.70710677
        %v2338 = vmul.f32 %v2305, 0.70710677
        %v2339 = verf.f32.pop %v2323
        %v2340 = verf.f32.pop %v2324
        %v2341 = verf.f32.pop %v2325
        %v2342 = verf.f32.pop %v2326
        %v2343 = verf.f32.pop %v2327
        %v2344 = verf.f32.pop %v2328
        %v2345 = verf.f32.pop %v2329
        %v2346 = verf.f32.pop %v2330
        %v2347 = verf.f32.pop %v2331
        %v2348 = verf.f32.pop %v2332
        %v2349 = verf.f32.pop %v2333
        %v2350 = verf.f32.pop %v2334
        %v2351 = verf.f32.pop %v2335
        %v2352 = verf.f32.pop %v2336
        %v2353 = verf.f32.pop %v2337
        %v2354 = verf.f32.pop %v2338
        %v2355 = vadd.f32 %v2339, 1.0
        %v2356 = vadd.f32 %v2340, 1.0
        %v2357 = vadd.f32 %v2341, 1.0
        %v2358 = vadd.f32 %v2342, 1.0
        %v2359 = vadd.f32 %v2343, 1.0
        %v2360 = vadd.f32 %v2344, 1.0
        %v2361 = vadd.f32 %v2345, 1.0
        %v2362 = vadd.f32 %v2346, 1.0
        %v2363 = vadd.f32 %v2347, 1.0
        %v2364 = vadd.f32 %v2348, 1.0
        %v2365 = vadd.f32 %v2349, 1.0
        %v2366 = vadd.f32 %v2350, 1.0
        %v2367 = vadd.f32 %v2351, 1.0
        %v2368 = vadd.f32 %v2352, 1.0
        %v2369 = vadd.f32 %v2353, 1.0
        %v2370 = vadd.f32 %v2354, 1.0
        %v2371 = vmul.f32 %v2307, %v2355
        %v2372 = vmul.f32 %v2308, %v2356
        %v2373 = vmul.f32 %v2309, %v2357
        %v2374 = vmul.f32 %v2310, %v2358
        %v2375 = vmul.f32 %v2311, %v2359
        %v2376 = vmul.f32 %v2312, %v2360
        %v2377 = vmul.f32 %v2313, %v2361
        %v2378 = vmul.f32 %v2314, %v2362
        %v2379 = vmul.f32 %v2315, %v2363
        %v2380 = vmul.f32 %v2316, %v2364
        %v2381 = vmul.f32 %v2317, %v2365
        %v2382 = vmul.f32 %v2318, %v2366
        %v2383 = vmul.f32 %v2319, %v2367
        %v2384 = vmul.f32 %v2320, %v2368
        %v2385 = vmul.f32 %v2321, %v2369
        %v2386 = vmul.f32 %v2322, %v2370
        %v2387 = vpack.c.bf16 %v2375, %v2371
        %v2388 = vpack.c.bf16 %v2376, %v2372
        %v2389 = vpack.c.bf16 %v2377, %v2373
        %v2390 = vpack.c.bf16 %v2378, %v2374
        %v2391 = vpack.c.bf16 %v2383, %v2379
        %v2392 = vpack.c.bf16 %v2384, %v2380
        %v2393 = vpack.c.bf16 %v2385, %v2381
        %v2394 = vpack.c.bf16 %v2386, %v2382
        %v2395 = vld [vmem:[#allocation10] sm:$0xf]
        %v2396 = vld [vmem:[#allocation10 + $0x4] sm:$0xf]
        %v2397 = vld [vmem:[#allocation10 + $0x8] sm:$0xf]
        %v2398 = vld [vmem:[#allocation10 + $0xc] sm:$0xf]
        %v2399 = vld [vmem:[#allocation10 + $0x10] sm:$0xf]
        %v2400 = vld [vmem:[#allocation10 + $0x14] sm:$0xf]
        %v2401 = vld [vmem:[#allocation10 + $0x18] sm:$0xf]
        %v2402 = vld [vmem:[#allocation10 + $0x1c] sm:$0xf]
        %v2403 = vld [vmem:[#allocation10 + $0x20] sm:$0xf]
        %v2404 = vld [vmem:[#allocation10 + $0x24] sm:$0xf]
        %v2405 = vld [vmem:[#allocation10 + $0x28] sm:$0xf]
        %v2406 = vld [vmem:[#allocation10 + $0x2c] sm:$0xf]
        %v2407 = vld [vmem:[#allocation10 + $0x30] sm:$0xf]
        %v2408 = vld [vmem:[#allocation10 + $0x34] sm:$0xf]
        %v2409 = vld [vmem:[#allocation10 + $0x38] sm:$0xf]
        %v2410 = vld [vmem:[#allocation10 + $0x3c] sm:$0xf]
        %v2411 = vld [vmem:[#allocation10 + $0x40] sm:$0xf]
        %v2412 = vld [vmem:[#allocation10 + $0x44] sm:$0xf]
        %v2413 = vld [vmem:[#allocation10 + $0x48] sm:$0xf]
        %v2414 = vld [vmem:[#allocation10 + $0x4c] sm:$0xf]
        %v2415 = vld [vmem:[#allocation10 + $0x50] sm:$0xf]
        %v2416 = vld [vmem:[#allocation10 + $0x54] sm:$0xf]
        %v2417 = vld [vmem:[#allocation10 + $0x58] sm:$0xf]
        %v2418 = vld [vmem:[#allocation10 + $0x5c] sm:$0xf]
        %v2419 = vld [vmem:[#allocation10 + $0x60] sm:$0xf]
        %v2420 = vld [vmem:[#allocation10 + $0x64] sm:$0xf]
        %v2421 = vld [vmem:[#allocation10 + $0x68] sm:$0xf]
        %v2422 = vld [vmem:[#allocation10 + $0x6c] sm:$0xf]
        %v2423 = vld [vmem:[#allocation10 + $0x70] sm:$0xf]
        %v2424 = vld [vmem:[#allocation10 + $0x74] sm:$0xf]
        %v2425 = vld [vmem:[#allocation10 + $0x78] sm:$0xf]
        %v2426 = vld [vmem:[#allocation10 + $0x7c] sm:$0xf]
        %v2427 = vld [vmem:[#allocation10 + $0x80] sm:$0xf]
        %v2428 = vld [vmem:[#allocation10 + $0x84] sm:$0xf]
        %v2429 = vld [vmem:[#allocation10 + $0x88] sm:$0xf]
        %v2430 = vld [vmem:[#allocation10 + $0x8c] sm:$0xf]
        %v2431 = vld [vmem:[#allocation10 + $0x90] sm:$0xf]
        %v2432 = vld [vmem:[#allocation10 + $0x94] sm:$0xf]
        %v2433 = vld [vmem:[#allocation10 + $0x98] sm:$0xf]
        %v2434 = vld [vmem:[#allocation10 + $0x9c] sm:$0xf]
        %v2435 = vld [vmem:[#allocation10 + $0xa0] sm:$0xf]
        %v2436 = vld [vmem:[#allocation10 + $0xa4] sm:$0xf]
        %v2437 = vld [vmem:[#allocation10 + $0xa8] sm:$0xf]
        %v2438 = vld [vmem:[#allocation10 + $0xac] sm:$0xf]
        %v2439 = vld [vmem:[#allocation10 + $0xb0] sm:$0xf]
        %v2440 = vld [vmem:[#allocation10 + $0xb4] sm:$0xf]
        %v2441 = vld [vmem:[#allocation10 + $0xb8] sm:$0xf]
        %v2442 = vld [vmem:[#allocation10 + $0xbc] sm:$0xf]
        %v2443 = vld [vmem:[#allocation10 + $0xc0] sm:$0xf]
        %v2444 = vld [vmem:[#allocation10 + $0xc4] sm:$0xf]
        %v2445 = vld [vmem:[#allocation10 + $0xc8] sm:$0xf]
        %v2446 = vld [vmem:[#allocation10 + $0xcc] sm:$0xf]
        %v2447 = vld [vmem:[#allocation10 + $0xd0] sm:$0xf]
        %v2448 = vld [vmem:[#allocation10 + $0xd4] sm:$0xf]
        %v2449 = vld [vmem:[#allocation10 + $0xd8] sm:$0xf]
        %v2450 = vld [vmem:[#allocation10 + $0xdc] sm:$0xf]
        %v2451 = vld [vmem:[#allocation10 + $0xe0] sm:$0xf]
        %v2452 = vld [vmem:[#allocation10 + $0xe4] sm:$0xf]
        %v2453 = vld [vmem:[#allocation10 + $0xe8] sm:$0xf]
        %v2454 = vld [vmem:[#allocation10 + $0xec] sm:$0xf]
        %v2455 = vld [vmem:[#allocation10 + $0xf0] sm:$0xf]
        %v2456 = vld [vmem:[#allocation10 + $0xf4] sm:$0xf]
        %v2457 = vld [vmem:[#allocation10 + $0xf8] sm:$0xf]
        %v2458 = vld [vmem:[#allocation10 + $0xfc] sm:$0xf]
        %v2459 = vld [vmem:[%s9] sm:$0x1]
        %v2461 = vlaneseq
        %v2462 = vshrl.u32 %v2461, 7
        %v2463 = vsub.s32 0, %v2462
        %v2464 = vrot.slane %v2459, %v2463
        %v2530 = vunpack.c.l.b16 %v2395
        %v2531 = vunpack.c.l.b16 %v2396
        %v2532 = vunpack.c.l.b16 %v2397
        %v2533 = vunpack.c.l.b16 %v2398
        %v2534 = vunpack.c.l.b16 %v2399
        %v2535 = vunpack.c.l.b16 %v2400
        %v2536 = vunpack.c.l.b16 %v2401
        %v2537 = vunpack.c.l.b16 %v2402
        %v2538 = vunpack.c.l.b16 %v2403
        %v2539 = vunpack.c.l.b16 %v2404
        %v2540 = vunpack.c.l.b16 %v2405
        %v2541 = vunpack.c.l.b16 %v2406
        %v2542 = vunpack.c.l.b16 %v2407
        %v2543 = vunpack.c.l.b16 %v2408
        %v2544 = vunpack.c.l.b16 %v2409
        %v2545 = vunpack.c.l.b16 %v2410
        %v2546 = vunpack.c.l.b16 %v2411
        %v2547 = vunpack.c.l.b16 %v2412
        %v2548 = vunpack.c.l.b16 %v2413
        %v2549 = vunpack.c.l.b16 %v2414
        %v2550 = vunpack.c.l.b16 %v2415
        %v2551 = vunpack.c.l.b16 %v2416
        %v2552 = vunpack.c.l.b16 %v2417
        %v2553 = vunpack.c.l.b16 %v2418
        %v2554 = vunpack.c.l.b16 %v2419
        %v2555 = vunpack.c.l.b16 %v2420
        %v2556 = vunpack.c.l.b16 %v2421
        %v2557 = vunpack.c.l.b16 %v2422
        %v2558 = vunpack.c.l.b16 %v2423
        %v2559 = vunpack.c.l.b16 %v2424
        %v2560 = vunpack.c.l.b16 %v2425
        %v2561 = vunpack.c.l.b16 %v2426
        %v2562 = vunpack.c.l.b16 %v2427
        %v2563 = vunpack.c.l.b16 %v2428
        %v2564 = vunpack.c.l.b16 %v2429
        %v2565 = vunpack.c.l.b16 %v2430
        %v2566 = vunpack.c.l.b16 %v2431
        %v2567 = vunpack.c.l.b16 %v2432
        %v2568 = vunpack.c.l.b16 %v2433
        %v2569 = vunpack.c.l.b16 %v2434
        %v2570 = vunpack.c.l.b16 %v2435
        %v2571 = vunpack.c.l.b16 %v2436
        %v2572 = vunpack.c.l.b16 %v2437
        %v2573 = vunpack.c.l.b16 %v2438
        %v2574 = vunpack.c.l.b16 %v2439
        %v2575 = vunpack.c.l.b16 %v2440
        %v2576 = vunpack.c.l.b16 %v2441
        %v2577 = vunpack.c.l.b16 %v2442
        %v2578 = vunpack.c.l.b16 %v2443
        %v2579 = vunpack.c.l.b16 %v2444
        %v2580 = vunpack.c.l.b16 %v2445
        %v2581 = vunpack.c.l.b16 %v2446
        %v2582 = vunpack.c.l.b16 %v2447
        %v2583 = vunpack.c.l.b16 %v2448
        %v2584 = vunpack.c.l.b16 %v2449
        %v2585 = vunpack.c.l.b16 %v2450
        %v2586 = vunpack.c.l.b16 %v2451
        %v2587 = vunpack.c.l.b16 %v2452
        %v2588 = vunpack.c.l.b16 %v2453
        %v2589 = vunpack.c.l.b16 %v2454
        %v2590 = vunpack.c.l.b16 %v2455
        %v2591 = vunpack.c.l.b16 %v2456
        %v2592 = vunpack.c.l.b16 %v2457
        %v2593 = vunpack.c.l.b16 %v2458
        %v2594 = vpack.c.b16 %v2531, %v2530
        %v2595 = vpack.c.b16 %v2533, %v2532
        %v2596 = vpack.c.b16 %v2535, %v2534
        %v2597 = vpack.c.b16 %v2537, %v2536
        %v2598 = vpack.c.b16 %v2539, %v2538
        %v2599 = vpack.c.b16 %v2541, %v2540
        %v2600 = vpack.c.b16 %v2543, %v2542
        %v2601 = vpack.c.b16 %v2545, %v2544
        %v2602 = vpack.c.b16 %v2547, %v2546
        %v2603 = vpack.c.b16 %v2549, %v2548
        %v2604 = vpack.c.b16 %v2551, %v2550
        %v2605 = vpack.c.b16 %v2553, %v2552
        %v2606 = vpack.c.b16 %v2555, %v2554
        %v2607 = vpack.c.b16 %v2557, %v2556
        %v2608 = vpack.c.b16 %v2559, %v2558
        %v2609 = vpack.c.b16 %v2561, %v2560
        %v2610 = vpack.c.b16 %v2563, %v2562
        %v2611 = vpack.c.b16 %v2565, %v2564
        %v2612 = vpack.c.b16 %v2567, %v2566
        %v2613 = vpack.c.b16 %v2569, %v2568
        %v2614 = vpack.c.b16 %v2571, %v2570
        %v2615 = vpack.c.b16 %v2573, %v2572
        %v2616 = vpack.c.b16 %v2575, %v2574
        %v2617 = vpack.c.b16 %v2577, %v2576
        %v2618 = vpack.c.b16 %v2579, %v2578
        %v2619 = vpack.c.b16 %v2581, %v2580
        %v2620 = vpack.c.b16 %v2583, %v2582
        %v2621 = vpack.c.b16 %v2585, %v2584
        %v2622 = vpack.c.b16 %v2587, %v2586
        %v2623 = vpack.c.b16 %v2589, %v2588
        %v2624 = vpack.c.b16 %v2591, %v2590
        %v2625 = vpack.c.b16 %v2593, %v2592
        %2658 = vmatprep.subr.bf16.mxu0 0
        %2659 = vmatpush1.bf16.msra.mxu0 %v2594
        %2660 = vmatprep.subr.bf16.mxu0 0
        %2661 = vmatpush1.bf16.msra.mxu0 %v2595
        %2662 = vmatprep.subr.bf16.mxu0 0
        %2663 = vmatpush1.bf16.msra.mxu0 %v2596
        %2664 = vmatprep.subr.bf16.mxu0 0
        %2665 = vmatpush1.bf16.msra.mxu0 %v2597
        %2666 = vmatprep.subr.bf16.mxu0 0
        %2667 = vmatpush1.bf16.msra.mxu0 %v2598
        %2668 = vmatprep.subr.bf16.mxu0 0
        %2669 = vmatpush1.bf16.msra.mxu0 %v2599
        %2670 = vmatprep.subr.bf16.mxu0 0
        %2671 = vmatpush1.bf16.msra.mxu0 %v2600
        %2672 = vmatprep.subr.bf16.mxu0 0
        %2673 = vmatpush1.bf16.msra.mxu0 %v2601
        %2674 = vmatprep.subr.bf16.mxu0 0
        %2675 = vmatpush1.bf16.msra.mxu0 %v2602
        %2676 = vmatprep.subr.bf16.mxu0 0
        %2677 = vmatpush1.bf16.msra.mxu0 %v2603
        %2678 = vmatprep.subr.bf16.mxu0 0
        %2679 = vmatpush1.bf16.msra.mxu0 %v2604
        %2680 = vmatprep.subr.bf16.mxu0 0
        %2681 = vmatpush1.bf16.msra.mxu0 %v2605
        %2682 = vmatprep.subr.bf16.mxu0 0
        %2683 = vmatpush1.bf16.msra.mxu0 %v2606
        %2684 = vmatprep.subr.bf16.mxu0 0
        %2685 = vmatpush1.bf16.msra.mxu0 %v2607
        %2686 = vmatprep.subr.bf16.mxu0 0
        %2687 = vmatpush1.bf16.msra.mxu0 %v2608
        %2688 = vmatprep.subr.bf16.mxu0 0
        %2689 = vmatpush1.bf16.msra.mxu0 %v2609
        %2690 = vmatprep.mubr.bf16.mxu0 %v2388
        %2691 = vmatmul.mubr.bf16.gmra.mrb[0].mxu0 %v2387
        %v2692 = vpop.f32.mrb[0].mxu0
        %v2693 = vadd.f32 %v2464, %v2692
        %v2694 = vpop.f32.mrb[0].mxu0
        %v2695 = vpop.f32.mrb[0].mxu0
        %v2696 = vadd.f32 %v2464, %v2695
        %v2697 = vpop.f32.mrb[0].mxu0
        %2698 = vmatprep.mubr.bf16.mxu0 %v2392
        %2699 = vmatmul.mubr.bf16.gmra.mrb[0].mxu0 %v2391
        %v2700 = vpop.f32.mrb[0].mxu0
        %v2701 = vadd.f32 %v2464, %v2700
        %v2702 = vpop.f32.mrb[0].mxu0
        %v2703 = vpop.f32.mrb[0].mxu0
        %v2704 = vadd.f32 %v2464, %v2703
        %v2705 = vpop.f32.mrb[0].mxu0
        %2706 = vdwg.mxu0
        %2707 = vmatprep.subr.bf16.mxu0 0
        %2708 = vmatpush1.bf16.msra.mxu0 %v2610
        %2709 = vmatprep.subr.bf16.mxu0 0
        %2710 = vmatpush1.bf16.msra.mxu0 %v2611
        %2711 = vmatprep.subr.bf16.mxu0 0
        %2712 = vmatpush1.bf16.msra.mxu0 %v2612
        %2713 = vmatprep.subr.bf16.mxu0 0
        %2714 = vmatpush1.bf16.msra.mxu0 %v2613
        %2715 = vmatprep.subr.bf16.mxu0 0
        %2716 = vmatpush1.bf16.msra.mxu0 %v2614
        %2717 = vmatprep.subr.bf16.mxu0 0
        %2718 = vmatpush1.bf16.msra.mxu0 %v2615
        %2719 = vmatprep.subr.bf16.mxu0 0
        %2720 = vmatpush1.bf16.msra.mxu0 %v2616
        %2721 = vmatprep.subr.bf16.mxu0 0
        %2722 = vmatpush1.bf16.msra.mxu0 %v2617
        %2723 = vmatprep.subr.bf16.mxu0 0
        %2724 = vmatpush1.bf16.msra.mxu0 %v2618
        %2725 = vmatprep.subr.bf16.mxu0 0
        %2726 = vmatpush1.bf16.msra.mxu0 %v2619
        %2727 = vmatprep.subr.bf16.mxu0 0
        %2728 = vmatpush1.bf16.msra.mxu0 %v2620
        %2729 = vmatprep.subr.bf16.mxu0 0
        %2730 = vmatpush1.bf16.msra.mxu0 %v2621
        %2731 = vmatprep.subr.bf16.mxu0 0
        %2732 = vmatpush1.bf16.msra.mxu0 %v2622
        %2733 = vmatprep.subr.bf16.mxu0 0
        %2734 = vmatpush1.bf16.msra.mxu0 %v2623
        %2735 = vmatprep.subr.bf16.mxu0 0
        %2736 = vmatpush1.bf16.msra.mxu0 %v2624
        %2737 = vmatprep.subr.bf16.mxu0 0
        %2738 = vmatpush1.bf16.msra.mxu0 %v2625
        %2739 = vmatprep.mubr.bf16.mxu0 %v2390
        %2740 = vmatmul.mubr.bf16.gmra.mrb[0].mxu0 %v2389
        %v2741 = vpop.f32.mrb[0].mxu0
        %v2742 = vadd.f32 %v2693, %v2741
        %v2743 = vpop.f32.mrb[0].mxu0
        %v2744 = vpop.f32.mrb[0].mxu0
        %v2745 = vadd.f32 %v2696, %v2744
        %v2746 = vpop.f32.mrb[0].mxu0
        %2747 = vmatprep.mubr.bf16.mxu0 %v2394
        %2748 = vmatmul.mubr.bf16.gmra.mrb[0].mxu0 %v2393
        %v2749 = vpop.f32.mrb[0].mxu0
        %v2750 = vadd.f32 %v2701, %v2749
        %v2751 = vpop.f32.mrb[0].mxu0
        %v2752 = vpop.f32.mrb[0].mxu0
        %v2753 = vadd.f32 %v2704, %v2752
        %v2754 = vpop.f32.mrb[0].mxu0
        %2755 = vdwg.mxu0
        %v2756 = vadd.f32 %v1981, %v2742
        %v2757 = vadd.f32 %v1982, %v2745
        %v2758 = vadd.f32 %v1983, %v2750
        %v2759 = vadd.f32 %v1984, %v2753
        %v2760 = vld [vmem:[%s10] sm:$0x1]
        %v2761 = vld [vmem:[%s11] sm:$0x1]
        %2762 = vadd.xlane.f32.xlu0 %v2756
        %v2763 = vpop.xlane.xlu0 %2762
        %2764 = vadd.xlane.f32.xlu0 %v2757
        %v2765 = vpop.xlane.xlu0 %2764
        %2766 = vadd.xlane.f32.xlu0 %v2758
        %v2767 = vpop.xlane.xlu0 %2766
        %2768 = vadd.xlane.f32.xlu0 %v2759
        %v2769 = vpop.xlane.xlu0 %2768
        %v2770 = vmul.f32 %v2763, %v1928
        %v2771 = vmul.f32 %v2765, %v1928
        %v2772 = vmul.f32 %v2767, %v1928
        %v2773 = vmul.f32 %v2769, %v1928
        %v2774 = vsub.f32 %v2756, %v2770
        %v2775 = vsub.f32 %v2757, %v2771
        %v2776 = vsub.f32 %v2758, %v2772
        %v2777 = vsub.f32 %v2759, %v2773
        %v2778 = vmul.f32 %v2774, %v2774
        %v2779 = vmul.f32 %v2775, %v2775
        %v2780 = vmul.f32 %v2776, %v2776
        %v2781 = vmul.f32 %v2777, %v2777
        %2782 = vadd.xlane.f32.xlu0 %v2778
        %v2783 = vpop.xlane.xlu0 %2782
        %2784 = vadd.xlane.f32.xlu0 %v2779
        %v2785 = vpop.xlane.xlu0 %2784
        %2786 = vadd.xlane.f32.xlu0 %v2780
        %v2787 = vpop.xlane.xlu0 %2786
        %2788 = vadd.xlane.f32.xlu0 %v2781
        %v2789 = vpop.xlane.xlu0 %2788
        %v2790 = vmul.f32 %v2783, %v1928
        %v2791 = vmul.f32 %v2785, %v1928
        %v2792 = vmul.f32 %v2787, %v1928
        %v2793 = vmul.f32 %v2789, %v1928
        %v2794 = vadd.f32 %v2790, 1e-05
        %v2795 = vadd.f32 %v2791, 1e-05
        %v2796 = vadd.f32 %v2792, 1e-05
        %v2797 = vadd.f32 %v2793, 1e-05
        %v2798 = vrsqrt.pop %v2794
        %v2799 = vrsqrt.pop %v2795
        %v2800 = vrsqrt.pop %v2796
        %v2801 = vrsqrt.pop %v2797
        %v2802 = vmul.f32 %v2774, %v2798
        %v2803 = vmul.f32 %v2775, %v2799
        %v2804 = vmul.f32 %v2776, %v2800
        %v2805 = vmul.f32 %v2777, %v2801
        %v2807 = vlaneseq
        %v2808 = vshrl.u32 %v2807, 7
        %v2809 = vsub.s32 0, %v2808
        %v2810 = vrot.slane %v2760, %v2809
        %v2812 = vmul.f32 %v2802, %v2810
        %v2813 = vmul.f32 %v2803, %v2810
        %v2814 = vmul.f32 %v2804, %v2810
        %v2815 = vmul.f32 %v2805, %v2810
        %v2817 = vlaneseq
        %v2818 = vshrl.u32 %v2817, 7
        %v2819 = vsub.s32 0, %v2818
        %v2820 = vrot.slane %v2761, %v2819
        %v2822 = vadd.f32 %v2812, %v2820
        %v2823 = vadd.f32 %v2813, %v2820
        %v2824 = vadd.f32 %v2814, %v2820
        %v2825 = vadd.f32 %v2815, %v2820
        %2826 = vst [vmem:[%s490] sm:$0xff] %v2822
        %2827 = vst [vmem:[%s490 + $0x8] sm:$0xff] %v2823
        %2828 = vst [vmem:[%s490 + $0x10] sm:$0xff] %v2824
        %2829 = vst [vmem:[%s490 + $0x18] sm:$0xff] %v2825
        %s2830 = sand.u32 %s296, 1
        %s2831 = scalar_lea.sflag [#allocation4], %s2830
        %s2832 = sand.u32 %s296, 1
        %s2833 = smul.addr %s2832, 32
        %s2834 = scalar_lea.vmem [#allocation11], %s2833
        // Predicated region
        $region89: #{tpu_custom_call.1} parent=67 // pred_check
          %p2835 = pneg %p306
        $region90: #{tpu_custom_call.1} parent=67 // pred_check_branch
          %2837 = sbr.rel (%p2835) target = $region92
        $region91: #{tpu_custom_call.1} parent=67 // pred_region
          %s2838 = smul.u32 2, %s31
          %s2840 = ssub.s32 512, 512
          %2841 = vsyncadd %s2831, %s2840
          %s2842 = smul.addr %s2838, 2
          %s2843 = smul.addr %s2842, 128
          %s2844 = scalar_lea.hbm %s12, %s2843
          %s2845 = sshll.u32 %s2834, 4
          %s2846 = int_to_ptr.vmem [resolvable:$true] %s2845
          %2851 = dma.vmem_to_hbm [thread:$0]  %s2846, 512, %s2844, %s2831, 128, 128, 8
        $region92: #{tpu_custom_call.1} parent=67 // pred_fallthru
          _
      $region68: #{tpu_custom_call.1} parent=5 // pred_fallthru
        _
      %p2852 = scmp.le.s32.totalorder 2, %s26
      // Predicated region
      $region93: #{tpu_custom_call.1} parent=5 // pred_check
        %p2853 = pneg %p2852
      $region94: #{tpu_custom_call.1} parent=5 // pred_check_branch
        %2855 = sbr.rel (%p2853) target = $region96
      $region95: #{tpu_custom_call.1} parent=5 // pred_region
        %s2856 = ssub.s32 %s26, 2
        // Predicated region
        $region97: #{tpu_custom_call.1} parent=95 // pred_check
          %p2857 = pneg %p312
        $region98: #{tpu_custom_call.1} parent=95 // pred_check_branch
          %2859 = sbr.rel (%p2857) target = $region100
        $region99: #{tpu_custom_call.1} parent=95 // pred_region
          %s2860 = sand.u32 %s297, 1
          %s2861 = scalar_lea.sflag [#allocation4], %s2860
          %s2862 = sand.u32 %s297, 1
          %s2863 = smul.addr %s2862, 32
          %s2864 = scalar_lea.vmem [#allocation11], %s2863
          %2865 = dma.done %s2861, 512
        $region100: #{tpu_custom_call.1} parent=95 // pred_fallthru
          _
      $region96: #{tpu_custom_call.1} parent=5 // pred_fallthru
        _
    $region6: #{tpu_custom_call.1} parent=1 // loop_footer
      %s30 = sadd.s32 1, %s26
    $region7: #{tpu_custom_call.1} parent=1 // loop_footer_branch
      %25 = sbr.rel target = $region3
    $region8: #{tpu_custom_call.1} parent=1 // loop_exit
      _
    %2866 = vsyncpa [#allocation3], 1
    %s2867 = scalar_lea.sflag [#allocation3], 1
    %2868 = vsyncpa %s2867, 1
    %2869 = vsyncpa [#allocation6], 1
    %2870 = vsyncpa [#allocation9], 1
    %2871 = vsyncpa [#allocation4], 1
    %s2872 = scalar_lea.sflag [#allocation4], 1
    %2873 = vsyncpa %s2872, 1

</llo_original>
